<compile_context>
chip_gen: v6e
topology: v6e:2x2x1
jax: 0.10.0
libtpu: 0.0.40
codegen_flags: <defaults>
</compile_context>

<pallas_src>
import jax
import jax.numpy as jnp
from jax.experimental import pallas as pl
from jax.experimental.pallas import tpu as pltpu

CLASSES = ['amusement', 'anger', 'awe', 'contentment',
           'disgust', 'excitement', 'fear', 'sadness']
NUM_CLASSES = len(CLASSES)          # 8
HIDDEN = 128
FC_HIDDEN = HIDDEN // 2             # 64


def emotion_lstm_kernel(x_ref,                         # (T*Bp, I) f32, time-major flattened
                        wih1_ref, whh1_ref, b1_ref,    # (I,4H) f32, (H,4H) bf16, (1,4H) f32
                        wih2_ref, whh2_ref, b2_ref,    # (H,4H) bf16, (H,4H) bf16, (1,4H) f32
                        wfc_ref, bfc_ref,              # (H,64) bf16, (1,64) f32
                        wout_ref, bout_ref,            # (64,8) bf16, (1,8) f32
                        logits_ref, probs_ref):        # (Bp,8) f32, (Bp,8) f32
    Bp = logits_ref.shape[0]                 # padded batch (multiple of 8 sublanes)
    T = x_ref.shape[0] // Bp
    H = whh1_ref.shape[0]

    whh1 = whh1_ref[...]                     # bf16
    wih2 = wih2_ref[...]                     # bf16
    whh2 = whh2_ref[...]                     # bf16
    # Hoisted broadcast (JAX does not CSE broadcast_in_dim inside the unrolled loop).
    b2b = jnp.broadcast_to(b2_ref[...], (Bp, 4 * H))

    # Hoisted layer-1 input projection over all timesteps: one matmul before
    # the recurrence, fused bias (b_ih + b_hh) folded in.  Rows are t*Bp + b.
    xproj = (jnp.dot(x_ref[...], wih1_ref[...],
                     preferred_element_type=jnp.float32)
             + b1_ref[...])                                    # (T*Bp, 4H) f32

    def sigmoid(v):
        # single EUP push (tanh) instead of exp + reciprocal
        return 0.5 * jnp.tanh(0.5 * v) + 0.5

    def gate_split(gates):
        # PyTorch gate order: i, f, g, o
        i = sigmoid(gates[:, 0 * H:1 * H])
        f = sigmoid(gates[:, 1 * H:2 * H])
        g = jnp.tanh(gates[:, 2 * H:3 * H])
        o = sigmoid(gates[:, 3 * H:4 * H])
        return i, f, g, o

    zero = jnp.zeros((Bp, H), dtype=jnp.float32)
    h1 = c1 = h2 = c2 = zero                       # fp32 recurrent state
    h1b = h2b = zero.astype(jnp.bfloat16)          # bf16 copies used as MXU operands

    # Fully unrolled recurrence (T is a small compile-time constant); all
    # slices are static and sublane-aligned (Bp is a multiple of 8).
    for t in range(T):
        # Layer 1: only the recurrent dot (K = H = 128, bf16) on the serial path.
        gates1 = (xproj[t * Bp:(t + 1) * Bp, :]
                  + jnp.dot(h1b, whh1, preferred_element_type=jnp.float32))
        i1, f1, g1, o1 = gate_split(gates1)
        c1 = f1 * c1 + i1 * g1
        h1 = o1 * jnp.tanh(c1)
        h1b = h1.astype(jnp.bfloat16)

        # TODO(synk): nn.LSTM inter-layer dropout(0.3) is train-only; identity here (inference).

        # Layer 2: two separate dots — the h2(t-1) @ whh2 half has no
        # dependence on h1(t), so it overlaps layer-1's gate math.
        gates2 = (jnp.dot(h1b, wih2, preferred_element_type=jnp.float32)
                  + jnp.dot(h2b, whh2, preferred_element_type=jnp.float32)
                  + b2b)
        i2, f2, g2, o2 = gate_split(gates2)
        c2 = f2 * c2 + i2 * g2
        h2 = o2 * jnp.tanh(c2)
        h2b = h2.astype(jnp.bfloat16)

    # Head: fc -> relu -> (dropout(0.2)=identity at inference) -> output -> softmax(dim=1)
    z = jnp.dot(h2b, wfc_ref[...], preferred_element_type=jnp.float32) + bfc_ref[...]
    z = jnp.maximum(z, 0.0)
    logits = (jnp.dot(z.astype(jnp.bfloat16), wout_ref[...],
                      preferred_element_type=jnp.float32)
              + bout_ref[...])
    logits_ref[...] = logits

    # Softmax with exact divide (runs once per call; must normalize tightly).
    m = jnp.max(logits, axis=1, keepdims=True)
    e = jnp.exp(logits - m)
    s = jnp.sum(e, axis=1, keepdims=True)
    probs_ref[...] = e / s


@jax.jit
def emotion_lstm_forward(x, kparams):
    """x: (B, T, I) float32 (PyTorch batch_first).  kparams from prepare_params.
    Returns (logits, probs), each (B, NUM_CLASSES)."""
    wih1, whh1, b1, wih2, whh2, b2, wfc, bfc, wout, bout = kparams
    B, T, I = x.shape

    # Pad batch to a multiple of 8 sublanes so every per-step slice / state
    # tensor inside the kernel is vreg-aligned.  Padded rows are discarded.
    Bp = ((B + 7) // 8) * 8
    x_p = jnp.pad(x, ((0, Bp - B), (0, 0), (0, 0)))
    # Tiny prep, fused under jit: time-major flatten (row = t*Bp + b).
    x_flat = jnp.transpose(x_p, (1, 0, 2)).reshape(T * Bp, I)

    vmem = pl.BlockSpec(memory_space=pltpu.MemorySpace.VMEM)
    kernel = pl.pallas_call(
        emotion_lstm_kernel,
        out_shape=(jax.ShapeDtypeStruct((Bp, NUM_CLASSES), jnp.float32),
                   jax.ShapeDtypeStruct((Bp, NUM_CLASSES), jnp.float32)),
        in_specs=[vmem] * 11,
        out_specs=(vmem, vmem),
        # Working set < 0.7 MiB: grid-less & fully VMEM-resident on v5e/v6e/v7x.
        # For larger batches: add a batch grid axis with
        # dimension_semantics=("parallel",) to use v7x's second TensorCore, and
        # overlap the bulk weight DMA (pl.ANY + make_async_copy) behind xproj.
    )
    logits, probs = kernel(x_flat, wih1, whh1, b1, wih2, whh2, b2,
                           wfc, bfc, wout, bout)
    return logits[:B], probs[:B]


def init_params(key):
    """Deterministic PyTorch-style uniform init; weights pre-transposed to
    (in, out) and the two LSTM bias vectors fused (b_ih + b_hh).  All fp32."""
    H, I = HIDDEN, NUM_CLASSES
    keys = jax.random.split(key, 12)
    k_lstm = 1.0 / jnp.sqrt(jnp.float32(H))

    def u(kk, shape, k):
        return jax.random.uniform(kk, shape, jnp.float32, -k, k)

    wih1 = u(keys[0], (I, 4 * H), k_lstm)
    whh1 = u(keys[1], (H, 4 * H), k_lstm)
    b1 = u(keys[2], (1, 4 * H), k_lstm) + u(keys[3], (1, 4 * H), k_lstm)
    wih2 = u(keys[4], (H, 4 * H), k_lstm)
    whh2 = u(keys[5], (H, 4 * H), k_lstm)
    b2 = u(keys[6], (1, 4 * H), k_lstm) + u(keys[7], (1, 4 * H), k_lstm)

    k_fc = 1.0 / jnp.sqrt(jnp.float32(H))
    wfc = u(keys[8], (H, FC_HIDDEN), k_fc)
    bfc = u(keys[9], (1, FC_HIDDEN), k_fc)

    k_out = 1.0 / jnp.sqrt(jnp.float32(FC_HIDDEN))
    wout = u(keys[10], (FC_HIDDEN, NUM_CLASSES), k_out)
    bout = u(keys[11], (1, NUM_CLASSES), k_out)

    return (wih1, whh1, b1, wih2, whh2, b2, wfc, bfc, wout, bout)


def prepare_params(params):
    """One-time prep (outside the per-call path): cast MXU-facing weights to
    bf16.  Biases and the hoisted (one-shot, K=8) input projection stay fp32."""
    wih1, whh1, b1, wih2, whh2, b2, wfc, bfc, wout, bout = params
    bf = lambda w: w.astype(jnp.bfloat16)
    return (wih1, bf(whh1), b1, bf(wih2), bf(whh2), b2,
            bf(wfc), bfc, bf(wout), bout)


def reference_forward(x, params, match_kernel_precision=False):
    """Pure-JAX reference of the PyTorch forward (inference).  With
    match_kernel_precision=True the recurrent/head weights and the hidden
    states at the matmul inputs get the same bf16 rounding as the kernel
    (fp32 accumulation everywhere), so the comparison can be tight."""
    wih1, whh1, b1, wih2, whh2, b2, wfc, bfc, wout, bout = params
    H = HIDDEN
    if match_kernel_precision:
        rnd = lambda a: a.astype(jnp.bfloat16).astype(jnp.float32)
        whh1, wih2, whh2, wfc, wout = (rnd(w) for w in (whh1, wih2, whh2, wfc, wout))
    else:
        rnd = lambda a: a

    B, T, _ = x.shape
    h1 = c1 = h2 = c2 = jnp.zeros((B, H), jnp.float32)

    def gate_split(g):
        i = jax.nn.sigmoid(g[:, 0 * H:1 * H])
        f = jax.nn.sigmoid(g[:, 1 * H:2 * H])
        gg = jnp.tanh(g[:, 2 * H:3 * H])
        o = jax.nn.sigmoid(g[:, 3 * H:4 * H])
        return i, f, gg, o

    for t in range(T):
        g1 = x[:, t, :] @ wih1 + rnd(h1) @ whh1 + b1
        i1, f1, gg1, o1 = gate_split(g1)
        c1 = f1 * c1 + i1 * gg1
        h1 = o1 * jnp.tanh(c1)

        g2 = rnd(h1) @ wih2 + rnd(h2) @ whh2 + b2
        i2, f2, gg2, o2 = gate_split(g2)
        c2 = f2 * c2 + i2 * gg2
        h2 = o2 * jnp.tanh(c2)

    z = jnp.maximum(rnd(h2) @ wfc + bfc, 0.0)
    logits = rnd(z) @ wout + bout
    probs = jax.nn.softmax(logits, axis=1)
    return logits, probs


if __name__ == "__main__":
    key = jax.random.PRNGKey(0)
    kx, kp = jax.random.split(key)

    B, T = 2, 8                                   # batch=2, seq=8, features=NUM_CLASSES=8
    x = jax.random.normal(kx, (B, T, NUM_CLASSES), jnp.float32)
    params = init_params(kp)
    kparams = prepare_params(params)

    logits, probs = emotion_lstm_forward(x, kparams)
    jax.block_until_ready((logits, probs))

    # Tight check against the precision-matched reference (same bf16 rounding).
    ref_logits, ref_probs = reference_forward(x, params, match_kernel_precision=True)
    assert jnp.allclose(logits, ref_logits, rtol=2e-3, atol=2e-3), "logits mismatch"
    assert jnp.allclose(probs, ref_probs, rtol=2e-3, atol=2e-3), "probs mismatch"

    # Loose sanity check against the full-fp32 reference (bf16 weight rounding only).
    f32_logits, f32_probs = reference_forward(x, params)
    assert jnp.allclose(logits, f32_logits, rtol=5e-2, atol=5e-2), "fp32 drift too large"
    assert jnp.allclose(probs, f32_probs, rtol=5e-2, atol=5e-2), "fp32 prob drift too large"

    # Exact-divide softmax must normalize tightly.
    assert jnp.allclose(jnp.sum(probs, axis=1), 1.0, atol=1e-5), "softmax not normalized"

    print("KERNEL_OK")
</pallas_src>

<mosaic_0001>
module attributes {stable_mosaic.version = 11 : i64} {
  func.func @emotion_lstm_kernel(%arg0: memref<64x8xf32, #tpu.memory_space<vmem>>, %arg1: memref<8x512xf32, #tpu.memory_space<vmem>>, %arg2: memref<128x512xbf16, #tpu.memory_space<vmem>>, %arg3: memref<1x512xf32, #tpu.memory_space<vmem>>, %arg4: memref<128x512xbf16, #tpu.memory_space<vmem>>, %arg5: memref<128x512xbf16, #tpu.memory_space<vmem>>, %arg6: memref<1x512xf32, #tpu.memory_space<vmem>>, %arg7: memref<128x64xbf16, #tpu.memory_space<vmem>>, %arg8: memref<1x64xf32, #tpu.memory_space<vmem>>, %arg9: memref<64x8xbf16, #tpu.memory_space<vmem>>, %arg10: memref<1x8xf32, #tpu.memory_space<vmem>>, %arg11: memref<8x8xf32, #tpu.memory_space<vmem>>, %arg12: memref<8x8xf32, #tpu.memory_space<vmem>>) attributes {dimension_semantics = [], scalar_prefetch = 0 : i64, scratch_operands = 0 : i64, tpu.core_type = #tpu.core_type<tc>} {
    %c0 = arith.constant 0 : index
    %c0_0 = arith.constant 0 : index
    %0 = vector.load %arg2[%c0, %c0_0] : memref<128x512xbf16, #tpu.memory_space<vmem>>, vector<128x512xbf16>
    %c0_1 = arith.constant 0 : index
    %c0_2 = arith.constant 0 : index
    %1 = vector.load %arg4[%c0_1, %c0_2] : memref<128x512xbf16, #tpu.memory_space<vmem>>, vector<128x512xbf16>
    %c0_3 = arith.constant 0 : index
    %c0_4 = arith.constant 0 : index
    %2 = vector.load %arg5[%c0_3, %c0_4] : memref<128x512xbf16, #tpu.memory_space<vmem>>, vector<128x512xbf16>
    %c0_5 = arith.constant 0 : index
    %c0_6 = arith.constant 0 : index
    %3 = vector.load %arg6[%c0_5, %c0_6] : memref<1x512xf32, #tpu.memory_space<vmem>>, vector<1x512xf32>
    %4 = vector.shape_cast %3 : vector<1x512xf32> to vector<1x512xf32>
    %5 = vector.broadcast %4 : vector<1x512xf32> to vector<8x512xf32>
    %c0_7 = arith.constant 0 : index
    %c0_8 = arith.constant 0 : index
    %6 = vector.load %arg0[%c0_7, %c0_8] : memref<64x8xf32, #tpu.memory_space<vmem>>, vector<64x8xf32>
    %c0_9 = arith.constant 0 : index
    %c0_10 = arith.constant 0 : index
    %7 = vector.load %arg1[%c0_9, %c0_10] : memref<8x512xf32, #tpu.memory_space<vmem>>, vector<8x512xf32>
    %cst = arith.constant dense<0.000000e+00> : vector<64x512xf32>
    %8 = tpu.matmul %6, %7, %cst {dimension_numbers = #tpu.dot_dimension_numbers<[1], [0], [0], [1], [0, 0, 1, 1], [], []>} : vector<64x8xf32>, vector<8x512xf32>, vector<64x512xf32> -> vector<64x512xf32>
    %c0_11 = arith.constant 0 : index
    %c0_12 = arith.constant 0 : index
    %9 = vector.load %arg3[%c0_11, %c0_12] : memref<1x512xf32, #tpu.memory_space<vmem>>, vector<1x512xf32>
    %10 = vector.broadcast %9 : vector<1x512xf32> to vector<64x512xf32>
    %11 = arith.addf %8, %10 : vector<64x512xf32>
    %cst_13 = arith.constant 0.000000e+00 : f32
    %12 = vector.broadcast %cst_13 : f32 to vector<8x128xf32>
    %13 = arith.truncf %12 : vector<8x128xf32> to vector<8x128xbf16>
    %14 = vector.extract_strided_slice %11 {offsets = [0, 0], sizes = [8, 512], strides = [1, 1]} : vector<64x512xf32> to vector<8x512xf32>
    %cst_14 = arith.constant dense<0.000000e+00> : vector<8x512xf32>
    %15 = tpu.matmul %13, %0, %cst_14 {dimension_numbers = #tpu.dot_dimension_numbers<[1], [0], [0], [1], [0, 0, 1, 1], [], []>} : vector<8x128xbf16>, vector<128x512xbf16>, vector<8x512xf32> -> vector<8x512xf32>
    %16 = arith.addf %14, %15 : vector<8x512xf32>
    %17 = vector.extract_strided_slice %16 {offsets = [0, 0], sizes = [8, 128], strides = [1, 1]} : vector<8x512xf32> to vector<8x128xf32>
    %cst_15 = arith.constant 5.000000e-01 : f32
    %18 = vector.broadcast %cst_15 : f32 to vector<8x128xf32>
    %19 = arith.mulf %18, %17 : vector<8x128xf32>
    %20 = math.tanh %19 : vector<8x128xf32>
    %cst_16 = arith.constant 5.000000e-01 : f32
    %21 = vector.broadcast %cst_16 : f32 to vector<8x128xf32>
    %22 = arith.mulf %21, %20 : vector<8x128xf32>
    %cst_17 = arith.constant 5.000000e-01 : f32
    %23 = vector.broadcast %cst_17 : f32 to vector<8x128xf32>
    %24 = arith.addf %22, %23 : vector<8x128xf32>
    %25 = vector.extract_strided_slice %16 {offsets = [0, 128], sizes = [8, 128], strides = [1, 1]} : vector<8x512xf32> to vector<8x128xf32>
    %cst_18 = arith.constant 5.000000e-01 : f32
    %26 = vector.broadcast %cst_18 : f32 to vector<8x128xf32>
    %27 = arith.mulf %26, %25 : vector<8x128xf32>
    %28 = math.tanh %27 : vector<8x128xf32>
    %cst_19 = arith.constant 5.000000e-01 : f32
    %29 = vector.broadcast %cst_19 : f32 to vector<8x128xf32>
    %30 = arith.mulf %29, %28 : vector<8x128xf32>
    %cst_20 = arith.constant 5.000000e-01 : f32
    %31 = vector.broadcast %cst_20 : f32 to vector<8x128xf32>
    %32 = arith.addf %30, %31 : vector<8x128xf32>
    %33 = vector.extract_strided_slice %16 {offsets = [0, 256], sizes = [8, 128], strides = [1, 1]} : vector<8x512xf32> to vector<8x128xf32>
    %34 = math.tanh %33 : vector<8x128xf32>
    %35 = vector.extract_strided_slice %16 {offsets = [0, 384], sizes = [8, 128], strides = [1, 1]} : vector<8x512xf32> to vector<8x128xf32>
    %cst_21 = arith.constant 5.000000e-01 : f32
    %36 = vector.broadcast %cst_21 : f32 to vector<8x128xf32>
    %37 = arith.mulf %36, %35 : vector<8x128xf32>
    %38 = math.tanh %37 : vector<8x128xf32>
    %cst_22 = arith.constant 5.000000e-01 : f32
    %39 = vector.broadcast %cst_22 : f32 to vector<8x128xf32>
    %40 = arith.mulf %39, %38 : vector<8x128xf32>
    %cst_23 = arith.constant 5.000000e-01 : f32
    %41 = vector.broadcast %cst_23 : f32 to vector<8x128xf32>
    %42 = arith.addf %40, %41 : vector<8x128xf32>
    %43 = arith.mulf %32, %12 : vector<8x128xf32>
    %44 = arith.mulf %24, %34 : vector<8x128xf32>
    %45 = arith.addf %43, %44 : vector<8x128xf32>
    %46 = math.tanh %45 : vector<8x128xf32>
    %47 = arith.mulf %42, %46 : vector<8x128xf32>
    %48 = arith.truncf %47 : vector<8x128xf32> to vector<8x128xbf16>
    %cst_24 = arith.constant dense<0.000000e+00> : vector<8x512xf32>
    %49 = tpu.matmul %48, %1, %cst_24 {dimension_numbers = #tpu.dot_dimension_numbers<[1], [0], [0], [1], [0, 0, 1, 1], [], []>} : vector<8x128xbf16>, vector<128x512xbf16>, vector<8x512xf32> -> vector<8x512xf32>
    %cst_25 = arith.constant dense<0.000000e+00> : vector<8x512xf32>
    %50 = tpu.matmul %13, %2, %cst_25 {dimension_numbers = #tpu.dot_dimension_numbers<[1], [0], [0], [1], [0, 0, 1, 1], [], []>} : vector<8x128xbf16>, vector<128x512xbf16>, vector<8x512xf32> -> vector<8x512xf32>
    %51 = arith.addf %49, %50 : vector<8x512xf32>
    %52 = arith.addf %51, %5 : vector<8x512xf32>
    %53 = vector.extract_strided_slice %52 {offsets = [0, 0], sizes = [8, 128], strides = [1, 1]} : vector<8x512xf32> to vector<8x128xf32>
    %cst_26 = arith.constant 5.000000e-01 : f32
    %54 = vector.broadcast %cst_26 : f32 to vector<8x128xf32>
    %55 = arith.mulf %54, %53 : vector<8x128xf32>
    %56 = math.tanh %55 : vector<8x128xf32>
    %cst_27 = arith.constant 5.000000e-01 : f32
    %57 = vector.broadcast %cst_27 : f32 to vector<8x128xf32>
    %58 = arith.mulf %57, %56 : vector<8x128xf32>
    %cst_28 = arith.constant 5.000000e-01 : f32
    %59 = vector.broadcast %cst_28 : f32 to vector<8x128xf32>
    %60 = arith.addf %58, %59 : vector<8x128xf32>
    %61 = vector.extract_strided_slice %52 {offsets = [0, 128], sizes = [8, 128], strides = [1, 1]} : vector<8x512xf32> to vector<8x128xf32>
    %cst_29 = arith.constant 5.000000e-01 : f32
    %62 = vector.broadcast %cst_29 : f32 to vector<8x128xf32>
    %63 = arith.mulf %62, %61 : vector<8x128xf32>
    %64 = math.tanh %63 : vector<8x128xf32>
    %cst_30 = arith.constant 5.000000e-01 : f32
    %65 = vector.broadcast %cst_30 : f32 to vector<8x128xf32>
    %66 = arith.mulf %65, %64 : vector<8x128xf32>
    %cst_31 = arith.constant 5.000000e-01 : f32
    %67 = vector.broadcast %cst_31 : f32 to vector<8x128xf32>
    %68 = arith.addf %66, %67 : vector<8x128xf32>
    %69 = vector.extract_strided_slice %52 {offsets = [0, 256], sizes = [8, 128], strides = [1, 1]} : vector<8x512xf32> to vector<8x128xf32>
    %70 = math.tanh %69 : vector<8x128xf32>
    %71 = vector.extract_strided_slice %52 {offsets = [0, 384], sizes = [8, 128], strides = [1, 1]} : vector<8x512xf32> to vector<8x128xf32>
    %cst_32 = arith.constant 5.000000e-01 : f32
    %72 = vector.broadcast %cst_32 : f32 to vector<8x128xf32>
    %73 = arith.mulf %72, %71 : vector<8x128xf32>
    %74 = math.tanh %73 : vector<8x128xf32>
    %cst_33 = arith.constant 5.000000e-01 : f32
    %75 = vector.broadcast %cst_33 : f32 to vector<8x128xf32>
    %76 = arith.mulf %75, %74 : vector<8x128xf32>
    %cst_34 = arith.constant 5.000000e-01 : f32
    %77 = vector.broadcast %cst_34 : f32 to vector<8x128xf32>
    %78 = arith.addf %76, %77 : vector<8x128xf32>
    %79 = arith.mulf %68, %12 : vector<8x128xf32>
    %80 = arith.mulf %60, %70 : vector<8x128xf32>
    %81 = arith.addf %79, %80 : vector<8x128xf32>
    %82 = math.tanh %81 : vector<8x128xf32>
    %83 = arith.mulf %78, %82 : vector<8x128xf32>
    %84 = arith.truncf %83 : vector<8x128xf32> to vector<8x128xbf16>
    %85 = vector.extract_strided_slice %11 {offsets = [8, 0], sizes = [8, 512], strides = [1, 1]} : vector<64x512xf32> to vector<8x512xf32>
    %cst_35 = arith.constant dense<0.000000e+00> : vector<8x512xf32>
    %86 = tpu.matmul %48, %0, %cst_35 {dimension_numbers = #tpu.dot_dimension_numbers<[1], [0], [0], [1], [0, 0, 1, 1], [], []>} : vector<8x128xbf16>, vector<128x512xbf16>, vector<8x512xf32> -> vector<8x512xf32>
    %87 = arith.addf %85, %86 : vector<8x512xf32>
    %88 = vector.extract_strided_slice %87 {offsets = [0, 0], sizes = [8, 128], strides = [1, 1]} : vector<8x512xf32> to vector<8x128xf32>
    %cst_36 = arith.constant 5.000000e-01 : f32
    %89 = vector.broadcast %cst_36 : f32 to vector<8x128xf32>
    %90 = arith.mulf %89, %88 : vector<8x128xf32>
    %91 = math.tanh %90 : vector<8x128xf32>
    %cst_37 = arith.constant 5.000000e-01 : f32
    %92 = vector.broadcast %cst_37 : f32 to vector<8x128xf32>
    %93 = arith.mulf %92, %91 : vector<8x128xf32>
    %cst_38 = arith.constant 5.000000e-01 : f32
    %94 = vector.broadcast %cst_38 : f32 to vector<8x128xf32>
    %95 = arith.addf %93, %94 : vector<8x128xf32>
    %96 = vector.extract_strided_slice %87 {offsets = [0, 128], sizes = [8, 128], strides = [1, 1]} : vector<8x512xf32> to vector<8x128xf32>
    %cst_39 = arith.constant 5.000000e-01 : f32
    %97 = vector.broadcast %cst_39 : f32 to vector<8x128xf32>
    %98 = arith.mulf %97, %96 : vector<8x128xf32>
    %99 = math.tanh %98 : vector<8x128xf32>
    %cst_40 = arith.constant 5.000000e-01 : f32
    %100 = vector.broadcast %cst_40 : f32 to vector<8x128xf32>
    %101 = arith.mulf %100, %99 : vector<8x128xf32>
    %cst_41 = arith.constant 5.000000e-01 : f32
    %102 = vector.broadcast %cst_41 : f32 to vector<8x128xf32>
    %103 = arith.addf %101, %102 : vector<8x128xf32>
    %104 = vector.extract_strided_slice %87 {offsets = [0, 256], sizes = [8, 128], strides = [1, 1]} : vector<8x512xf32> to vector<8x128xf32>
    %105 = math.tanh %104 : vector<8x128xf32>
    %106 = vector.extract_strided_slice %87 {offsets = [0, 384], sizes = [8, 128], strides = [1, 1]} : vector<8x512xf32> to vector<8x128xf32>
    %cst_42 = arith.constant 5.000000e-01 : f32
    %107 = vector.broadcast %cst_42 : f32 to vector<8x128xf32>
    %108 = arith.mulf %107, %106 : vector<8x128xf32>
    %109 = math.tanh %108 : vector<8x128xf32>
    %cst_43 = arith.constant 5.000000e-01 : f32
    %110 = vector.broadcast %cst_43 : f32 to vector<8x128xf32>
    %111 = arith.mulf %110, %109 : vector<8x128xf32>
    %cst_44 = arith.constant 5.000000e-01 : f32
    %112 = vector.broadcast %cst_44 : f32 to vector<8x128xf32>
    %113 = arith.addf %111, %112 : vector<8x128xf32>
    %114 = arith.mulf %103, %45 : vector<8x128xf32>
    %115 = arith.mulf %95, %105 : vector<8x128xf32>
    %116 = arith.addf %114, %115 : vector<8x128xf32>
    %117 = math.tanh %116 : vector<8x128xf32>
    %118 = arith.mulf %113, %117 : vector<8x128xf32>
    %119 = arith.truncf %118 : vector<8x128xf32> to vector<8x128xbf16>
    %cst_45 = arith.constant dense<0.000000e+00> : vector<8x512xf32>
    %120 = tpu.matmul %119, %1, %cst_45 {dimension_numbers = #tpu.dot_dimension_numbers<[1], [0], [0], [1], [0, 0, 1, 1], [], []>} : vector<8x128xbf16>, vector<128x512xbf16>, vector<8x512xf32> -> vector<8x512xf32>
    %cst_46 = arith.constant dense<0.000000e+00> : vector<8x512xf32>
    %121 = tpu.matmul %84, %2, %cst_46 {dimension_numbers = #tpu.dot_dimension_numbers<[1], [0], [0], [1], [0, 0, 1, 1], [], []>} : vector<8x128xbf16>, vector<128x512xbf16>, vector<8x512xf32> -> vector<8x512xf32>
    %122 = arith.addf %120, %121 : vector<8x512xf32>
    %123 = arith.addf %122, %5 : vector<8x512xf32>
    %124 = vector.extract_strided_slice %123 {offsets = [0, 0], sizes = [8, 128], strides = [1, 1]} : vector<8x512xf32> to vector<8x128xf32>
    %cst_47 = arith.constant 5.000000e-01 : f32
    %125 = vector.broadcast %cst_47 : f32 to vector<8x128xf32>
    %126 = arith.mulf %125, %124 : vector<8x128xf32>
    %127 = math.tanh %126 : vector<8x128xf32>
    %cst_48 = arith.constant 5.000000e-01 : f32
    %128 = vector.broadcast %cst_48 : f32 to vector<8x128xf32>
    %129 = arith.mulf %128, %127 : vector<8x128xf32>
    %cst_49 = arith.constant 5.000000e-01 : f32
    %130 = vector.broadcast %cst_49 : f32 to vector<8x128xf32>
    %131 = arith.addf %129, %130 : vector<8x128xf32>
    %132 = vector.extract_strided_slice %123 {offsets = [0, 128], sizes = [8, 128], strides = [1, 1]} : vector<8x512xf32> to vector<8x128xf32>
    %cst_50 = arith.constant 5.000000e-01 : f32
    %133 = vector.broadcast %cst_50 : f32 to vector<8x128xf32>
    %134 = arith.mulf %133, %132 : vector<8x128xf32>
    %135 = math.tanh %134 : vector<8x128xf32>
    %cst_51 = arith.constant 5.000000e-01 : f32
    %136 = vector.broadcast %cst_51 : f32 to vector<8x128xf32>
    %137 = arith.mulf %136, %135 : vector<8x128xf32>
    %cst_52 = arith.constant 5.000000e-01 : f32
    %138 = vector.broadcast %cst_52 : f32 to vector<8x128xf32>
    %139 = arith.addf %137, %138 : vector<8x128xf32>
    %140 = vector.extract_strided_slice %123 {offsets = [0, 256], sizes = [8, 128], strides = [1, 1]} : vector<8x512xf32> to vector<8x128xf32>
    %141 = math.tanh %140 : vector<8x128xf32>
    %142 = vector.extract_strided_slice %123 {offsets = [0, 384], sizes = [8, 128], strides = [1, 1]} : vector<8x512xf32> to vector<8x128xf32>
    %cst_53 = arith.constant 5.000000e-01 : f32
    %143 = vector.broadcast %cst_53 : f32 to vector<8x128xf32>
    %144 = arith.mulf %143, %142 : vector<8x128xf32>
    %145 = math.tanh %144 : vector<8x128xf32>
    %cst_54 = arith.constant 5.000000e-01 : f32
    %146 = vector.broadcast %cst_54 : f32 to vector<8x128xf32>
    %147 = arith.mulf %146, %145 : vector<8x128xf32>
    %cst_55 = arith.constant 5.000000e-01 : f32
    %148 = vector.broadcast %cst_55 : f32 to vector<8x128xf32>
    %149 = arith.addf %147, %148 : vector<8x128xf32>
    %150 = arith.mulf %139, %81 : vector<8x128xf32>
    %151 = arith.mulf %131, %141 : vector<8x128xf32>
    %152 = arith.addf %150, %151 : vector<8x128xf32>
    %153 = math.tanh %152 : vector<8x128xf32>
    %154 = arith.mulf %149, %153 : vector<8x128xf32>
    %155 = arith.truncf %154 : vector<8x128xf32> to vector<8x128xbf16>
    %156 = vector.extract_strided_slice %11 {offsets = [16, 0], sizes = [8, 512], strides = [1, 1]} : vector<64x512xf32> to vector<8x512xf32>
    %cst_56 = arith.constant dense<0.000000e+00> : vector<8x512xf32>
    %157 = tpu.matmul %119, %0, %cst_56 {dimension_numbers = #tpu.dot_dimension_numbers<[1], [0], [0], [1], [0, 0, 1, 1], [], []>} : vector<8x128xbf16>, vector<128x512xbf16>, vector<8x512xf32> -> vector<8x512xf32>
    %158 = arith.addf %156, %157 : vector<8x512xf32>
    %159 = vector.extract_strided_slice %158 {offsets = [0, 0], sizes = [8, 128], strides = [1, 1]} : vector<8x512xf32> to vector<8x128xf32>
    %cst_57 = arith.constant 5.000000e-01 : f32
    %160 = vector.broadcast %cst_57 : f32 to vector<8x128xf32>
    %161 = arith.mulf %160, %159 : vector<8x128xf32>
    %162 = math.tanh %161 : vector<8x128xf32>
    %cst_58 = arith.constant 5.000000e-01 : f32
    %163 = vector.broadcast %cst_58 : f32 to vector<8x128xf32>
    %164 = arith.mulf %163, %162 : vector<8x128xf32>
    %cst_59 = arith.constant 5.000000e-01 : f32
    %165 = vector.broadcast %cst_59 : f32 to vector<8x128xf32>
    %166 = arith.addf %164, %165 : vector<8x128xf32>
    %167 = vector.extract_strided_slice %158 {offsets = [0, 128], sizes = [8, 128], strides = [1, 1]} : vector<8x512xf32> to vector<8x128xf32>
    %cst_60 = arith.constant 5.000000e-01 : f32
    %168 = vector.broadcast %cst_60 : f32 to vector<8x128xf32>
    %169 = arith.mulf %168, %167 : vector<8x128xf32>
    %170 = math.tanh %169 : vector<8x128xf32>
    %cst_61 = arith.constant 5.000000e-01 : f32
    %171 = vector.broadcast %cst_61 : f32 to vector<8x128xf32>
    %172 = arith.mulf %171, %170 : vector<8x128xf32>
    %cst_62 = arith.constant 5.000000e-01 : f32
    %173 = vector.broadcast %cst_62 : f32 to vector<8x128xf32>
    %174 = arith.addf %172, %173 : vector<8x128xf32>
    %175 = vector.extract_strided_slice %158 {offsets = [0, 256], sizes = [8, 128], strides = [1, 1]} : vector<8x512xf32> to vector<8x128xf32>
    %176 = math.tanh %175 : vector<8x128xf32>
    %177 = vector.extract_strided_slice %158 {offsets = [0, 384], sizes = [8, 128], strides = [1, 1]} : vector<8x512xf32> to vector<8x128xf32>
    %cst_63 = arith.constant 5.000000e-01 : f32
    %178 = vector.broadcast %cst_63 : f32 to vector<8x128xf32>
    %179 = arith.mulf %178, %177 : vector<8x128xf32>
    %180 = math.tanh %179 : vector<8x128xf32>
    %cst_64 = arith.constant 5.000000e-01 : f32
    %181 = vector.broadcast %cst_64 : f32 to vector<8x128xf32>
    %182 = arith.mulf %181, %180 : vector<8x128xf32>
    %cst_65 = arith.constant 5.000000e-01 : f32
    %183 = vector.broadcast %cst_65 : f32 to vector<8x128xf32>
    %184 = arith.addf %182, %183 : vector<8x128xf32>
    %185 = arith.mulf %174, %116 : vector<8x128xf32>
    %186 = arith.mulf %166, %176 : vector<8x128xf32>
    %187 = arith.addf %185, %186 : vector<8x128xf32>
    %188 = math.tanh %187 : vector<8x128xf32>
    %189 = arith.mulf %184, %188 : vector<8x128xf32>
    %190 = arith.truncf %189 : vector<8x128xf32> to vector<8x128xbf16>
    %cst_66 = arith.constant dense<0.000000e+00> : vector<8x512xf32>
    %191 = tpu.matmul %190, %1, %cst_66 {dimension_numbers = #tpu.dot_dimension_numbers<[1], [0], [0], [1], [0, 0, 1, 1], [], []>} : vector<8x128xbf16>, vector<128x512xbf16>, vector<8x512xf32> -> vector<8x512xf32>
    %cst_67 = arith.constant dense<0.000000e+00> : vector<8x512xf32>
    %192 = tpu.matmul %155, %2, %cst_67 {dimension_numbers = #tpu.dot_dimension_numbers<[1], [0], [0], [1], [0, 0, 1, 1], [], []>} : vector<8x128xbf16>, vector<128x512xbf16>, vector<8x512xf32> -> vector<8x512xf32>
    %193 = arith.addf %191, %192 : vector<8x512xf32>
    %194 = arith.addf %193, %5 : vector<8x512xf32>
    %195 = vector.extract_strided_slice %194 {offsets = [0, 0], sizes = [8, 128], strides = [1, 1]} : vector<8x512xf32> to vector<8x128xf32>
    %cst_68 = arith.constant 5.000000e-01 : f32
    %196 = vector.broadcast %cst_68 : f32 to vector<8x128xf32>
    %197 = arith.mulf %196, %195 : vector<8x128xf32>
    %198 = math.tanh %197 : vector<8x128xf32>
    %cst_69 = arith.constant 5.000000e-01 : f32
    %199 = vector.broadcast %cst_69 : f32 to vector<8x128xf32>
    %200 = arith.mulf %199, %198 : vector<8x128xf32>
    %cst_70 = arith.constant 5.000000e-01 : f32
    %201 = vector.broadcast %cst_70 : f32 to vector<8x128xf32>
    %202 = arith.addf %200, %201 : vector<8x128xf32>
    %203 = vector.extract_strided_slice %194 {offsets = [0, 128], sizes = [8, 128], strides = [1, 1]} : vector<8x512xf32> to vector<8x128xf32>
    %cst_71 = arith.constant 5.000000e-01 : f32
    %204 = vector.broadcast %cst_71 : f32 to vector<8x128xf32>
    %205 = arith.mulf %204, %203 : vector<8x128xf32>
    %206 = math.tanh %205 : vector<8x128xf32>
    %cst_72 = arith.constant 5.000000e-01 : f32
    %207 = vector.broadcast %cst_72 : f32 to vector<8x128xf32>
    %208 = arith.mulf %207, %206 : vector<8x128xf32>
    %cst_73 = arith.constant 5.000000e-01 : f32
    %209 = vector.broadcast %cst_73 : f32 to vector<8x128xf32>
    %210 = arith.addf %208, %209 : vector<8x128xf32>
    %211 = vector.extract_strided_slice %194 {offsets = [0, 256], sizes = [8, 128], strides = [1, 1]} : vector<8x512xf32> to vector<8x128xf32>
    %212 = math.tanh %211 : vector<8x128xf32>
    %213 = vector.extract_strided_slice %194 {offsets = [0, 384], sizes = [8, 128], strides = [1, 1]} : vector<8x512xf32> to vector<8x128xf32>
    %cst_74 = arith.constant 5.000000e-01 : f32
    %214 = vector.broadcast %cst_74 : f32 to vector<8x128xf32>
    %215 = arith.mulf %214, %213 : vector<8x128xf32>
    %216 = math.tanh %215 : vector<8x128xf32>
    %cst_75 = arith.constant 5.000000e-01 : f32
    %217 = vector.broadcast %cst_75 : f32 to vector<8x128xf32>
    %218 = arith.mulf %217, %216 : vector<8x128xf32>
    %cst_76 = arith.constant 5.000000e-01 : f32
    %219 = vector.broadcast %cst_76 : f32 to vector<8x128xf32>
    %220 = arith.addf %218, %219 : vector<8x128xf32>
    %221 = arith.mulf %210, %152 : vector<8x128xf32>
    %222 = arith.mulf %202, %212 : vector<8x128xf32>
    %223 = arith.addf %221, %222 : vector<8x128xf32>
    %224 = math.tanh %223 : vector<8x128xf32>
    %225 = arith.mulf %220, %224 : vector<8x128xf32>
    %226 = arith.truncf %225 : vector<8x128xf32> to vector<8x128xbf16>
    %227 = vector.extract_strided_slice %11 {offsets = [24, 0], sizes = [8, 512], strides = [1, 1]} : vector<64x512xf32> to vector<8x512xf32>
    %cst_77 = arith.constant dense<0.000000e+00> : vector<8x512xf32>
    %228 = tpu.matmul %190, %0, %cst_77 {dimension_numbers = #tpu.dot_dimension_numbers<[1], [0], [0], [1], [0, 0, 1, 1], [], []>} : vector<8x128xbf16>, vector<128x512xbf16>, vector<8x512xf32> -> vector<8x512xf32>
    %229 = arith.addf %227, %228 : vector<8x512xf32>
    %230 = vector.extract_strided_slice %229 {offsets = [0, 0], sizes = [8, 128], strides = [1, 1]} : vector<8x512xf32> to vector<8x128xf32>
    %cst_78 = arith.constant 5.000000e-01 : f32
    %231 = vector.broadcast %cst_78 : f32 to vector<8x128xf32>
    %232 = arith.mulf %231, %230 : vector<8x128xf32>
    %233 = math.tanh %232 : vector<8x128xf32>
    %cst_79 = arith.constant 5.000000e-01 : f32
    %234 = vector.broadcast %cst_79 : f32 to vector<8x128xf32>
    %235 = arith.mulf %234, %233 : vector<8x128xf32>
    %cst_80 = arith.constant 5.000000e-01 : f32
    %236 = vector.broadcast %cst_80 : f32 to vector<8x128xf32>
    %237 = arith.addf %235, %236 : vector<8x128xf32>
    %238 = vector.extract_strided_slice %229 {offsets = [0, 128], sizes = [8, 128], strides = [1, 1]} : vector<8x512xf32> to vector<8x128xf32>
    %cst_81 = arith.constant 5.000000e-01 : f32
    %239 = vector.broadcast %cst_81 : f32 to vector<8x128xf32>
    %240 = arith.mulf %239, %238 : vector<8x128xf32>
    %241 = math.tanh %240 : vector<8x128xf32>
    %cst_82 = arith.constant 5.000000e-01 : f32
    %242 = vector.broadcast %cst_82 : f32 to vector<8x128xf32>
    %243 = arith.mulf %242, %241 : vector<8x128xf32>
    %cst_83 = arith.constant 5.000000e-01 : f32
    %244 = vector.broadcast %cst_83 : f32 to vector<8x128xf32>
    %245 = arith.addf %243, %244 : vector<8x128xf32>
    %246 = vector.extract_strided_slice %229 {offsets = [0, 256], sizes = [8, 128], strides = [1, 1]} : vector<8x512xf32> to vector<8x128xf32>
    %247 = math.tanh %246 : vector<8x128xf32>
    %248 = vector.extract_strided_slice %229 {offsets = [0, 384], sizes = [8, 128], strides = [1, 1]} : vector<8x512xf32> to vector<8x128xf32>
    %cst_84 = arith.constant 5.000000e-01 : f32
    %249 = vector.broadcast %cst_84 : f32 to vector<8x128xf32>
    %250 = arith.mulf %249, %248 : vector<8x128xf32>
    %251 = math.tanh %250 : vector<8x128xf32>
    %cst_85 = arith.constant 5.000000e-01 : f32
    %252 = vector.broadcast %cst_85 : f32 to vector<8x128xf32>
    %253 = arith.mulf %252, %251 : vector<8x128xf32>
    %cst_86 = arith.constant 5.000000e-01 : f32
    %254 = vector.broadcast %cst_86 : f32 to vector<8x128xf32>
    %255 = arith.addf %253, %254 : vector<8x128xf32>
    %256 = arith.mulf %245, %187 : vector<8x128xf32>
    %257 = arith.mulf %237, %247 : vector<8x128xf32>
    %258 = arith.addf %256, %257 : vector<8x128xf32>
    %259 = math.tanh %258 : vector<8x128xf32>
    %260 = arith.mulf %255, %259 : vector<8x128xf32>
    %261 = arith.truncf %260 : vector<8x128xf32> to vector<8x128xbf16>
    %cst_87 = arith.constant dense<0.000000e+00> : vector<8x512xf32>
    %262 = tpu.matmul %261, %1, %cst_87 {dimension_numbers = #tpu.dot_dimension_numbers<[1], [0], [0], [1], [0, 0, 1, 1], [], []>} : vector<8x128xbf16>, vector<128x512xbf16>, vector<8x512xf32> -> vector<8x512xf32>
    %cst_88 = arith.constant dense<0.000000e+00> : vector<8x512xf32>
    %263 = tpu.matmul %226, %2, %cst_88 {dimension_numbers = #tpu.dot_dimension_numbers<[1], [0], [0], [1], [0, 0, 1, 1], [], []>} : vector<8x128xbf16>, vector<128x512xbf16>, vector<8x512xf32> -> vector<8x512xf32>
    %264 = arith.addf %262, %263 : vector<8x512xf32>
    %265 = arith.addf %264, %5 : vector<8x512xf32>
    %266 = vector.extract_strided_slice %265 {offsets = [0, 0], sizes = [8, 128], strides = [1, 1]} : vector<8x512xf32> to vector<8x128xf32>
    %cst_89 = arith.constant 5.000000e-01 : f32
    %267 = vector.broadcast %cst_89 : f32 to vector<8x128xf32>
    %268 = arith.mulf %267, %266 : vector<8x128xf32>
    %269 = math.tanh %268 : vector<8x128xf32>
    %cst_90 = arith.constant 5.000000e-01 : f32
    %270 = vector.broadcast %cst_90 : f32 to vector<8x128xf32>
    %271 = arith.mulf %270, %269 : vector<8x128xf32>
    %cst_91 = arith.constant 5.000000e-01 : f32
    %272 = vector.broadcast %cst_91 : f32 to vector<8x128xf32>
    %273 = arith.addf %271, %272 : vector<8x128xf32>
    %274 = vector.extract_strided_slice %265 {offsets = [0, 128], sizes = [8, 128], strides = [1, 1]} : vector<8x512xf32> to vector<8x128xf32>
    %cst_92 = arith.constant 5.000000e-01 : f32
    %275 = vector.broadcast %cst_92 : f32 to vector<8x128xf32>
    %276 = arith.mulf %275, %274 : vector<8x128xf32>
    %277 = math.tanh %276 : vector<8x128xf32>
    %cst_93 = arith.constant 5.000000e-01 : f32
    %278 = vector.broadcast %cst_93 : f32 to vector<8x128xf32>
    %279 = arith.mulf %278, %277 : vector<8x128xf32>
    %cst_94 = arith.constant 5.000000e-01 : f32
    %280 = vector.broadcast %cst_94 : f32 to vector<8x128xf32>
    %281 = arith.addf %279, %280 : vector<8x128xf32>
    %282 = vector.extract_strided_slice %265 {offsets = [0, 256], sizes = [8, 128], strides = [1, 1]} : vector<8x512xf32> to vector<8x128xf32>
    %283 = math.tanh %282 : vector<8x128xf32>
    %284 = vector.extract_strided_slice %265 {offsets = [0, 384], sizes = [8, 128], strides = [1, 1]} : vector<8x512xf32> to vector<8x128xf32>
    %cst_95 = arith.constant 5.000000e-01 : f32
    %285 = vector.broadcast %cst_95 : f32 to vector<8x128xf32>
    %286 = arith.mulf %285, %284 : vector<8x128xf32>
    %287 = math.tanh %286 : vector<8x128xf32>
    %cst_96 = arith.constant 5.000000e-01 : f32
    %288 = vector.broadcast %cst_96 : f32 to vector<8x128xf32>
    %289 = arith.mulf %288, %287 : vector<8x128xf32>
    %cst_97 = arith.constant 5.000000e-01 : f32
    %290 = vector.broadcast %cst_97 : f32 to vector<8x128xf32>
    %291 = arith.addf %289, %290 : vector<8x128xf32>
    %292 = arith.mulf %281, %223 : vector<8x128xf32>
    %293 = arith.mulf %273, %283 : vector<8x128xf32>
    %294 = arith.addf %292, %293 : vector<8x128xf32>
    %295 = math.tanh %294 : vector<8x128xf32>
    %296 = arith.mulf %291, %295 : vector<8x128xf32>
    %297 = arith.truncf %296 : vector<8x128xf32> to vector<8x128xbf16>
    %298 = vector.extract_strided_slice %11 {offsets = [32, 0], sizes = [8, 512], strides = [1, 1]} : vector<64x512xf32> to vector<8x512xf32>
    %cst_98 = arith.constant dense<0.000000e+00> : vector<8x512xf32>
    %299 = tpu.matmul %261, %0, %cst_98 {dimension_numbers = #tpu.dot_dimension_numbers<[1], [0], [0], [1], [0, 0, 1, 1], [], []>} : vector<8x128xbf16>, vector<128x512xbf16>, vector<8x512xf32> -> vector<8x512xf32>
    %300 = arith.addf %298, %299 : vector<8x512xf32>
    %301 = vector.extract_strided_slice %300 {offsets = [0, 0], sizes = [8, 128], strides = [1, 1]} : vector<8x512xf32> to vector<8x128xf32>
    %cst_99 = arith.constant 5.000000e-01 : f32
    %302 = vector.broadcast %cst_99 : f32 to vector<8x128xf32>
    %303 = arith.mulf %302, %301 : vector<8x128xf32>
    %304 = math.tanh %303 : vector<8x128xf32>
    %cst_100 = arith.constant 5.000000e-01 : f32
    %305 = vector.broadcast %cst_100 : f32 to vector<8x128xf32>
    %306 = arith.mulf %305, %304 : vector<8x128xf32>
    %cst_101 = arith.constant 5.000000e-01 : f32
    %307 = vector.broadcast %cst_101 : f32 to vector<8x128xf32>
    %308 = arith.addf %306, %307 : vector<8x128xf32>
    %309 = vector.extract_strided_slice %300 {offsets = [0, 128], sizes = [8, 128], strides = [1, 1]} : vector<8x512xf32> to vector<8x128xf32>
    %cst_102 = arith.constant 5.000000e-01 : f32
    %310 = vector.broadcast %cst_102 : f32 to vector<8x128xf32>
    %311 = arith.mulf %310, %309 : vector<8x128xf32>
    %312 = math.tanh %311 : vector<8x128xf32>
    %cst_103 = arith.constant 5.000000e-01 : f32
    %313 = vector.broadcast %cst_103 : f32 to vector<8x128xf32>
    %314 = arith.mulf %313, %312 : vector<8x128xf32>
    %cst_104 = arith.constant 5.000000e-01 : f32
    %315 = vector.broadcast %cst_104 : f32 to vector<8x128xf32>
    %316 = arith.addf %314, %315 : vector<8x128xf32>
    %317 = vector.extract_strided_slice %300 {offsets = [0, 256], sizes = [8, 128], strides = [1, 1]} : vector<8x512xf32> to vector<8x128xf32>
    %318 = math.tanh %317 : vector<8x128xf32>
    %319 = vector.extract_strided_slice %300 {offsets = [0, 384], sizes = [8, 128], strides = [1, 1]} : vector<8x512xf32> to vector<8x128xf32>
    %cst_105 = arith.constant 5.000000e-01 : f32
    %320 = vector.broadcast %cst_105 : f32 to vector<8x128xf32>
    %321 = arith.mulf %320, %319 : vector<8x128xf32>
    %322 = math.tanh %321 : vector<8x128xf32>
    %cst_106 = arith.constant 5.000000e-01 : f32
    %323 = vector.broadcast %cst_106 : f32 to vector<8x128xf32>
    %324 = arith.mulf %323, %322 : vector<8x128xf32>
    %cst_107 = arith.constant 5.000000e-01 : f32
    %325 = vector.broadcast %cst_107 : f32 to vector<8x128xf32>
    %326 = arith.addf %324, %325 : vector<8x128xf32>
    %327 = arith.mulf %316, %258 : vector<8x128xf32>
    %328 = arith.mulf %308, %318 : vector<8x128xf32>
    %329 = arith.addf %327, %328 : vector<8x128xf32>
    %330 = math.tanh %329 : vector<8x128xf32>
    %331 = arith.mulf %326, %330 : vector<8x128xf32>
    %332 = arith.truncf %331 : vector<8x128xf32> to vector<8x128xbf16>
    %cst_108 = arith.constant dense<0.000000e+00> : vector<8x512xf32>
    %333 = tpu.matmul %332, %1, %cst_108 {dimension_numbers = #tpu.dot_dimension_numbers<[1], [0], [0], [1], [0, 0, 1, 1], [], []>} : vector<8x128xbf16>, vector<128x512xbf16>, vector<8x512xf32> -> vector<8x512xf32>
    %cst_109 = arith.constant dense<0.000000e+00> : vector<8x512xf32>
    %334 = tpu.matmul %297, %2, %cst_109 {dimension_numbers = #tpu.dot_dimension_numbers<[1], [0], [0], [1], [0, 0, 1, 1], [], []>} : vector<8x128xbf16>, vector<128x512xbf16>, vector<8x512xf32> -> vector<8x512xf32>
    %335 = arith.addf %333, %334 : vector<8x512xf32>
    %336 = arith.addf %335, %5 : vector<8x512xf32>
    %337 = vector.extract_strided_slice %336 {offsets = [0, 0], sizes = [8, 128], strides = [1, 1]} : vector<8x512xf32> to vector<8x128xf32>
    %cst_110 = arith.constant 5.000000e-01 : f32
    %338 = vector.broadcast %cst_110 : f32 to vector<8x128xf32>
    %339 = arith.mulf %338, %337 : vector<8x128xf32>
    %340 = math.tanh %339 : vector<8x128xf32>
    %cst_111 = arith.constant 5.000000e-01 : f32
    %341 = vector.broadcast %cst_111 : f32 to vector<8x128xf32>
    %342 = arith.mulf %341, %340 : vector<8x128xf32>
    %cst_112 = arith.constant 5.000000e-01 : f32
    %343 = vector.broadcast %cst_112 : f32 to vector<8x128xf32>
    %344 = arith.addf %342, %343 : vector<8x128xf32>
    %345 = vector.extract_strided_slice %336 {offsets = [0, 128], sizes = [8, 128], strides = [1, 1]} : vector<8x512xf32> to vector<8x128xf32>
    %cst_113 = arith.constant 5.000000e-01 : f32
    %346 = vector.broadcast %cst_113 : f32 to vector<8x128xf32>
    %347 = arith.mulf %346, %345 : vector<8x128xf32>
    %348 = math.tanh %347 : vector<8x128xf32>
    %cst_114 = arith.constant 5.000000e-01 : f32
    %349 = vector.broadcast %cst_114 : f32 to vector<8x128xf32>
    %350 = arith.mulf %349, %348 : vector<8x128xf32>
    %cst_115 = arith.constant 5.000000e-01 : f32
    %351 = vector.broadcast %cst_115 : f32 to vector<8x128xf32>
    %352 = arith.addf %350, %351 : vector<8x128xf32>
    %353 = vector.extract_strided_slice %336 {offsets = [0, 256], sizes = [8, 128], strides = [1, 1]} : vector<8x512xf32> to vector<8x128xf32>
    %354 = math.tanh %353 : vector<8x128xf32>
    %355 = vector.extract_strided_slice %336 {offsets = [0, 384], sizes = [8, 128], strides = [1, 1]} : vector<8x512xf32> to vector<8x128xf32>
    %cst_116 = arith.constant 5.000000e-01 : f32
    %356 = vector.broadcast %cst_116 : f32 to vector<8x128xf32>
    %357 = arith.mulf %356, %355 : vector<8x128xf32>
    %358 = math.tanh %357 : vector<8x128xf32>
    %cst_117 = arith.constant 5.000000e-01 : f32
    %359 = vector.broadcast %cst_117 : f32 to vector<8x128xf32>
    %360 = arith.mulf %359, %358 : vector<8x128xf32>
    %cst_118 = arith.constant 5.000000e-01 : f32
    %361 = vector.broadcast %cst_118 : f32 to vector<8x128xf32>
    %362 = arith.addf %360, %361 : vector<8x128xf32>
    %363 = arith.mulf %352, %294 : vector<8x128xf32>
    %364 = arith.mulf %344, %354 : vector<8x128xf32>
    %365 = arith.addf %363, %364 : vector<8x128xf32>
    %366 = math.tanh %365 : vector<8x128xf32>
    %367 = arith.mulf %362, %366 : vector<8x128xf32>
    %368 = arith.truncf %367 : vector<8x128xf32> to vector<8x128xbf16>
    %369 = vector.extract_strided_slice %11 {offsets = [40, 0], sizes = [8, 512], strides = [1, 1]} : vector<64x512xf32> to vector<8x512xf32>
    %cst_119 = arith.constant dense<0.000000e+00> : vector<8x512xf32>
    %370 = tpu.matmul %332, %0, %cst_119 {dimension_numbers = #tpu.dot_dimension_numbers<[1], [0], [0], [1], [0, 0, 1, 1], [], []>} : vector<8x128xbf16>, vector<128x512xbf16>, vector<8x512xf32> -> vector<8x512xf32>
    %371 = arith.addf %369, %370 : vector<8x512xf32>
    %372 = vector.extract_strided_slice %371 {offsets = [0, 0], sizes = [8, 128], strides = [1, 1]} : vector<8x512xf32> to vector<8x128xf32>
    %cst_120 = arith.constant 5.000000e-01 : f32
    %373 = vector.broadcast %cst_120 : f32 to vector<8x128xf32>
    %374 = arith.mulf %373, %372 : vector<8x128xf32>
    %375 = math.tanh %374 : vector<8x128xf32>
    %cst_121 = arith.constant 5.000000e-01 : f32
    %376 = vector.broadcast %cst_121 : f32 to vector<8x128xf32>
    %377 = arith.mulf %376, %375 : vector<8x128xf32>
    %cst_122 = arith.constant 5.000000e-01 : f32
    %378 = vector.broadcast %cst_122 : f32 to vector<8x128xf32>
    %379 = arith.addf %377, %378 : vector<8x128xf32>
    %380 = vector.extract_strided_slice %371 {offsets = [0, 128], sizes = [8, 128], strides = [1, 1]} : vector<8x512xf32> to vector<8x128xf32>
    %cst_123 = arith.constant 5.000000e-01 : f32
    %381 = vector.broadcast %cst_123 : f32 to vector<8x128xf32>
    %382 = arith.mulf %381, %380 : vector<8x128xf32>
    %383 = math.tanh %382 : vector<8x128xf32>
    %cst_124 = arith.constant 5.000000e-01 : f32
    %384 = vector.broadcast %cst_124 : f32 to vector<8x128xf32>
    %385 = arith.mulf %384, %383 : vector<8x128xf32>
    %cst_125 = arith.constant 5.000000e-01 : f32
    %386 = vector.broadcast %cst_125 : f32 to vector<8x128xf32>
    %387 = arith.addf %385, %386 : vector<8x128xf32>
    %388 = vector.extract_strided_slice %371 {offsets = [0, 256], sizes = [8, 128], strides = [1, 1]} : vector<8x512xf32> to vector<8x128xf32>
    %389 = math.tanh %388 : vector<8x128xf32>
    %390 = vector.extract_strided_slice %371 {offsets = [0, 384], sizes = [8, 128], strides = [1, 1]} : vector<8x512xf32> to vector<8x128xf32>
    %cst_126 = arith.constant 5.000000e-01 : f32
    %391 = vector.broadcast %cst_126 : f32 to vector<8x128xf32>
    %392 = arith.mulf %391, %390 : vector<8x128xf32>
    %393 = math.tanh %392 : vector<8x128xf32>
    %cst_127 = arith.constant 5.000000e-01 : f32
    %394 = vector.broadcast %cst_127 : f32 to vector<8x128xf32>
    %395 = arith.mulf %394, %393 : vector<8x128xf32>
    %cst_128 = arith.constant 5.000000e-01 : f32
    %396 = vector.broadcast %cst_128 : f32 to vector<8x128xf32>
    %397 = arith.addf %395, %396 : vector<8x128xf32>
    %398 = arith.mulf %387, %329 : vector<8x128xf32>
    %399 = arith.mulf %379, %389 : vector<8x128xf32>
    %400 = arith.addf %398, %399 : vector<8x128xf32>
    %401 = math.tanh %400 : vector<8x128xf32>
    %402 = arith.mulf %397, %401 : vector<8x128xf32>
    %403 = arith.truncf %402 : vector<8x128xf32> to vector<8x128xbf16>
    %cst_129 = arith.constant dense<0.000000e+00> : vector<8x512xf32>
    %404 = tpu.matmul %403, %1, %cst_129 {dimension_numbers = #tpu.dot_dimension_numbers<[1], [0], [0], [1], [0, 0, 1, 1], [], []>} : vector<8x128xbf16>, vector<128x512xbf16>, vector<8x512xf32> -> vector<8x512xf32>
    %cst_130 = arith.constant dense<0.000000e+00> : vector<8x512xf32>
    %405 = tpu.matmul %368, %2, %cst_130 {dimension_numbers = #tpu.dot_dimension_numbers<[1], [0], [0], [1], [0, 0, 1, 1], [], []>} : vector<8x128xbf16>, vector<128x512xbf16>, vector<8x512xf32> -> vector<8x512xf32>
    %406 = arith.addf %404, %405 : vector<8x512xf32>
    %407 = arith.addf %406, %5 : vector<8x512xf32>
    %408 = vector.extract_strided_slice %407 {offsets = [0, 0], sizes = [8, 128], strides = [1, 1]} : vector<8x512xf32> to vector<8x128xf32>
    %cst_131 = arith.constant 5.000000e-01 : f32
    %409 = vector.broadcast %cst_131 : f32 to vector<8x128xf32>
    %410 = arith.mulf %409, %408 : vector<8x128xf32>
    %411 = math.tanh %410 : vector<8x128xf32>
    %cst_132 = arith.constant 5.000000e-01 : f32
    %412 = vector.broadcast %cst_132 : f32 to vector<8x128xf32>
    %413 = arith.mulf %412, %411 : vector<8x128xf32>
    %cst_133 = arith.constant 5.000000e-01 : f32
    %414 = vector.broadcast %cst_133 : f32 to vector<8x128xf32>
    %415 = arith.addf %413, %414 : vector<8x128xf32>
    %416 = vector.extract_strided_slice %407 {offsets = [0, 128], sizes = [8, 128], strides = [1, 1]} : vector<8x512xf32> to vector<8x128xf32>
    %cst_134 = arith.constant 5.000000e-01 : f32
    %417 = vector.broadcast %cst_134 : f32 to vector<8x128xf32>
    %418 = arith.mulf %417, %416 : vector<8x128xf32>
    %419 = math.tanh %418 : vector<8x128xf32>
    %cst_135 = arith.constant 5.000000e-01 : f32
    %420 = vector.broadcast %cst_135 : f32 to vector<8x128xf32>
    %421 = arith.mulf %420, %419 : vector<8x128xf32>
    %cst_136 = arith.constant 5.000000e-01 : f32
    %422 = vector.broadcast %cst_136 : f32 to vector<8x128xf32>
    %423 = arith.addf %421, %422 : vector<8x128xf32>
    %424 = vector.extract_strided_slice %407 {offsets = [0, 256], sizes = [8, 128], strides = [1, 1]} : vector<8x512xf32> to vector<8x128xf32>
    %425 = math.tanh %424 : vector<8x128xf32>
    %426 = vector.extract_strided_slice %407 {offsets = [0, 384], sizes = [8, 128], strides = [1, 1]} : vector<8x512xf32> to vector<8x128xf32>
    %cst_137 = arith.constant 5.000000e-01 : f32
    %427 = vector.broadcast %cst_137 : f32 to vector<8x128xf32>
    %428 = arith.mulf %427, %426 : vector<8x128xf32>
    %429 = math.tanh %428 : vector<8x128xf32>
    %cst_138 = arith.constant 5.000000e-01 : f32
    %430 = vector.broadcast %cst_138 : f32 to vector<8x128xf32>
    %431 = arith.mulf %430, %429 : vector<8x128xf32>
    %cst_139 = arith.constant 5.000000e-01 : f32
    %432 = vector.broadcast %cst_139 : f32 to vector<8x128xf32>
    %433 = arith.addf %431, %432 : vector<8x128xf32>
    %434 = arith.mulf %423, %365 : vector<8x128xf32>
    %435 = arith.mulf %415, %425 : vector<8x128xf32>
    %436 = arith.addf %434, %435 : vector<8x128xf32>
    %437 = math.tanh %436 : vector<8x128xf32>
    %438 = arith.mulf %433, %437 : vector<8x128xf32>
    %439 = arith.truncf %438 : vector<8x128xf32> to vector<8x128xbf16>
    %440 = vector.extract_strided_slice %11 {offsets = [48, 0], sizes = [8, 512], strides = [1, 1]} : vector<64x512xf32> to vector<8x512xf32>
    %cst_140 = arith.constant dense<0.000000e+00> : vector<8x512xf32>
    %441 = tpu.matmul %403, %0, %cst_140 {dimension_numbers = #tpu.dot_dimension_numbers<[1], [0], [0], [1], [0, 0, 1, 1], [], []>} : vector<8x128xbf16>, vector<128x512xbf16>, vector<8x512xf32> -> vector<8x512xf32>
    %442 = arith.addf %440, %441 : vector<8x512xf32>
    %443 = vector.extract_strided_slice %442 {offsets = [0, 0], sizes = [8, 128], strides = [1, 1]} : vector<8x512xf32> to vector<8x128xf32>
    %cst_141 = arith.constant 5.000000e-01 : f32
    %444 = vector.broadcast %cst_141 : f32 to vector<8x128xf32>
    %445 = arith.mulf %444, %443 : vector<8x128xf32>
    %446 = math.tanh %445 : vector<8x128xf32>
    %cst_142 = arith.constant 5.000000e-01 : f32
    %447 = vector.broadcast %cst_142 : f32 to vector<8x128xf32>
    %448 = arith.mulf %447, %446 : vector<8x128xf32>
    %cst_143 = arith.constant 5.000000e-01 : f32
    %449 = vector.broadcast %cst_143 : f32 to vector<8x128xf32>
    %450 = arith.addf %448, %449 : vector<8x128xf32>
    %451 = vector.extract_strided_slice %442 {offsets = [0, 128], sizes = [8, 128], strides = [1, 1]} : vector<8x512xf32> to vector<8x128xf32>
    %cst_144 = arith.constant 5.000000e-01 : f32
    %452 = vector.broadcast %cst_144 : f32 to vector<8x128xf32>
    %453 = arith.mulf %452, %451 : vector<8x128xf32>
    %454 = math.tanh %453 : vector<8x128xf32>
    %cst_145 = arith.constant 5.000000e-01 : f32
    %455 = vector.broadcast %cst_145 : f32 to vector<8x128xf32>
    %456 = arith.mulf %455, %454 : vector<8x128xf32>
    %cst_146 = arith.constant 5.000000e-01 : f32
    %457 = vector.broadcast %cst_146 : f32 to vector<8x128xf32>
    %458 = arith.addf %456, %457 : vector<8x128xf32>
    %459 = vector.extract_strided_slice %442 {offsets = [0, 256], sizes = [8, 128], strides = [1, 1]} : vector<8x512xf32> to vector<8x128xf32>
    %460 = math.tanh %459 : vector<8x128xf32>
    %461 = vector.extract_strided_slice %442 {offsets = [0, 384], sizes = [8, 128], strides = [1, 1]} : vector<8x512xf32> to vector<8x128xf32>
    %cst_147 = arith.constant 5.000000e-01 : f32
    %462 = vector.broadcast %cst_147 : f32 to vector<8x128xf32>
    %463 = arith.mulf %462, %461 : vector<8x128xf32>
    %464 = math.tanh %463 : vector<8x128xf32>
    %cst_148 = arith.constant 5.000000e-01 : f32
    %465 = vector.broadcast %cst_148 : f32 to vector<8x128xf32>
    %466 = arith.mulf %465, %464 : vector<8x128xf32>
    %cst_149 = arith.constant 5.000000e-01 : f32
    %467 = vector.broadcast %cst_149 : f32 to vector<8x128xf32>
    %468 = arith.addf %466, %467 : vector<8x128xf32>
    %469 = arith.mulf %458, %400 : vector<8x128xf32>
    %470 = arith.mulf %450, %460 : vector<8x128xf32>
    %471 = arith.addf %469, %470 : vector<8x128xf32>
    %472 = math.tanh %471 : vector<8x128xf32>
    %473 = arith.mulf %468, %472 : vector<8x128xf32>
    %474 = arith.truncf %473 : vector<8x128xf32> to vector<8x128xbf16>
    %cst_150 = arith.constant dense<0.000000e+00> : vector<8x512xf32>
    %475 = tpu.matmul %474, %1, %cst_150 {dimension_numbers = #tpu.dot_dimension_numbers<[1], [0], [0], [1], [0, 0, 1, 1], [], []>} : vector<8x128xbf16>, vector<128x512xbf16>, vector<8x512xf32> -> vector<8x512xf32>
    %cst_151 = arith.constant dense<0.000000e+00> : vector<8x512xf32>
    %476 = tpu.matmul %439, %2, %cst_151 {dimension_numbers = #tpu.dot_dimension_numbers<[1], [0], [0], [1], [0, 0, 1, 1], [], []>} : vector<8x128xbf16>, vector<128x512xbf16>, vector<8x512xf32> -> vector<8x512xf32>
    %477 = arith.addf %475, %476 : vector<8x512xf32>
    %478 = arith.addf %477, %5 : vector<8x512xf32>
    %479 = vector.extract_strided_slice %478 {offsets = [0, 0], sizes = [8, 128], strides = [1, 1]} : vector<8x512xf32> to vector<8x128xf32>
    %cst_152 = arith.constant 5.000000e-01 : f32
    %480 = vector.broadcast %cst_152 : f32 to vector<8x128xf32>
    %481 = arith.mulf %480, %479 : vector<8x128xf32>
    %482 = math.tanh %481 : vector<8x128xf32>
    %cst_153 = arith.constant 5.000000e-01 : f32
    %483 = vector.broadcast %cst_153 : f32 to vector<8x128xf32>
    %484 = arith.mulf %483, %482 : vector<8x128xf32>
    %cst_154 = arith.constant 5.000000e-01 : f32
    %485 = vector.broadcast %cst_154 : f32 to vector<8x128xf32>
    %486 = arith.addf %484, %485 : vector<8x128xf32>
    %487 = vector.extract_strided_slice %478 {offsets = [0, 128], sizes = [8, 128], strides = [1, 1]} : vector<8x512xf32> to vector<8x128xf32>
    %cst_155 = arith.constant 5.000000e-01 : f32
    %488 = vector.broadcast %cst_155 : f32 to vector<8x128xf32>
    %489 = arith.mulf %488, %487 : vector<8x128xf32>
    %490 = math.tanh %489 : vector<8x128xf32>
    %cst_156 = arith.constant 5.000000e-01 : f32
    %491 = vector.broadcast %cst_156 : f32 to vector<8x128xf32>
    %492 = arith.mulf %491, %490 : vector<8x128xf32>
    %cst_157 = arith.constant 5.000000e-01 : f32
    %493 = vector.broadcast %cst_157 : f32 to vector<8x128xf32>
    %494 = arith.addf %492, %493 : vector<8x128xf32>
    %495 = vector.extract_strided_slice %478 {offsets = [0, 256], sizes = [8, 128], strides = [1, 1]} : vector<8x512xf32> to vector<8x128xf32>
    %496 = math.tanh %495 : vector<8x128xf32>
    %497 = vector.extract_strided_slice %478 {offsets = [0, 384], sizes = [8, 128], strides = [1, 1]} : vector<8x512xf32> to vector<8x128xf32>
    %cst_158 = arith.constant 5.000000e-01 : f32
    %498 = vector.broadcast %cst_158 : f32 to vector<8x128xf32>
    %499 = arith.mulf %498, %497 : vector<8x128xf32>
    %500 = math.tanh %499 : vector<8x128xf32>
    %cst_159 = arith.constant 5.000000e-01 : f32
    %501 = vector.broadcast %cst_159 : f32 to vector<8x128xf32>
    %502 = arith.mulf %501, %500 : vector<8x128xf32>
    %cst_160 = arith.constant 5.000000e-01 : f32
    %503 = vector.broadcast %cst_160 : f32 to vector<8x128xf32>
    %504 = arith.addf %502, %503 : vector<8x128xf32>
    %505 = arith.mulf %494, %436 : vector<8x128xf32>
    %506 = arith.mulf %486, %496 : vector<8x128xf32>
    %507 = arith.addf %505, %506 : vector<8x128xf32>
    %508 = math.tanh %507 : vector<8x128xf32>
    %509 = arith.mulf %504, %508 : vector<8x128xf32>
    %510 = arith.truncf %509 : vector<8x128xf32> to vector<8x128xbf16>
    %511 = vector.extract_strided_slice %11 {offsets = [56, 0], sizes = [8, 512], strides = [1, 1]} : vector<64x512xf32> to vector<8x512xf32>
    %cst_161 = arith.constant dense<0.000000e+00> : vector<8x512xf32>
    %512 = tpu.matmul %474, %0, %cst_161 {dimension_numbers = #tpu.dot_dimension_numbers<[1], [0], [0], [1], [0, 0, 1, 1], [], []>} : vector<8x128xbf16>, vector<128x512xbf16>, vector<8x512xf32> -> vector<8x512xf32>
    %513 = arith.addf %511, %512 : vector<8x512xf32>
    %514 = vector.extract_strided_slice %513 {offsets = [0, 0], sizes = [8, 128], strides = [1, 1]} : vector<8x512xf32> to vector<8x128xf32>
    %cst_162 = arith.constant 5.000000e-01 : f32
    %515 = vector.broadcast %cst_162 : f32 to vector<8x128xf32>
    %516 = arith.mulf %515, %514 : vector<8x128xf32>
    %517 = math.tanh %516 : vector<8x128xf32>
    %cst_163 = arith.constant 5.000000e-01 : f32
    %518 = vector.broadcast %cst_163 : f32 to vector<8x128xf32>
    %519 = arith.mulf %518, %517 : vector<8x128xf32>
    %cst_164 = arith.constant 5.000000e-01 : f32
    %520 = vector.broadcast %cst_164 : f32 to vector<8x128xf32>
    %521 = arith.addf %519, %520 : vector<8x128xf32>
    %522 = vector.extract_strided_slice %513 {offsets = [0, 128], sizes = [8, 128], strides = [1, 1]} : vector<8x512xf32> to vector<8x128xf32>
    %cst_165 = arith.constant 5.000000e-01 : f32
    %523 = vector.broadcast %cst_165 : f32 to vector<8x128xf32>
    %524 = arith.mulf %523, %522 : vector<8x128xf32>
    %525 = math.tanh %524 : vector<8x128xf32>
    %cst_166 = arith.constant 5.000000e-01 : f32
    %526 = vector.broadcast %cst_166 : f32 to vector<8x128xf32>
    %527 = arith.mulf %526, %525 : vector<8x128xf32>
    %cst_167 = arith.constant 5.000000e-01 : f32
    %528 = vector.broadcast %cst_167 : f32 to vector<8x128xf32>
    %529 = arith.addf %527, %528 : vector<8x128xf32>
    %530 = vector.extract_strided_slice %513 {offsets = [0, 256], sizes = [8, 128], strides = [1, 1]} : vector<8x512xf32> to vector<8x128xf32>
    %531 = math.tanh %530 : vector<8x128xf32>
    %532 = vector.extract_strided_slice %513 {offsets = [0, 384], sizes = [8, 128], strides = [1, 1]} : vector<8x512xf32> to vector<8x128xf32>
    %cst_168 = arith.constant 5.000000e-01 : f32
    %533 = vector.broadcast %cst_168 : f32 to vector<8x128xf32>
    %534 = arith.mulf %533, %532 : vector<8x128xf32>
    %535 = math.tanh %534 : vector<8x128xf32>
    %cst_169 = arith.constant 5.000000e-01 : f32
    %536 = vector.broadcast %cst_169 : f32 to vector<8x128xf32>
    %537 = arith.mulf %536, %535 : vector<8x128xf32>
    %cst_170 = arith.constant 5.000000e-01 : f32
    %538 = vector.broadcast %cst_170 : f32 to vector<8x128xf32>
    %539 = arith.addf %537, %538 : vector<8x128xf32>
    %540 = arith.mulf %529, %471 : vector<8x128xf32>
    %541 = arith.mulf %521, %531 : vector<8x128xf32>
    %542 = arith.addf %540, %541 : vector<8x128xf32>
    %543 = math.tanh %542 : vector<8x128xf32>
    %544 = arith.mulf %539, %543 : vector<8x128xf32>
    %545 = arith.truncf %544 : vector<8x128xf32> to vector<8x128xbf16>
    %cst_171 = arith.constant dense<0.000000e+00> : vector<8x512xf32>
    %546 = tpu.matmul %545, %1, %cst_171 {dimension_numbers = #tpu.dot_dimension_numbers<[1], [0], [0], [1], [0, 0, 1, 1], [], []>} : vector<8x128xbf16>, vector<128x512xbf16>, vector<8x512xf32> -> vector<8x512xf32>
    %cst_172 = arith.constant dense<0.000000e+00> : vector<8x512xf32>
    %547 = tpu.matmul %510, %2, %cst_172 {dimension_numbers = #tpu.dot_dimension_numbers<[1], [0], [0], [1], [0, 0, 1, 1], [], []>} : vector<8x128xbf16>, vector<128x512xbf16>, vector<8x512xf32> -> vector<8x512xf32>
    %548 = arith.addf %546, %547 : vector<8x512xf32>
    %549 = arith.addf %548, %5 : vector<8x512xf32>
    %550 = vector.extract_strided_slice %549 {offsets = [0, 0], sizes = [8, 128], strides = [1, 1]} : vector<8x512xf32> to vector<8x128xf32>
    %cst_173 = arith.constant 5.000000e-01 : f32
    %551 = vector.broadcast %cst_173 : f32 to vector<8x128xf32>
    %552 = arith.mulf %551, %550 : vector<8x128xf32>
    %553 = math.tanh %552 : vector<8x128xf32>
    %cst_174 = arith.constant 5.000000e-01 : f32
    %554 = vector.broadcast %cst_174 : f32 to vector<8x128xf32>
    %555 = arith.mulf %554, %553 : vector<8x128xf32>
    %cst_175 = arith.constant 5.000000e-01 : f32
    %556 = vector.broadcast %cst_175 : f32 to vector<8x128xf32>
    %557 = arith.addf %555, %556 : vector<8x128xf32>
    %558 = vector.extract_strided_slice %549 {offsets = [0, 128], sizes = [8, 128], strides = [1, 1]} : vector<8x512xf32> to vector<8x128xf32>
    %cst_176 = arith.constant 5.000000e-01 : f32
    %559 = vector.broadcast %cst_176 : f32 to vector<8x128xf32>
    %560 = arith.mulf %559, %558 : vector<8x128xf32>
    %561 = math.tanh %560 : vector<8x128xf32>
    %cst_177 = arith.constant 5.000000e-01 : f32
    %562 = vector.broadcast %cst_177 : f32 to vector<8x128xf32>
    %563 = arith.mulf %562, %561 : vector<8x128xf32>
    %cst_178 = arith.constant 5.000000e-01 : f32
    %564 = vector.broadcast %cst_178 : f32 to vector<8x128xf32>
    %565 = arith.addf %563, %564 : vector<8x128xf32>
    %566 = vector.extract_strided_slice %549 {offsets = [0, 256], sizes = [8, 128], strides = [1, 1]} : vector<8x512xf32> to vector<8x128xf32>
    %567 = math.tanh %566 : vector<8x128xf32>
    %568 = vector.extract_strided_slice %549 {offsets = [0, 384], sizes = [8, 128], strides = [1, 1]} : vector<8x512xf32> to vector<8x128xf32>
    %cst_179 = arith.constant 5.000000e-01 : f32
    %569 = vector.broadcast %cst_179 : f32 to vector<8x128xf32>
    %570 = arith.mulf %569, %568 : vector<8x128xf32>
    %571 = math.tanh %570 : vector<8x128xf32>
    %cst_180 = arith.constant 5.000000e-01 : f32
    %572 = vector.broadcast %cst_180 : f32 to vector<8x128xf32>
    %573 = arith.mulf %572, %571 : vector<8x128xf32>
    %cst_181 = arith.constant 5.000000e-01 : f32
    %574 = vector.broadcast %cst_181 : f32 to vector<8x128xf32>
    %575 = arith.addf %573, %574 : vector<8x128xf32>
    %576 = arith.mulf %565, %507 : vector<8x128xf32>
    %577 = arith.mulf %557, %567 : vector<8x128xf32>
    %578 = arith.addf %576, %577 : vector<8x128xf32>
    %579 = math.tanh %578 : vector<8x128xf32>
    %580 = arith.mulf %575, %579 : vector<8x128xf32>
    %581 = arith.truncf %580 : vector<8x128xf32> to vector<8x128xbf16>
    %c0_182 = arith.constant 0 : index
    %c0_183 = arith.constant 0 : index
    %582 = vector.load %arg7[%c0_182, %c0_183] : memref<128x64xbf16, #tpu.memory_space<vmem>>, vector<128x64xbf16>
    %cst_184 = arith.constant dense<0.000000e+00> : vector<8x64xf32>
    %583 = tpu.matmul %581, %582, %cst_184 {dimension_numbers = #tpu.dot_dimension_numbers<[1], [0], [0], [1], [0, 0, 1, 1], [], []>} : vector<8x128xbf16>, vector<128x64xbf16>, vector<8x64xf32> -> vector<8x64xf32>
    %c0_185 = arith.constant 0 : index
    %c0_186 = arith.constant 0 : index
    %584 = vector.load %arg8[%c0_185, %c0_186] : memref<1x64xf32, #tpu.memory_space<vmem>>, vector<1x64xf32>
    %585 = vector.broadcast %584 : vector<1x64xf32> to vector<8x64xf32>
    %586 = arith.addf %583, %585 : vector<8x64xf32>
    %cst_187 = arith.constant 0.000000e+00 : f32
    %587 = vector.broadcast %cst_187 : f32 to vector<8x64xf32>
    %588 = arith.maximumf %586, %587 : vector<8x64xf32>
    %589 = arith.truncf %588 : vector<8x64xf32> to vector<8x64xbf16>
    %c0_188 = arith.constant 0 : index
    %c0_189 = arith.constant 0 : index
    %590 = vector.load %arg9[%c0_188, %c0_189] : memref<64x8xbf16, #tpu.memory_space<vmem>>, vector<64x8xbf16>
    %cst_190 = arith.constant dense<0.000000e+00> : vector<8x8xf32>
    %591 = tpu.matmul %589, %590, %cst_190 {dimension_numbers = #tpu.dot_dimension_numbers<[1], [0], [0], [1], [0, 0, 1, 1], [], []>} : vector<8x64xbf16>, vector<64x8xbf16>, vector<8x8xf32> -> vector<8x8xf32>
    %c0_191 = arith.constant 0 : index
    %c0_192 = arith.constant 0 : index
    %592 = vector.load %arg10[%c0_191, %c0_192] : memref<1x8xf32, #tpu.memory_space<vmem>>, vector<1x8xf32>
    %593 = vector.broadcast %592 : vector<1x8xf32> to vector<8x8xf32>
    %594 = arith.addf %591, %593 : vector<8x8xf32>
    %c0_193 = arith.constant 0 : index
    %c0_194 = arith.constant 0 : index
    %595 = vector.load %arg11[%c0_193, %c0_194] : memref<8x8xf32, #tpu.memory_space<vmem>>, vector<8x8xf32>
    tpu.vector_store %arg11[%c0_193, %c0_194], %594 {strides = array<i32>} : memref<8x8xf32, #tpu.memory_space<vmem>>, vector<8x8xf32>,
    %cst_195 = arith.constant dense<0xFF800000> : vector<8xf32>
    %596 = vector.multi_reduction <maximumf>, %594, %cst_195 [1] : vector<8x8xf32> to vector<8xf32>
    %597 = vector.shape_cast %596 : vector<8xf32> to vector<8x1xf32>
    %598 = vector.broadcast %597 : vector<8x1xf32> to vector<8x8xf32>
    %599 = arith.subf %594, %598 : vector<8x8xf32>
    %600 = math.exp %599 : vector<8x8xf32>
    %cst_196 = arith.constant dense<0.000000e+00> : vector<8xf32>
    %601 = vector.multi_reduction <add>, %600, %cst_196 [1] : vector<8x8xf32> to vector<8xf32>
    %602 = vector.shape_cast %601 : vector<8xf32> to vector<8x1xf32>
    %603 = vector.broadcast %602 : vector<8x1xf32> to vector<8x8xf32>
    %604 = arith.divf %600, %603 : vector<8x8xf32>
    %c0_197 = arith.constant 0 : index
    %c0_198 = arith.constant 0 : index
    %605 = vector.load %arg12[%c0_197, %c0_198] : memref<8x8xf32, #tpu.memory_space<vmem>>, vector<8x8xf32>
    tpu.vector_store %arg12[%c0_197, %c0_198], %604 {strides = array<i32>} : memref<8x8xf32, #tpu.memory_space<vmem>>, vector<8x8xf32>,
    return
  }
}

</mosaic_0001>

<llo_original>
// kernel: emotion_lstm_forward.1
$region0: #{emotion_lstm_forward.1}
  #allocation0 [shape = 'u32[]', space=smem, size = 0x4, offset = 0x4, fixed_abs, tag = 'smem constant byte address 0x4 - core index']
  #allocation1 [shape = 'u32[144,128]{1,0:T(1,128)}', space=vmem, size = 0x12000, scoped, tag = 'internal scratch']
  %s0 = inlined_call_operand.vmem [shape: f32[64,8], index: 0, kind: input, shape index: {}]
  %s1 = inlined_call_operand.vmem [shape: f32[8,512], index: 1, kind: input, shape index: {}]
  %s2 = inlined_call_operand.vmem [shape: bf16[128,512], index: 2, kind: input, shape index: {}]
  %s3 = inlined_call_operand.vmem [shape: f32[1,512], index: 3, kind: input, shape index: {}]
  %s4 = inlined_call_operand.hbm [shape: bf16[128,512], index: 4, kind: input, shape index: {}]
  %s5 = inlined_call_operand.hbm [shape: bf16[128,512], index: 5, kind: input, shape index: {}]
  %s6 = inlined_call_operand.vmem [shape: f32[1,512], index: 6, kind: input, shape index: {}]
  %s7 = inlined_call_operand.vmem [shape: bf16[128,64], index: 7, kind: input, shape index: {}]
  %s8 = inlined_call_operand.vmem [shape: f32[1,64], index: 8, kind: input, shape index: {}]
  %s9 = inlined_call_operand.vmem [shape: bf16[64,8], index: 9, kind: input, shape index: {}]
  %s10 = inlined_call_operand.vmem [shape: f32[1,8], index: 10, kind: input, shape index: {}]
  %s11 = inlined_call_operand.vmem [shape: f32[8,8], index: 11, kind: output, shape index: {0}]
  %s12 = inlined_call_operand.vmem [shape: f32[8,8], index: 12, kind: output, shape index: {1}]
  %13 = xla_tuple %s11, %s12
  %s14 = sld [smem:[#allocation0]]
  $region70: #{emotion_lstm_forward.1} parent=0
    _
  %s16 = ssub.s32 1, %s14
  %s17 = scalar_select 0, %s16, %s14
  $region1: #{emotion_lstm_forward.1} parent=0
    #allocation2 [shape = 'u8[131072]{0}', space=vmem, size = 0x20000, scoped, tag = 'input window, operand 4, single buffered']
    #allocation3 [shape = 's32[1]{0}', space=sflag, size = 0x4, scoped, tag = 'scoped memory for emotion_lstm_forward.1']
    #allocation4 [shape = 'u8[131072]{0}', space=vmem, size = 0x20000, scoped, tag = 'input window, operand 5, single buffered']
    #allocation5 [shape = 's32[1]{0}', space=sflag, size = 0x4, scoped, tag = 'scoped memory for emotion_lstm_forward.1']
    %18 = vsyncpa [#allocation3], 0
    %19 = vsyncpa [#allocation5], 0
    // Predicated region
    $region2: #{emotion_lstm_forward.1} parent=1 // pred_check
      _
    $region3: #{emotion_lstm_forward.1} parent=1 // pred_check_branch
      %21 = sbr.rel (0) target = $region5
    $region4: #{emotion_lstm_forward.1} parent=1 // pred_region
      _
    $region5: #{emotion_lstm_forward.1} parent=1 // pred_fallthru
      _
    // Predicated region
    $region6: #{emotion_lstm_forward.1} parent=1 // pred_check
      _
    $region7: #{emotion_lstm_forward.1} parent=1 // pred_check_branch
      %23 = sbr.rel (0) target = $region9
    $region8: #{emotion_lstm_forward.1} parent=1 // pred_region
      _
    $region9: #{emotion_lstm_forward.1} parent=1 // pred_fallthru
      _
    // Predicated region
    $region10: #{emotion_lstm_forward.1} parent=1 // pred_check
      _
    $region11: #{emotion_lstm_forward.1} parent=1 // pred_check_branch
      %25 = sbr.rel (0) target = $region13
    $region12: #{emotion_lstm_forward.1} parent=1 // pred_region
      _
    $region13: #{emotion_lstm_forward.1} parent=1 // pred_fallthru
      _
    // Predicated region
    $region14: #{emotion_lstm_forward.1} parent=1 // pred_check
      _
    $region15: #{emotion_lstm_forward.1} parent=1 // pred_check_branch
      %27 = sbr.rel (0) target = $region17
    $region16: #{emotion_lstm_forward.1} parent=1 // pred_region
      _
    $region17: #{emotion_lstm_forward.1} parent=1 // pred_fallthru
      _
    // Predicated region
    $region18: #{emotion_lstm_forward.1} parent=1 // pred_check
      _
    $region19: #{emotion_lstm_forward.1} parent=1 // pred_check_branch
      %29 = sbr.rel (0) target = $region21
    $region20: #{emotion_lstm_forward.1} parent=1 // pred_region
      %s31 = ssub.s32 4096, 4096
      %32 = vsyncadd [#allocation3], %s31
      %s33 = sshll.u32 [#allocation2], 4
      %s34 = int_to_ptr.vmem [resolvable:$true] %s33
      %39 = dma.hbm_to_vmem [thread:$0]  %s4, 4096, %s34, [#allocation3], 256, 256, 16
    $region21: #{emotion_lstm_forward.1} parent=1 // pred_fallthru
      _
    // Predicated region
    $region22: #{emotion_lstm_forward.1} parent=1 // pred_check
      _
    $region23: #{emotion_lstm_forward.1} parent=1 // pred_check_branch
      %41 = sbr.rel (0) target = $region25
    $region24: #{emotion_lstm_forward.1} parent=1 // pred_region
      %s43 = ssub.s32 4096, 4096
      %44 = vsyncadd [#allocation5], %s43
      %s45 = sshll.u32 [#allocation4], 4
      %s46 = int_to_ptr.vmem [resolvable:$true] %s45
      %51 = dma.hbm_to_vmem [thread:$0]  %s5, 4096, %s46, [#allocation5], 256, 256, 16
    $region25: #{emotion_lstm_forward.1} parent=1 // pred_fallthru
      _
    // Predicated region
    $region26: #{emotion_lstm_forward.1} parent=1 // pred_check
      _
    $region27: #{emotion_lstm_forward.1} parent=1 // pred_check_branch
      %53 = sbr.rel (0) target = $region29
    $region28: #{emotion_lstm_forward.1} parent=1 // pred_region
      _
    $region29: #{emotion_lstm_forward.1} parent=1 // pred_fallthru
      _
    // Predicated region
    $region30: #{emotion_lstm_forward.1} parent=1 // pred_check
      _
    $region31: #{emotion_lstm_forward.1} parent=1 // pred_check_branch
      %55 = sbr.rel (0) target = $region33
    $region32: #{emotion_lstm_forward.1} parent=1 // pred_region
      _
    $region33: #{emotion_lstm_forward.1} parent=1 // pred_fallthru
      _
    // Predicated region
    $region34: #{emotion_lstm_forward.1} parent=1 // pred_check
      _
    $region35: #{emotion_lstm_forward.1} parent=1 // pred_check_branch
      %57 = sbr.rel (0) target = $region37
    $region36: #{emotion_lstm_forward.1} parent=1 // pred_region
      _
    $region37: #{emotion_lstm_forward.1} parent=1 // pred_fallthru
      _
    // Predicated region
    $region38: #{emotion_lstm_forward.1} parent=1 // pred_check
      _
    $region39: #{emotion_lstm_forward.1} parent=1 // pred_check_branch
      %59 = sbr.rel (0) target = $region41
    $region40: #{emotion_lstm_forward.1} parent=1 // pred_region
      _
    $region41: #{emotion_lstm_forward.1} parent=1 // pred_fallthru
      _
    // Predicated region
    $region42: #{emotion_lstm_forward.1} parent=1 // pred_check
      _
    $region43: #{emotion_lstm_forward.1} parent=1 // pred_check_branch
      %61 = sbr.rel (0) target = $region45
    $region44: #{emotion_lstm_forward.1} parent=1 // pred_region
      _
    $region45: #{emotion_lstm_forward.1} parent=1 // pred_fallthru
      _
    // Predicated region
    $region46: #{emotion_lstm_forward.1} parent=1 // pred_check
      _
    $region47: #{emotion_lstm_forward.1} parent=1 // pred_check_branch
      %63 = sbr.rel (0) target = $region49
    $region48: #{emotion_lstm_forward.1} parent=1 // pred_region
      %64 = dma.done [#allocation3], 4096
    $region49: #{emotion_lstm_forward.1} parent=1 // pred_fallthru
      _
    // Predicated region
    $region50: #{emotion_lstm_forward.1} parent=1 // pred_check
      _
    $region51: #{emotion_lstm_forward.1} parent=1 // pred_check_branch
      %66 = sbr.rel (0) target = $region53
    $region52: #{emotion_lstm_forward.1} parent=1 // pred_region
      %67 = dma.done [#allocation5], 4096
    $region53: #{emotion_lstm_forward.1} parent=1 // pred_fallthru
      _
    %v69 = vld [vmem:[%s2] sm:$0xff]
    %v70 = vld [vmem:[%s2 + $0x8] sm:$0xff]
    %v71 = vld [vmem:[%s2 + $0x10] sm:$0xff]
    %v72 = vld [vmem:[%s2 + $0x18] sm:$0xff]
    %v73 = vld [vmem:[%s2 + $0x20] sm:$0xff]
    %v74 = vld [vmem:[%s2 + $0x28] sm:$0xff]
    %v75 = vld [vmem:[%s2 + $0x30] sm:$0xff]
    %v76 = vld [vmem:[%s2 + $0x38] sm:$0xff]
    %v77 = vld [vmem:[%s2 + $0x40] sm:$0xff]
    %v78 = vld [vmem:[%s2 + $0x48] sm:$0xff]
    %v79 = vld [vmem:[%s2 + $0x50] sm:$0xff]
    %v80 = vld [vmem:[%s2 + $0x58] sm:$0xff]
    %v81 = vld [vmem:[%s2 + $0x60] sm:$0xff]
    %v82 = vld [vmem:[%s2 + $0x68] sm:$0xff]
    %v83 = vld [vmem:[%s2 + $0x70] sm:$0xff]
    %v84 = vld [vmem:[%s2 + $0x78] sm:$0xff]
    %v85 = vld [vmem:[%s2 + $0x80] sm:$0xff]
    %v86 = vld [vmem:[%s2 + $0x88] sm:$0xff]
    %v87 = vld [vmem:[%s2 + $0x90] sm:$0xff]
    %v88 = vld [vmem:[%s2 + $0x98] sm:$0xff]
    %v89 = vld [vmem:[%s2 + $0xa0] sm:$0xff]
    %v90 = vld [vmem:[%s2 + $0xa8] sm:$0xff]
    %v91 = vld [vmem:[%s2 + $0xb0] sm:$0xff]
    %v92 = vld [vmem:[%s2 + $0xb8] sm:$0xff]
    %v93 = vld [vmem:[%s2 + $0xc0] sm:$0xff]
    %v94 = vld [vmem:[%s2 + $0xc8] sm:$0xff]
    %v95 = vld [vmem:[%s2 + $0xd0] sm:$0xff]
    %v96 = vld [vmem:[%s2 + $0xd8] sm:$0xff]
    %v97 = vld [vmem:[%s2 + $0xe0] sm:$0xff]
    %v98 = vld [vmem:[%s2 + $0xe8] sm:$0xff]
    %v99 = vld [vmem:[%s2 + $0xf0] sm:$0xff]
    %v100 = vld [vmem:[%s2 + $0xf8] sm:$0xff]
    %v101 = vld [vmem:[#allocation2] sm:$0xff]
    %v102 = vld [vmem:[#allocation2 + $0x8] sm:$0xff]
    %v103 = vld [vmem:[#allocation2 + $0x10] sm:$0xff]
    %v104 = vld [vmem:[#allocation2 + $0x18] sm:$0xff]
    %v105 = vld [vmem:[#allocation2 + $0x20] sm:$0xff]
    %v106 = vld [vmem:[#allocation2 + $0x28] sm:$0xff]
    %v107 = vld [vmem:[#allocation2 + $0x30] sm:$0xff]
    %v108 = vld [vmem:[#allocation2 + $0x38] sm:$0xff]
    %v109 = vld [vmem:[#allocation2 + $0x40] sm:$0xff]
    %v110 = vld [vmem:[#allocation2 + $0x48] sm:$0xff]
    %v111 = vld [vmem:[#allocation2 + $0x50] sm:$0xff]
    %v112 = vld [vmem:[#allocation2 + $0x58] sm:$0xff]
    %v113 = vld [vmem:[#allocation2 + $0x60] sm:$0xff]
    %v114 = vld [vmem:[#allocation2 + $0x68] sm:$0xff]
    %v115 = vld [vmem:[#allocation2 + $0x70] sm:$0xff]
    %v116 = vld [vmem:[#allocation2 + $0x78] sm:$0xff]
    %v117 = vld [vmem:[#allocation2 + $0x80] sm:$0xff]
    %v118 = vld [vmem:[#allocation2 + $0x88] sm:$0xff]
    %v119 = vld [vmem:[#allocation2 + $0x90] sm:$0xff]
    %v120 = vld [vmem:[#allocation2 + $0x98] sm:$0xff]
    %v121 = vld [vmem:[#allocation2 + $0xa0] sm:$0xff]
    %v122 = vld [vmem:[#allocation2 + $0xa8] sm:$0xff]
    %v123 = vld [vmem:[#allocation2 + $0xb0] sm:$0xff]
    %v124 = vld [vmem:[#allocation2 + $0xb8] sm:$0xff]
    %v125 = vld [vmem:[#allocation2 + $0xc0] sm:$0xff]
    %v126 = vld [vmem:[#allocation2 + $0xc8] sm:$0xff]
    %v127 = vld [vmem:[#allocation2 + $0xd0] sm:$0xff]
    %v128 = vld [vmem:[#allocation2 + $0xd8] sm:$0xff]
    %v129 = vld [vmem:[#allocation2 + $0xe0] sm:$0xff]
    %v130 = vld [vmem:[#allocation2 + $0xe8] sm:$0xff]
    %v131 = vld [vmem:[#allocation2 + $0xf0] sm:$0xff]
    %v132 = vld [vmem:[#allocation2 + $0xf8] sm:$0xff]
    %v133 = vld [vmem:[#allocation4] sm:$0xff]
    %v134 = vld [vmem:[#allocation4 + $0x8] sm:$0xff]
    %v135 = vld [vmem:[#allocation4 + $0x10] sm:$0xff]
    %v136 = vld [vmem:[#allocation4 + $0x18] sm:$0xff]
    %v137 = vld [vmem:[#allocation4 + $0x20] sm:$0xff]
    %v138 = vld [vmem:[#allocation4 + $0x28] sm:$0xff]
    %v139 = vld [vmem:[#allocation4 + $0x30] sm:$0xff]
    %v140 = vld [vmem:[#allocation4 + $0x38] sm:$0xff]
    %v141 = vld [vmem:[#allocation4 + $0x40] sm:$0xff]
    %v142 = vld [vmem:[#allocation4 + $0x48] sm:$0xff]
    %v143 = vld [vmem:[#allocation4 + $0x50] sm:$0xff]
    %v144 = vld [vmem:[#allocation4 + $0x58] sm:$0xff]
    %v145 = vld [vmem:[#allocation4 + $0x60] sm:$0xff]
    %v146 = vld [vmem:[#allocation4 + $0x68] sm:$0xff]
    %v147 = vld [vmem:[#allocation4 + $0x70] sm:$0xff]
    %v148 = vld [vmem:[#allocation4 + $0x78] sm:$0xff]
    %v149 = vld [vmem:[#allocation4 + $0x80] sm:$0xff]
    %v150 = vld [vmem:[#allocation4 + $0x88] sm:$0xff]
    %v151 = vld [vmem:[#allocation4 + $0x90] sm:$0xff]
    %v152 = vld [vmem:[#allocation4 + $0x98] sm:$0xff]
    %v153 = vld [vmem:[#allocation4 + $0xa0] sm:$0xff]
    %v154 = vld [vmem:[#allocation4 + $0xa8] sm:$0xff]
    %v155 = vld [vmem:[#allocation4 + $0xb0] sm:$0xff]
    %v156 = vld [vmem:[#allocation4 + $0xb8] sm:$0xff]
    %v157 = vld [vmem:[#allocation4 + $0xc0] sm:$0xff]
    %v158 = vld [vmem:[#allocation4 + $0xc8] sm:$0xff]
    %v159 = vld [vmem:[#allocation4 + $0xd0] sm:$0xff]
    %v160 = vld [vmem:[#allocation4 + $0xd8] sm:$0xff]
    %v161 = vld [vmem:[#allocation4 + $0xe0] sm:$0xff]
    %v162 = vld [vmem:[#allocation4 + $0xe8] sm:$0xff]
    %v163 = vld [vmem:[#allocation4 + $0xf0] sm:$0xff]
    %v164 = vld [vmem:[#allocation4 + $0xf8] sm:$0xff]
    %v165 = vld [vmem:[%s6] sm:$0xf]
    %v167 = vlaneseq
    %v168 = vshrl.u32 %v167, 7
    %v169 = vsub.s32 0, %v168
    %v170 = vrot.slane %v165, %v169
    %v171 = vlaneseq
    %v172 = vshrl.u32 %v171, 7
    %v173 = vsub.s32 1, %v172
    %v174 = vrot.slane %v165, %v173
    %v175 = vlaneseq
    %v176 = vshrl.u32 %v175, 7
    %v177 = vsub.s32 2, %v176
    %v178 = vrot.slane %v165, %v177
    %v179 = vlaneseq
    %v180 = vshrl.u32 %v179, 7
    %v181 = vsub.s32 3, %v180
    %v182 = vrot.slane %v165, %v181
    %v187 = vld [vmem:[%s0] sm:$0xff]
    %v188 = vld [vmem:[%s0 + $0x8] sm:$0xff]
    %v189 = vld [vmem:[%s0 + $0x10] sm:$0xff]
    %v190 = vld [vmem:[%s0 + $0x18] sm:$0xff]
    %v191 = vld [vmem:[%s0 + $0x20] sm:$0xff]
    %v192 = vld [vmem:[%s0 + $0x28] sm:$0xff]
    %v193 = vld [vmem:[%s0 + $0x30] sm:$0xff]
    %v194 = vld [vmem:[%s0 + $0x38] sm:$0xff]
    %v195 = vld [vmem:[%s1] sm:$0xff]
    %v196 = vld [vmem:[%s1 + $0x8] sm:$0xff]
    %v197 = vld [vmem:[%s1 + $0x10] sm:$0xff]
    %v198 = vld [vmem:[%s1 + $0x18] sm:$0xff]
    %v199 = vld [vmem:[%s3] sm:$0xf]
    %v201 = vlaneseq
    %v202 = vshrl.u32 %v201, 7
    %v203 = vsub.s32 0, %v202
    %v204 = vrot.slane %v199, %v203
    %v205 = vlaneseq
    %v206 = vshrl.u32 %v205, 7
    %v207 = vsub.s32 1, %v206
    %v208 = vrot.slane %v199, %v207
    %v209 = vlaneseq
    %v210 = vshrl.u32 %v209, 7
    %v211 = vsub.s32 2, %v210
    %v212 = vrot.slane %v199, %v211
    %v213 = vlaneseq
    %v214 = vshrl.u32 %v213, 7
    %v215 = vsub.s32 3, %v214
    %v216 = vrot.slane %v199, %v215
    %vm221 = vcmask 64512
    %v223 = vsel %vm221, %v187, 0
    %v226 = vsel %vm221, %v188, 0
    %v229 = vsel %vm221, %v189, 0
    %v232 = vsel %vm221, %v190, 0
    %v235 = vsel %vm221, %v191, 0
    %v238 = vsel %vm221, %v192, 0
    %v241 = vsel %vm221, %v193, 0
    %v244 = vsel %vm221, %v194, 0
    %246 = vmatprep.subr.mxu0 0.0
    %247 = vmatpush1.msra.mxu0 0.0
    %248 = vmatprep.subr.mxu0 0.0
    %249 = vmatpush1.msra.mxu0 0.0
    %250 = vmatprep.subr.mxu0 0.0
    %251 = vmatpush1.msra.mxu0 0.0
    %252 = vmatprep.subr.mxu0 0.0
    %253 = vmatpush1.msra.mxu0 0.0
    %254 = vmatprep.subr.mxu0 0.0
    %255 = vmatpush1.msra.mxu0 0.0
    %256 = vmatprep.subr.mxu0 0.0
    %257 = vmatpush1.msra.mxu0 0.0
    %258 = vmatprep.subr.mxu0 0.0
    %259 = vmatpush1.msra.mxu0 0.0
    %260 = vmatprep.subr.mxu0 0.0
    %261 = vmatpush1.msra.mxu0 0.0
    %262 = vmatprep.subr.mxu0 0.0
    %263 = vmatpush1.msra.mxu0 0.0
    %264 = vmatprep.subr.mxu0 0.0
    %265 = vmatpush1.msra.mxu0 0.0
    %266 = vmatprep.subr.mxu0 0.0
    %267 = vmatpush1.msra.mxu0 0.0
    %268 = vmatprep.subr.mxu0 0.0
    %269 = vmatpush1.msra.mxu0 0.0
    %270 = vmatprep.subr.mxu0 0.0
    %271 = vmatpush1.msra.mxu0 0.0
    %272 = vmatprep.subr.mxu0 0.0
    %273 = vmatpush1.msra.mxu0 0.0
    %274 = vmatprep.subr.mxu0 0.0
    %275 = vmatpush1.msra.mxu0 0.0
    %276 = vmatprep.subr.mxu0 %v196
    %277 = vmatpush1.msra.mxu0 %v195
    %278 = vmatprep.subr.mxu0 0.0
    %279 = vmatpush2.msra.mxu0 0.0
    %280 = vmatprep.subr.mxu0 0.0
    %281 = vmatpush2.msra.mxu0 0.0
    %282 = vmatprep.subr.mxu0 0.0
    %283 = vmatpush2.msra.mxu0 0.0
    %284 = vmatprep.subr.mxu0 0.0
    %285 = vmatpush2.msra.mxu0 0.0
    %286 = vmatprep.subr.mxu0 0.0
    %287 = vmatpush2.msra.mxu0 0.0
    %288 = vmatprep.subr.mxu0 0.0
    %289 = vmatpush2.msra.mxu0 0.0
    %290 = vmatprep.subr.mxu0 0.0
    %291 = vmatpush2.msra.mxu0 0.0
    %292 = vmatprep.subr.mxu0 0.0
    %293 = vmatpush2.msra.mxu0 0.0
    %294 = vmatprep.subr.mxu0 0.0
    %295 = vmatpush2.msra.mxu0 0.0
    %296 = vmatprep.subr.mxu0 0.0
    %297 = vmatpush2.msra.mxu0 0.0
    %298 = vmatprep.subr.mxu0 0.0
    %299 = vmatpush2.msra.mxu0 0.0
    %300 = vmatprep.subr.mxu0 0.0
    %301 = vmatpush2.msra.mxu0 0.0
    %302 = vmatprep.subr.mxu0 0.0
    %303 = vmatpush2.msra.mxu0 0.0
    %304 = vmatprep.subr.mxu0 0.0
    %305 = vmatpush2.msra.mxu0 0.0
    %306 = vmatprep.subr.mxu0 0.0
    %307 = vmatpush2.msra.mxu0 0.0
    %308 = vmatprep.subr.mxu0 0.0
    %309 = vmatpush2.msra.mxu0 0.0
    %310 = vmatprep.mubr.f32.mxu0 0.0
    %311 = vmatmul.mubr.f32.gmra.mxu0 %v223
    %v312 = vpop.f32.mrf.mxu0
    %v313 = vadd.f32 %v204, %v312
    %v314 = vpop.f32.mrf.mxu0
    %v315 = vadd.f32 %v208, %v314
    %316 = vmatprep.mubr.f32.mxu0 0.0
    %317 = vmatmul.mubr.f32.gmra.mxu0 %v226
    %v318 = vpop.f32.mrf.mxu0
    %v319 = vadd.f32 %v204, %v318
    %v320 = vpop.f32.mrf.mxu0
    %v321 = vadd.f32 %v208, %v320
    %322 = vmatprep.mubr.f32.mxu0 0.0
    %323 = vmatmul.mubr.f32.gmra.mxu0 %v229
    %v324 = vpop.f32.mrf.mxu0
    %v325 = vadd.f32 %v204, %v324
    %v326 = vpop.f32.mrf.mxu0
    %v327 = vadd.f32 %v208, %v326
    %328 = vmatprep.mubr.f32.mxu0 0.0
    %329 = vmatmul.mubr.f32.gmra.mxu0 %v232
    %v330 = vpop.f32.mrf.mxu0
    %v331 = vadd.f32 %v204, %v330
    %v332 = vpop.f32.mrf.mxu0
    %v333 = vadd.f32 %v208, %v332
    %334 = vmatprep.mubr.f32.mxu0 0.0
    %335 = vmatmul.mubr.f32.gmra.mxu0 %v235
    %v336 = vpop.f32.mrf.mxu0
    %v337 = vadd.f32 %v204, %v336
    %v338 = vpop.f32.mrf.mxu0
    %v339 = vadd.f32 %v208, %v338
    %340 = vmatprep.mubr.f32.mxu0 0.0
    %341 = vmatmul.mubr.f32.gmra.mxu0 %v238
    %v342 = vpop.f32.mrf.mxu0
    %v343 = vadd.f32 %v204, %v342
    %v344 = vpop.f32.mrf.mxu0
    %v345 = vadd.f32 %v208, %v344
    %346 = vmatprep.mubr.f32.mxu0 0.0
    %347 = vmatmul.mubr.f32.gmra.mxu0 %v241
    %v348 = vpop.f32.mrf.mxu0
    %v349 = vadd.f32 %v204, %v348
    %v350 = vpop.f32.mrf.mxu0
    %v351 = vadd.f32 %v208, %v350
    %352 = vmatprep.mubr.f32.mxu0 0.0
    %353 = vmatmul.mubr.f32.gmra.mxu0 %v244
    %v354 = vpop.f32.mrf.mxu0
    %v355 = vadd.f32 %v204, %v354
    %v356 = vpop.f32.mrf.mxu0
    %v357 = vadd.f32 %v208, %v356
    %358 = vdwg.mxu0
    %359 = vmatprep.subr.mxu0 0.0
    %360 = vmatpush1.msra.mxu0 0.0
    %361 = vmatprep.subr.mxu0 0.0
    %362 = vmatpush1.msra.mxu0 0.0
    %363 = vmatprep.subr.mxu0 0.0
    %364 = vmatpush1.msra.mxu0 0.0
    %365 = vmatprep.subr.mxu0 0.0
    %366 = vmatpush1.msra.mxu0 0.0
    %367 = vmatprep.subr.mxu0 0.0
    %368 = vmatpush1.msra.mxu0 0.0
    %369 = vmatprep.subr.mxu0 0.0
    %370 = vmatpush1.msra.mxu0 0.0
    %371 = vmatprep.subr.mxu0 0.0
    %372 = vmatpush1.msra.mxu0 0.0
    %373 = vmatprep.subr.mxu0 0.0
    %374 = vmatpush1.msra.mxu0 0.0
    %375 = vmatprep.subr.mxu0 0.0
    %376 = vmatpush1.msra.mxu0 0.0
    %377 = vmatprep.subr.mxu0 0.0
    %378 = vmatpush1.msra.mxu0 0.0
    %379 = vmatprep.subr.mxu0 0.0
    %380 = vmatpush1.msra.mxu0 0.0
    %381 = vmatprep.subr.mxu0 0.0
    %382 = vmatpush1.msra.mxu0 0.0
    %383 = vmatprep.subr.mxu0 0.0
    %384 = vmatpush1.msra.mxu0 0.0
    %385 = vmatprep.subr.mxu0 0.0
    %386 = vmatpush1.msra.mxu0 0.0
    %387 = vmatprep.subr.mxu0 0.0
    %388 = vmatpush1.msra.mxu0 0.0
    %389 = vmatprep.subr.mxu0 %v198
    %390 = vmatpush1.msra.mxu0 %v197
    %391 = vmatprep.subr.mxu0 0.0
    %392 = vmatpush2.msra.mxu0 0.0
    %393 = vmatprep.subr.mxu0 0.0
    %394 = vmatpush2.msra.mxu0 0.0
    %395 = vmatprep.subr.mxu0 0.0
    %396 = vmatpush2.msra.mxu0 0.0
    %397 = vmatprep.subr.mxu0 0.0
    %398 = vmatpush2.msra.mxu0 0.0
    %399 = vmatprep.subr.mxu0 0.0
    %400 = vmatpush2.msra.mxu0 0.0
    %401 = vmatprep.subr.mxu0 0.0
    %402 = vmatpush2.msra.mxu0 0.0
    %403 = vmatprep.subr.mxu0 0.0
    %404 = vmatpush2.msra.mxu0 0.0
    %405 = vmatprep.subr.mxu0 0.0
    %406 = vmatpush2.msra.mxu0 0.0
    %407 = vmatprep.subr.mxu0 0.0
    %408 = vmatpush2.msra.mxu0 0.0
    %409 = vmatprep.subr.mxu0 0.0
    %410 = vmatpush2.msra.mxu0 0.0
    %411 = vmatprep.subr.mxu0 0.0
    %412 = vmatpush2.msra.mxu0 0.0
    %413 = vmatprep.subr.mxu0 0.0
    %414 = vmatpush2.msra.mxu0 0.0
    %415 = vmatprep.subr.mxu0 0.0
    %416 = vmatpush2.msra.mxu0 0.0
    %417 = vmatprep.subr.mxu0 0.0
    %418 = vmatpush2.msra.mxu0 0.0
    %419 = vmatprep.subr.mxu0 0.0
    %420 = vmatpush2.msra.mxu0 0.0
    %421 = vmatprep.subr.mxu0 0.0
    %422 = vmatpush2.msra.mxu0 0.0
    %423 = vmatprep.mubr.f32.mxu0 0.0
    %424 = vmatmul.mubr.f32.gmra.mxu0 %v223
    %v425 = vpop.f32.mrf.mxu0
    %v426 = vadd.f32 %v212, %v425
    %v427 = vpop.f32.mrf.mxu0
    %v428 = vadd.f32 %v216, %v427
    %429 = vmatprep.mubr.f32.mxu0 0.0
    %430 = vmatmul.mubr.f32.gmra.mxu0 %v226
    %v431 = vpop.f32.mrf.mxu0
    %v432 = vadd.f32 %v212, %v431
    %v433 = vpop.f32.mrf.mxu0
    %v434 = vadd.f32 %v216, %v433
    %435 = vmatprep.mubr.f32.mxu0 0.0
    %436 = vmatmul.mubr.f32.gmra.mxu0 %v229
    %v437 = vpop.f32.mrf.mxu0
    %v438 = vadd.f32 %v212, %v437
    %v439 = vpop.f32.mrf.mxu0
    %v440 = vadd.f32 %v216, %v439
    %441 = vmatprep.mubr.f32.mxu0 0.0
    %442 = vmatmul.mubr.f32.gmra.mxu0 %v232
    %v443 = vpop.f32.mrf.mxu0
    %v444 = vadd.f32 %v212, %v443
    %v445 = vpop.f32.mrf.mxu0
    %v446 = vadd.f32 %v216, %v445
    %447 = vmatprep.mubr.f32.mxu0 0.0
    %448 = vmatmul.mubr.f32.gmra.mxu0 %v235
    %v449 = vpop.f32.mrf.mxu0
    %v450 = vadd.f32 %v212, %v449
    %v451 = vpop.f32.mrf.mxu0
    %v452 = vadd.f32 %v216, %v451
    %453 = vmatprep.mubr.f32.mxu0 0.0
    %454 = vmatmul.mubr.f32.gmra.mxu0 %v238
    %v455 = vpop.f32.mrf.mxu0
    %v456 = vadd.f32 %v212, %v455
    %v457 = vpop.f32.mrf.mxu0
    %v458 = vadd.f32 %v216, %v457
    %459 = vmatprep.mubr.f32.mxu0 0.0
    %460 = vmatmul.mubr.f32.gmra.mxu0 %v241
    %v461 = vpop.f32.mrf.mxu0
    %v462 = vadd.f32 %v212, %v461
    %v463 = vpop.f32.mrf.mxu0
    %v464 = vadd.f32 %v216, %v463
    %465 = vmatprep.mubr.f32.mxu0 0.0
    %466 = vmatmul.mubr.f32.gmra.mxu0 %v244
    %v467 = vpop.f32.mrf.mxu0
    %v468 = vadd.f32 %v212, %v467
    %v469 = vpop.f32.mrf.mxu0
    %v470 = vadd.f32 %v216, %v469
    %471 = vdwg.mxu0
    %v504 = vunpack.c.l.b16 %v69
    %v505 = vunpack.c.h.b16 %v69
    %v506 = vunpack.c.l.b16 %v70
    %v507 = vunpack.c.h.b16 %v70
    %v508 = vunpack.c.l.b16 %v71
    %v509 = vunpack.c.h.b16 %v71
    %v510 = vunpack.c.l.b16 %v72
    %v511 = vunpack.c.h.b16 %v72
    %v512 = vunpack.c.l.b16 %v73
    %v513 = vunpack.c.h.b16 %v73
    %v514 = vunpack.c.l.b16 %v74
    %v515 = vunpack.c.h.b16 %v74
    %v516 = vunpack.c.l.b16 %v75
    %v517 = vunpack.c.h.b16 %v75
    %v518 = vunpack.c.l.b16 %v76
    %v519 = vunpack.c.h.b16 %v76
    %v520 = vunpack.c.l.b16 %v77
    %v521 = vunpack.c.h.b16 %v77
    %v522 = vunpack.c.l.b16 %v78
    %v523 = vunpack.c.h.b16 %v78
    %v524 = vunpack.c.l.b16 %v79
    %v525 = vunpack.c.h.b16 %v79
    %v526 = vunpack.c.l.b16 %v80
    %v527 = vunpack.c.h.b16 %v80
    %v528 = vunpack.c.l.b16 %v81
    %v529 = vunpack.c.h.b16 %v81
    %v530 = vunpack.c.l.b16 %v82
    %v531 = vunpack.c.h.b16 %v82
    %v532 = vunpack.c.l.b16 %v83
    %v533 = vunpack.c.h.b16 %v83
    %v534 = vunpack.c.l.b16 %v84
    %v535 = vunpack.c.h.b16 %v84
    %v536 = vunpack.c.l.b16 %v85
    %v537 = vunpack.c.h.b16 %v85
    %v538 = vunpack.c.l.b16 %v86
    %v539 = vunpack.c.h.b16 %v86
    %v540 = vunpack.c.l.b16 %v87
    %v541 = vunpack.c.h.b16 %v87
    %v542 = vunpack.c.l.b16 %v88
    %v543 = vunpack.c.h.b16 %v88
    %v544 = vunpack.c.l.b16 %v89
    %v545 = vunpack.c.h.b16 %v89
    %v546 = vunpack.c.l.b16 %v90
    %v547 = vunpack.c.h.b16 %v90
    %v548 = vunpack.c.l.b16 %v91
    %v549 = vunpack.c.h.b16 %v91
    %v550 = vunpack.c.l.b16 %v92
    %v551 = vunpack.c.h.b16 %v92
    %v552 = vunpack.c.l.b16 %v93
    %v553 = vunpack.c.h.b16 %v93
    %v554 = vunpack.c.l.b16 %v94
    %v555 = vunpack.c.h.b16 %v94
    %v556 = vunpack.c.l.b16 %v95
    %v557 = vunpack.c.h.b16 %v95
    %v558 = vunpack.c.l.b16 %v96
    %v559 = vunpack.c.h.b16 %v96
    %v560 = vunpack.c.l.b16 %v97
    %v561 = vunpack.c.h.b16 %v97
    %v562 = vunpack.c.l.b16 %v98
    %v563 = vunpack.c.h.b16 %v98
    %v564 = vunpack.c.l.b16 %v99
    %v565 = vunpack.c.h.b16 %v99
    %v566 = vunpack.c.l.b16 %v100
    %v567 = vunpack.c.h.b16 %v100
    %v568 = vpack.c.b16 %v508, %v504
    %v569 = vpack.c.b16 %v509, %v505
    %v570 = vpack.c.b16 %v510, %v506
    %v571 = vpack.c.b16 %v511, %v507
    %v572 = vpack.c.b16 %v516, %v512
    %v573 = vpack.c.b16 %v517, %v513
    %v574 = vpack.c.b16 %v518, %v514
    %v575 = vpack.c.b16 %v519, %v515
    %v576 = vpack.c.b16 %v524, %v520
    %v577 = vpack.c.b16 %v525, %v521
    %v578 = vpack.c.b16 %v526, %v522
    %v579 = vpack.c.b16 %v527, %v523
    %v580 = vpack.c.b16 %v532, %v528
    %v581 = vpack.c.b16 %v533, %v529
    %v582 = vpack.c.b16 %v534, %v530
    %v583 = vpack.c.b16 %v535, %v531
    %v584 = vpack.c.b16 %v540, %v536
    %v585 = vpack.c.b16 %v541, %v537
    %v586 = vpack.c.b16 %v542, %v538
    %v587 = vpack.c.b16 %v543, %v539
    %v588 = vpack.c.b16 %v548, %v544
    %v589 = vpack.c.b16 %v549, %v545
    %v590 = vpack.c.b16 %v550, %v546
    %v591 = vpack.c.b16 %v551, %v547
    %v592 = vpack.c.b16 %v556, %v552
    %v593 = vpack.c.b16 %v557, %v553
    %v594 = vpack.c.b16 %v558, %v554
    %v595 = vpack.c.b16 %v559, %v555
    %v596 = vpack.c.b16 %v564, %v560
    %v597 = vpack.c.b16 %v565, %v561
    %v598 = vpack.c.b16 %v566, %v562
    %v599 = vpack.c.b16 %v567, %v563
    %632 = vmatprep.subr.bf16.mxu0 %v597
    %633 = vmatpush1.bf16.msra.mxu0 %v596
    %634 = vmatprep.subr.bf16.mxu0 %v593
    %635 = vmatpush1.bf16.msra.mxu0 %v592
    %636 = vmatprep.subr.bf16.mxu0 %v589
    %637 = vmatpush1.bf16.msra.mxu0 %v588
    %638 = vmatprep.subr.bf16.mxu0 %v585
    %639 = vmatpush1.bf16.msra.mxu0 %v584
    %640 = vmatprep.subr.bf16.mxu0 %v581
    %641 = vmatpush1.bf16.msra.mxu0 %v580
    %642 = vmatprep.subr.bf16.mxu0 %v577
    %643 = vmatpush1.bf16.msra.mxu0 %v576
    %644 = vmatprep.subr.bf16.mxu0 %v573
    %645 = vmatpush1.bf16.msra.mxu0 %v572
    %646 = vmatprep.subr.bf16.mxu0 %v569
    %647 = vmatpush1.bf16.msra.mxu0 %v568
    %648 = vmatprep.subr.bf16.mxu0 0
    %649 = vmatpush2.bf16.msra.mxu0 0
    %650 = vmatprep.subr.bf16.mxu0 0
    %651 = vmatpush2.bf16.msra.mxu0 0
    %652 = vmatprep.subr.bf16.mxu0 0
    %653 = vmatpush2.bf16.msra.mxu0 0
    %654 = vmatprep.subr.bf16.mxu0 0
    %655 = vmatpush2.bf16.msra.mxu0 0
    %656 = vmatprep.subr.bf16.mxu0 0
    %657 = vmatpush2.bf16.msra.mxu0 0
    %658 = vmatprep.subr.bf16.mxu0 0
    %659 = vmatpush2.bf16.msra.mxu0 0
    %660 = vmatprep.subr.bf16.mxu0 0
    %661 = vmatpush2.bf16.msra.mxu0 0
    %662 = vmatprep.subr.bf16.mxu0 0
    %663 = vmatpush2.bf16.msra.mxu0 0
    %664 = vmatprep.mubr.bf16.mxu0 0
    %665 = vmatmul.mubr.bf16.gmra.mxu0 0
    %v666 = vpop.f32.mrf.mxu0
    %v667 = vadd.f32 0.0, %v666
    %v668 = vpop.f32.mrf.mxu0
    %v669 = vadd.f32 0.0, %v668
    %v670 = vpop.f32.mrf.mxu0
    %v671 = vpop.f32.mrf.mxu0
    %672 = vdwg.mxu0
    %673 = vmatprep.subr.bf16.mxu0 %v599
    %674 = vmatpush1.bf16.msra.mxu0 %v598
    %675 = vmatprep.subr.bf16.mxu0 %v595
    %676 = vmatpush1.bf16.msra.mxu0 %v594
    %677 = vmatprep.subr.bf16.mxu0 %v591
    %678 = vmatpush1.bf16.msra.mxu0 %v590
    %679 = vmatprep.subr.bf16.mxu0 %v587
    %680 = vmatpush1.bf16.msra.mxu0 %v586
    %681 = vmatprep.subr.bf16.mxu0 %v583
    %682 = vmatpush1.bf16.msra.mxu0 %v582
    %683 = vmatprep.subr.bf16.mxu0 %v579
    %684 = vmatpush1.bf16.msra.mxu0 %v578
    %685 = vmatprep.subr.bf16.mxu0 %v575
    %686 = vmatpush1.bf16.msra.mxu0 %v574
    %687 = vmatprep.subr.bf16.mxu0 %v571
    %688 = vmatpush1.bf16.msra.mxu0 %v570
    %689 = vmatprep.subr.bf16.mxu0 0
    %690 = vmatpush2.bf16.msra.mxu0 0
    %691 = vmatprep.subr.bf16.mxu0 0
    %692 = vmatpush2.bf16.msra.mxu0 0
    %693 = vmatprep.subr.bf16.mxu0 0
    %694 = vmatpush2.bf16.msra.mxu0 0
    %695 = vmatprep.subr.bf16.mxu0 0
    %696 = vmatpush2.bf16.msra.mxu0 0
    %697 = vmatprep.subr.bf16.mxu0 0
    %698 = vmatpush2.bf16.msra.mxu0 0
    %699 = vmatprep.subr.bf16.mxu0 0
    %700 = vmatpush2.bf16.msra.mxu0 0
    %701 = vmatprep.subr.bf16.mxu0 0
    %702 = vmatpush2.bf16.msra.mxu0 0
    %703 = vmatprep.subr.bf16.mxu0 0
    %704 = vmatpush2.bf16.msra.mxu0 0
    %705 = vmatprep.mubr.bf16.mxu0 0
    %706 = vmatmul.mubr.bf16.gmra.mxu0 0
    %v707 = vpop.f32.mrf.mxu0
    %v708 = vadd.f32 0.0, %v707
    %v709 = vpop.f32.mrf.mxu0
    %v710 = vadd.f32 0.0, %v709
    %v711 = vpop.f32.mrf.mxu0
    %v712 = vpop.f32.mrf.mxu0
    %713 = vdwg.mxu0
    %v714 = vadd.f32 %v313, %v667
    %v715 = vadd.f32 %v315, %v669
    %v716 = vadd.f32 %v426, %v708
    %v717 = vadd.f32 %v428, %v710
    %v718 = vmul.f32 %v714, 0.5
    %v719 = vtanh.pop %v718
    %v720 = vmul.f32 %v719, 0.5
    %v721 = vadd.f32 %v720, 0.5
    %v722 = vmul.f32 %v715, 0.5
    %v723 = vtanh.pop %v722
    %v724 = vmul.f32 %v723, 0.5
    %v725 = vadd.f32 %v724, 0.5
    %v726 = vtanh.pop %v716
    %v727 = vmul.f32 %v717, 0.5
    %v728 = vtanh.pop %v727
    %v729 = vmul.f32 %v728, 0.5
    %v730 = vadd.f32 %v729, 0.5
    %v731 = vmul.f32 %v725, 0.0
    %v732 = vmul.f32 %v721, %v726
    %v733 = vadd.f32 %v731, %v732
    %v734 = vtanh.pop %v733
    %v735 = vmul.f32 %v730, %v734
    %v736 = vpack.c.bf16 %v735, %v735
    %v769 = vunpack.c.l.b16 %v133
    %v770 = vunpack.c.h.b16 %v133
    %v771 = vunpack.c.l.b16 %v134
    %v772 = vunpack.c.h.b16 %v134
    %v773 = vunpack.c.l.b16 %v135
    %v774 = vunpack.c.h.b16 %v135
    %v775 = vunpack.c.l.b16 %v136
    %v776 = vunpack.c.h.b16 %v136
    %v777 = vunpack.c.l.b16 %v137
    %v778 = vunpack.c.h.b16 %v137
    %v779 = vunpack.c.l.b16 %v138
    %v780 = vunpack.c.h.b16 %v138
    %v781 = vunpack.c.l.b16 %v139
    %v782 = vunpack.c.h.b16 %v139
    %v783 = vunpack.c.l.b16 %v140
    %v784 = vunpack.c.h.b16 %v140
    %v785 = vunpack.c.l.b16 %v141
    %v786 = vunpack.c.h.b16 %v141
    %v787 = vunpack.c.l.b16 %v142
    %v788 = vunpack.c.h.b16 %v142
    %v789 = vunpack.c.l.b16 %v143
    %v790 = vunpack.c.h.b16 %v143
    %v791 = vunpack.c.l.b16 %v144
    %v792 = vunpack.c.h.b16 %v144
    %v793 = vunpack.c.l.b16 %v145
    %v794 = vunpack.c.h.b16 %v145
    %v795 = vunpack.c.l.b16 %v146
    %v796 = vunpack.c.h.b16 %v146
    %v797 = vunpack.c.l.b16 %v147
    %v798 = vunpack.c.h.b16 %v147
    %v799 = vunpack.c.l.b16 %v148
    %v800 = vunpack.c.h.b16 %v148
    %v801 = vunpack.c.l.b16 %v149
    %v802 = vunpack.c.h.b16 %v149
    %v803 = vunpack.c.l.b16 %v150
    %v804 = vunpack.c.h.b16 %v150
    %v805 = vunpack.c.l.b16 %v151
    %v806 = vunpack.c.h.b16 %v151
    %v807 = vunpack.c.l.b16 %v152
    %v808 = vunpack.c.h.b16 %v152
    %v809 = vunpack.c.l.b16 %v153
    %v810 = vunpack.c.h.b16 %v153
    %v811 = vunpack.c.l.b16 %v154
    %v812 = vunpack.c.h.b16 %v154
    %v813 = vunpack.c.l.b16 %v155
    %v814 = vunpack.c.h.b16 %v155
    %v815 = vunpack.c.l.b16 %v156
    %v816 = vunpack.c.h.b16 %v156
    %v817 = vunpack.c.l.b16 %v157
    %v818 = vunpack.c.h.b16 %v157
    %v819 = vunpack.c.l.b16 %v158
    %v820 = vunpack.c.h.b16 %v158
    %v821 = vunpack.c.l.b16 %v159
    %v822 = vunpack.c.h.b16 %v159
    %v823 = vunpack.c.l.b16 %v160
    %v824 = vunpack.c.h.b16 %v160
    %v825 = vunpack.c.l.b16 %v161
    %v826 = vunpack.c.h.b16 %v161
    %v827 = vunpack.c.l.b16 %v162
    %v828 = vunpack.c.h.b16 %v162
    %v829 = vunpack.c.l.b16 %v163
    %v830 = vunpack.c.h.b16 %v163
    %v831 = vunpack.c.l.b16 %v164
    %v832 = vunpack.c.h.b16 %v164
    %v833 = vpack.c.b16 %v773, %v769
    %v834 = vpack.c.b16 %v774, %v770
    %v835 = vpack.c.b16 %v775, %v771
    %v836 = vpack.c.b16 %v776, %v772
    %v837 = vpack.c.b16 %v781, %v777
    %v838 = vpack.c.b16 %v782, %v778
    %v839 = vpack.c.b16 %v783, %v779
    %v840 = vpack.c.b16 %v784, %v780
    %v841 = vpack.c.b16 %v789, %v785
    %v842 = vpack.c.b16 %v790, %v786
    %v843 = vpack.c.b16 %v791, %v787
    %v844 = vpack.c.b16 %v792, %v788
    %v845 = vpack.c.b16 %v797, %v793
    %v846 = vpack.c.b16 %v798, %v794
    %v847 = vpack.c.b16 %v799, %v795
    %v848 = vpack.c.b16 %v800, %v796
    %v849 = vpack.c.b16 %v805, %v801
    %v850 = vpack.c.b16 %v806, %v802
    %v851 = vpack.c.b16 %v807, %v803
    %v852 = vpack.c.b16 %v808, %v804
    %v853 = vpack.c.b16 %v813, %v809
    %v854 = vpack.c.b16 %v814, %v810
    %v855 = vpack.c.b16 %v815, %v811
    %v856 = vpack.c.b16 %v816, %v812
    %v857 = vpack.c.b16 %v821, %v817
    %v858 = vpack.c.b16 %v822, %v818
    %v859 = vpack.c.b16 %v823, %v819
    %v860 = vpack.c.b16 %v824, %v820
    %v861 = vpack.c.b16 %v829, %v825
    %v862 = vpack.c.b16 %v830, %v826
    %v863 = vpack.c.b16 %v831, %v827
    %v864 = vpack.c.b16 %v832, %v828
    %897 = vmatprep.subr.bf16.mxu0 %v862
    %898 = vmatpush1.bf16.msra.mxu0 %v861
    %899 = vmatprep.subr.bf16.mxu0 %v858
    %900 = vmatpush1.bf16.msra.mxu0 %v857
    %901 = vmatprep.subr.bf16.mxu0 %v854
    %902 = vmatpush1.bf16.msra.mxu0 %v853
    %903 = vmatprep.subr.bf16.mxu0 %v850
    %904 = vmatpush1.bf16.msra.mxu0 %v849
    %905 = vmatprep.subr.bf16.mxu0 %v846
    %906 = vmatpush1.bf16.msra.mxu0 %v845
    %907 = vmatprep.subr.bf16.mxu0 %v842
    %908 = vmatpush1.bf16.msra.mxu0 %v841
    %909 = vmatprep.subr.bf16.mxu0 %v838
    %910 = vmatpush1.bf16.msra.mxu0 %v837
    %911 = vmatprep.subr.bf16.mxu0 %v834
    %912 = vmatpush1.bf16.msra.mxu0 %v833
    %913 = vmatprep.subr.bf16.mxu0 0
    %914 = vmatpush2.bf16.msra.mxu0 0
    %915 = vmatprep.subr.bf16.mxu0 0
    %916 = vmatpush2.bf16.msra.mxu0 0
    %917 = vmatprep.subr.bf16.mxu0 0
    %918 = vmatpush2.bf16.msra.mxu0 0
    %919 = vmatprep.subr.bf16.mxu0 0
    %920 = vmatpush2.bf16.msra.mxu0 0
    %921 = vmatprep.subr.bf16.mxu0 0
    %922 = vmatpush2.bf16.msra.mxu0 0
    %923 = vmatprep.subr.bf16.mxu0 0
    %924 = vmatpush2.bf16.msra.mxu0 0
    %925 = vmatprep.subr.bf16.mxu0 0
    %926 = vmatpush2.bf16.msra.mxu0 0
    %927 = vmatprep.subr.bf16.mxu0 0
    %928 = vmatpush2.bf16.msra.mxu0 0
    %929 = vmatprep.mubr.bf16.mxu0 0
    %930 = vmatmul.mubr.bf16.gmra.mxu0 0
    %v931 = vpop.f32.mrf.mxu0
    %v932 = vadd.f32 0.0, %v931
    %v933 = vpop.f32.mrf.mxu0
    %v934 = vadd.f32 0.0, %v933
    %v935 = vpop.f32.mrf.mxu0
    %v936 = vpop.f32.mrf.mxu0
    %937 = vdwg.mxu0
    %938 = vmatprep.subr.bf16.mxu0 %v864
    %939 = vmatpush1.bf16.msra.mxu0 %v863
    %940 = vmatprep.subr.bf16.mxu0 %v860
    %941 = vmatpush1.bf16.msra.mxu0 %v859
    %942 = vmatprep.subr.bf16.mxu0 %v856
    %943 = vmatpush1.bf16.msra.mxu0 %v855
    %944 = vmatprep.subr.bf16.mxu0 %v852
    %945 = vmatpush1.bf16.msra.mxu0 %v851
    %946 = vmatprep.subr.bf16.mxu0 %v848
    %947 = vmatpush1.bf16.msra.mxu0 %v847
    %948 = vmatprep.subr.bf16.mxu0 %v844
    %949 = vmatpush1.bf16.msra.mxu0 %v843
    %950 = vmatprep.subr.bf16.mxu0 %v840
    %951 = vmatpush1.bf16.msra.mxu0 %v839
    %952 = vmatprep.subr.bf16.mxu0 %v836
    %953 = vmatpush1.bf16.msra.mxu0 %v835
    %954 = vmatprep.subr.bf16.mxu0 0
    %955 = vmatpush2.bf16.msra.mxu0 0
    %956 = vmatprep.subr.bf16.mxu0 0
    %957 = vmatpush2.bf16.msra.mxu0 0
    %958 = vmatprep.subr.bf16.mxu0 0
    %959 = vmatpush2.bf16.msra.mxu0 0
    %960 = vmatprep.subr.bf16.mxu0 0
    %961 = vmatpush2.bf16.msra.mxu0 0
    %962 = vmatprep.subr.bf16.mxu0 0
    %963 = vmatpush2.bf16.msra.mxu0 0
    %964 = vmatprep.subr.bf16.mxu0 0
    %965 = vmatpush2.bf16.msra.mxu0 0
    %966 = vmatprep.subr.bf16.mxu0 0
    %967 = vmatpush2.bf16.msra.mxu0 0
    %968 = vmatprep.subr.bf16.mxu0 0
    %969 = vmatpush2.bf16.msra.mxu0 0
    %970 = vmatprep.mubr.bf16.mxu0 0
    %971 = vmatmul.mubr.bf16.gmra.mxu0 0
    %v972 = vpop.f32.mrf.mxu0
    %v973 = vadd.f32 0.0, %v972
    %v974 = vpop.f32.mrf.mxu0
    %v975 = vadd.f32 0.0, %v974
    %v976 = vpop.f32.mrf.mxu0
    %v977 = vpop.f32.mrf.mxu0
    %978 = vdwg.mxu0
    %v1011 = vunpack.c.l.b16 %v101
    %v1012 = vunpack.c.h.b16 %v101
    %v1013 = vunpack.c.l.b16 %v102
    %v1014 = vunpack.c.h.b16 %v102
    %v1015 = vunpack.c.l.b16 %v103
    %v1016 = vunpack.c.h.b16 %v103
    %v1017 = vunpack.c.l.b16 %v104
    %v1018 = vunpack.c.h.b16 %v104
    %v1019 = vunpack.c.l.b16 %v105
    %v1020 = vunpack.c.h.b16 %v105
    %v1021 = vunpack.c.l.b16 %v106
    %v1022 = vunpack.c.h.b16 %v106
    %v1023 = vunpack.c.l.b16 %v107
    %v1024 = vunpack.c.h.b16 %v107
    %v1025 = vunpack.c.l.b16 %v108
    %v1026 = vunpack.c.h.b16 %v108
    %v1027 = vunpack.c.l.b16 %v109
    %v1028 = vunpack.c.h.b16 %v109
    %v1029 = vunpack.c.l.b16 %v110
    %v1030 = vunpack.c.h.b16 %v110
    %v1031 = vunpack.c.l.b16 %v111
    %v1032 = vunpack.c.h.b16 %v111
    %v1033 = vunpack.c.l.b16 %v112
    %v1034 = vunpack.c.h.b16 %v112
    %v1035 = vunpack.c.l.b16 %v113
    %v1036 = vunpack.c.h.b16 %v113
    %v1037 = vunpack.c.l.b16 %v114
    %v1038 = vunpack.c.h.b16 %v114
    %v1039 = vunpack.c.l.b16 %v115
    %v1040 = vunpack.c.h.b16 %v115
    %v1041 = vunpack.c.l.b16 %v116
    %v1042 = vunpack.c.h.b16 %v116
    %v1043 = vunpack.c.l.b16 %v117
    %v1044 = vunpack.c.h.b16 %v117
    %v1045 = vunpack.c.l.b16 %v118
    %v1046 = vunpack.c.h.b16 %v118
    %v1047 = vunpack.c.l.b16 %v119
    %v1048 = vunpack.c.h.b16 %v119
    %v1049 = vunpack.c.l.b16 %v120
    %v1050 = vunpack.c.h.b16 %v120
    %v1051 = vunpack.c.l.b16 %v121
    %v1052 = vunpack.c.h.b16 %v121
    %v1053 = vunpack.c.l.b16 %v122
    %v1054 = vunpack.c.h.b16 %v122
    %v1055 = vunpack.c.l.b16 %v123
    %v1056 = vunpack.c.h.b16 %v123
    %v1057 = vunpack.c.l.b16 %v124
    %v1058 = vunpack.c.h.b16 %v124
    %v1059 = vunpack.c.l.b16 %v125
    %v1060 = vunpack.c.h.b16 %v125
    %v1061 = vunpack.c.l.b16 %v126
    %v1062 = vunpack.c.h.b16 %v126
    %v1063 = vunpack.c.l.b16 %v127
    %v1064 = vunpack.c.h.b16 %v127
    %v1065 = vunpack.c.l.b16 %v128
    %v1066 = vunpack.c.h.b16 %v128
    %v1067 = vunpack.c.l.b16 %v129
    %v1068 = vunpack.c.h.b16 %v129
    %v1069 = vunpack.c.l.b16 %v130
    %v1070 = vunpack.c.h.b16 %v130
    %v1071 = vunpack.c.l.b16 %v131
    %v1072 = vunpack.c.h.b16 %v131
    %v1073 = vunpack.c.l.b16 %v132
    %v1074 = vunpack.c.h.b16 %v132
    %v1075 = vpack.c.b16 %v1015, %v1011
    %v1076 = vpack.c.b16 %v1016, %v1012
    %v1077 = vpack.c.b16 %v1017, %v1013
    %v1078 = vpack.c.b16 %v1018, %v1014
    %v1079 = vpack.c.b16 %v1023, %v1019
    %v1080 = vpack.c.b16 %v1024, %v1020
    %v1081 = vpack.c.b16 %v1025, %v1021
    %v1082 = vpack.c.b16 %v1026, %v1022
    %v1083 = vpack.c.b16 %v1031, %v1027
    %v1084 = vpack.c.b16 %v1032, %v1028
    %v1085 = vpack.c.b16 %v1033, %v1029
    %v1086 = vpack.c.b16 %v1034, %v1030
    %v1087 = vpack.c.b16 %v1039, %v1035
    %v1088 = vpack.c.b16 %v1040, %v1036
    %v1089 = vpack.c.b16 %v1041, %v1037
    %v1090 = vpack.c.b16 %v1042, %v1038
    %v1091 = vpack.c.b16 %v1047, %v1043
    %v1092 = vpack.c.b16 %v1048, %v1044
    %v1093 = vpack.c.b16 %v1049, %v1045
    %v1094 = vpack.c.b16 %v1050, %v1046
    %v1095 = vpack.c.b16 %v1055, %v1051
    %v1096 = vpack.c.b16 %v1056, %v1052
    %v1097 = vpack.c.b16 %v1057, %v1053
    %v1098 = vpack.c.b16 %v1058, %v1054
    %v1099 = vpack.c.b16 %v1063, %v1059
    %v1100 = vpack.c.b16 %v1064, %v1060
    %v1101 = vpack.c.b16 %v1065, %v1061
    %v1102 = vpack.c.b16 %v1066, %v1062
    %v1103 = vpack.c.b16 %v1071, %v1067
    %v1104 = vpack.c.b16 %v1072, %v1068
    %v1105 = vpack.c.b16 %v1073, %v1069
    %v1106 = vpack.c.b16 %v1074, %v1070
    %1139 = vmatprep.subr.bf16.mxu0 %v1104
    %1140 = vmatpush1.bf16.msra.mxu0 %v1103
    %1141 = vmatprep.subr.bf16.mxu0 %v1100
    %1142 = vmatpush1.bf16.msra.mxu0 %v1099
    %1143 = vmatprep.subr.bf16.mxu0 %v1096
    %1144 = vmatpush1.bf16.msra.mxu0 %v1095
    %1145 = vmatprep.subr.bf16.mxu0 %v1092
    %1146 = vmatpush1.bf16.msra.mxu0 %v1091
    %1147 = vmatprep.subr.bf16.mxu0 %v1088
    %1148 = vmatpush1.bf16.msra.mxu0 %v1087
    %1149 = vmatprep.subr.bf16.mxu0 %v1084
    %1150 = vmatpush1.bf16.msra.mxu0 %v1083
    %1151 = vmatprep.subr.bf16.mxu0 %v1080
    %1152 = vmatpush1.bf16.msra.mxu0 %v1079
    %1153 = vmatprep.subr.bf16.mxu0 %v1076
    %1154 = vmatpush1.bf16.msra.mxu0 %v1075
    %1155 = vmatprep.subr.bf16.mxu0 0
    %1156 = vmatpush2.bf16.msra.mxu0 0
    %1157 = vmatprep.subr.bf16.mxu0 0
    %1158 = vmatpush2.bf16.msra.mxu0 0
    %1159 = vmatprep.subr.bf16.mxu0 0
    %1160 = vmatpush2.bf16.msra.mxu0 0
    %1161 = vmatprep.subr.bf16.mxu0 0
    %1162 = vmatpush2.bf16.msra.mxu0 0
    %1163 = vmatprep.subr.bf16.mxu0 0
    %1164 = vmatpush2.bf16.msra.mxu0 0
    %1165 = vmatprep.subr.bf16.mxu0 0
    %1166 = vmatpush2.bf16.msra.mxu0 0
    %1167 = vmatprep.subr.bf16.mxu0 0
    %1168 = vmatpush2.bf16.msra.mxu0 0
    %1169 = vmatprep.subr.bf16.mxu0 0
    %1170 = vmatpush2.bf16.msra.mxu0 0
    %1171 = vmatprep.mubr.bf16.mxu0 0
    %1172 = vmatmul.mubr.bf16.gmra.mxu0 %v736
    %v1173 = vpop.f32.mrf.mxu0
    %v1174 = vadd.f32 %v932, %v1173
    %v1175 = vpop.f32.mrf.mxu0
    %v1176 = vadd.f32 %v934, %v1175
    %v1177 = vpop.f32.mrf.mxu0
    %v1178 = vpop.f32.mrf.mxu0
    %1179 = vdwg.mxu0
    %1180 = vmatprep.subr.bf16.mxu0 %v1106
    %1181 = vmatpush1.bf16.msra.mxu0 %v1105
    %1182 = vmatprep.subr.bf16.mxu0 %v1102
    %1183 = vmatpush1.bf16.msra.mxu0 %v1101
    %1184 = vmatprep.subr.bf16.mxu0 %v1098
    %1185 = vmatpush1.bf16.msra.mxu0 %v1097
    %1186 = vmatprep.subr.bf16.mxu0 %v1094
    %1187 = vmatpush1.bf16.msra.mxu0 %v1093
    %1188 = vmatprep.subr.bf16.mxu0 %v1090
    %1189 = vmatpush1.bf16.msra.mxu0 %v1089
    %1190 = vmatprep.subr.bf16.mxu0 %v1086
    %1191 = vmatpush1.bf16.msra.mxu0 %v1085
    %1192 = vmatprep.subr.bf16.mxu0 %v1082
    %1193 = vmatpush1.bf16.msra.mxu0 %v1081
    %1194 = vmatprep.subr.bf16.mxu0 %v1078
    %1195 = vmatpush1.bf16.msra.mxu0 %v1077
    %1196 = vmatprep.subr.bf16.mxu0 0
    %1197 = vmatpush2.bf16.msra.mxu0 0
    %1198 = vmatprep.subr.bf16.mxu0 0
    %1199 = vmatpush2.bf16.msra.mxu0 0
    %1200 = vmatprep.subr.bf16.mxu0 0
    %1201 = vmatpush2.bf16.msra.mxu0 0
    %1202 = vmatprep.subr.bf16.mxu0 0
    %1203 = vmatpush2.bf16.msra.mxu0 0
    %1204 = vmatprep.subr.bf16.mxu0 0
    %1205 = vmatpush2.bf16.msra.mxu0 0
    %1206 = vmatprep.subr.bf16.mxu0 0
    %1207 = vmatpush2.bf16.msra.mxu0 0
    %1208 = vmatprep.subr.bf16.mxu0 0
    %1209 = vmatpush2.bf16.msra.mxu0 0
    %1210 = vmatprep.subr.bf16.mxu0 0
    %1211 = vmatpush2.bf16.msra.mxu0 0
    %1212 = vmatprep.mubr.bf16.mxu0 0
    %1213 = vmatmul.mubr.bf16.gmra.mxu0 %v736
    %v1214 = vpop.f32.mrf.mxu0
    %v1215 = vadd.f32 %v973, %v1214
    %v1216 = vpop.f32.mrf.mxu0
    %v1217 = vadd.f32 %v975, %v1216
    %v1218 = vpop.f32.mrf.mxu0
    %v1219 = vpop.f32.mrf.mxu0
    %1220 = vdwg.mxu0
    %v1221 = vadd.f32 %v1174, %v170
    %v1222 = vadd.f32 %v1176, %v174
    %v1223 = vadd.f32 %v1215, %v178
    %v1224 = vadd.f32 %v1217, %v182
    %v1225 = vmul.f32 %v1221, 0.5
    %v1226 = vtanh.pop %v1225
    %v1227 = vmul.f32 %v1226, 0.5
    %v1228 = vadd.f32 %v1227, 0.5
    %v1229 = vmul.f32 %v1222, 0.5
    %v1230 = vtanh.pop %v1229
    %v1231 = vmul.f32 %v1230, 0.5
    %v1232 = vadd.f32 %v1231, 0.5
    %v1233 = vtanh.pop %v1223
    %v1234 = vmul.f32 %v1224, 0.5
    %v1235 = vtanh.pop %v1234
    %v1236 = vmul.f32 %v1235, 0.5
    %v1237 = vadd.f32 %v1236, 0.5
    %v1238 = vmul.f32 %v1232, 0.0
    %v1239 = vmul.f32 %v1228, %v1233
    %v1240 = vadd.f32 %v1238, %v1239
    %v1241 = vtanh.pop %v1240
    %v1242 = vmul.f32 %v1237, %v1241
    %v1243 = vpack.c.bf16 %v1242, %v1242
    %1244 = vmatprep.subr.bf16.mxu0 %v597
    %1245 = vmatpush1.bf16.msra.mxu0 %v596
    %1246 = vmatprep.subr.bf16.mxu0 %v593
    %1247 = vmatpush1.bf16.msra.mxu0 %v592
    %1248 = vmatprep.subr.bf16.mxu0 %v589
    %1249 = vmatpush1.bf16.msra.mxu0 %v588
    %1250 = vmatprep.subr.bf16.mxu0 %v585
    %1251 = vmatpush1.bf16.msra.mxu0 %v584
    %1252 = vmatprep.subr.bf16.mxu0 %v581
    %1253 = vmatpush1.bf16.msra.mxu0 %v580
    %1254 = vmatprep.subr.bf16.mxu0 %v577
    %1255 = vmatpush1.bf16.msra.mxu0 %v576
    %1256 = vmatprep.subr.bf16.mxu0 %v573
    %1257 = vmatpush1.bf16.msra.mxu0 %v572
    %1258 = vmatprep.subr.bf16.mxu0 %v569
    %1259 = vmatpush1.bf16.msra.mxu0 %v568
    %1260 = vmatprep.subr.bf16.mxu0 0
    %1261 = vmatpush2.bf16.msra.mxu0 0
    %1262 = vmatprep.subr.bf16.mxu0 0
    %1263 = vmatpush2.bf16.msra.mxu0 0
    %1264 = vmatprep.subr.bf16.mxu0 0
    %1265 = vmatpush2.bf16.msra.mxu0 0
    %1266 = vmatprep.subr.bf16.mxu0 0
    %1267 = vmatpush2.bf16.msra.mxu0 0
    %1268 = vmatprep.subr.bf16.mxu0 0
    %1269 = vmatpush2.bf16.msra.mxu0 0
    %1270 = vmatprep.subr.bf16.mxu0 0
    %1271 = vmatpush2.bf16.msra.mxu0 0
    %1272 = vmatprep.subr.bf16.mxu0 0
    %1273 = vmatpush2.bf16.msra.mxu0 0
    %1274 = vmatprep.subr.bf16.mxu0 0
    %1275 = vmatpush2.bf16.msra.mxu0 0
    %1276 = vmatprep.mubr.bf16.mxu0 0
    %1277 = vmatmul.mubr.bf16.gmra.mxu0 %v736
    %v1278 = vpop.f32.mrf.mxu0
    %v1279 = vadd.f32 0.0, %v1278
    %v1280 = vpop.f32.mrf.mxu0
    %v1281 = vadd.f32 0.0, %v1280
    %v1282 = vpop.f32.mrf.mxu0
    %v1283 = vpop.f32.mrf.mxu0
    %1284 = vdwg.mxu0
    %1285 = vmatprep.subr.bf16.mxu0 %v599
    %1286 = vmatpush1.bf16.msra.mxu0 %v598
    %1287 = vmatprep.subr.bf16.mxu0 %v595
    %1288 = vmatpush1.bf16.msra.mxu0 %v594
    %1289 = vmatprep.subr.bf16.mxu0 %v591
    %1290 = vmatpush1.bf16.msra.mxu0 %v590
    %1291 = vmatprep.subr.bf16.mxu0 %v587
    %1292 = vmatpush1.bf16.msra.mxu0 %v586
    %1293 = vmatprep.subr.bf16.mxu0 %v583
    %1294 = vmatpush1.bf16.msra.mxu0 %v582
    %1295 = vmatprep.subr.bf16.mxu0 %v579
    %1296 = vmatpush1.bf16.msra.mxu0 %v578
    %1297 = vmatprep.subr.bf16.mxu0 %v575
    %1298 = vmatpush1.bf16.msra.mxu0 %v574
    %1299 = vmatprep.subr.bf16.mxu0 %v571
    %1300 = vmatpush1.bf16.msra.mxu0 %v570
    %1301 = vmatprep.subr.bf16.mxu0 0
    %1302 = vmatpush2.bf16.msra.mxu0 0
    %1303 = vmatprep.subr.bf16.mxu0 0
    %1304 = vmatpush2.bf16.msra.mxu0 0
    %1305 = vmatprep.subr.bf16.mxu0 0
    %1306 = vmatpush2.bf16.msra.mxu0 0
    %1307 = vmatprep.subr.bf16.mxu0 0
    %1308 = vmatpush2.bf16.msra.mxu0 0
    %1309 = vmatprep.subr.bf16.mxu0 0
    %1310 = vmatpush2.bf16.msra.mxu0 0
    %1311 = vmatprep.subr.bf16.mxu0 0
    %1312 = vmatpush2.bf16.msra.mxu0 0
    %1313 = vmatprep.subr.bf16.mxu0 0
    %1314 = vmatpush2.bf16.msra.mxu0 0
    %1315 = vmatprep.subr.bf16.mxu0 0
    %1316 = vmatpush2.bf16.msra.mxu0 0
    %1317 = vmatprep.mubr.bf16.mxu0 0
    %1318 = vmatmul.mubr.bf16.gmra.mxu0 %v736
    %v1319 = vpop.f32.mrf.mxu0
    %v1320 = vadd.f32 0.0, %v1319
    %v1321 = vpop.f32.mrf.mxu0
    %v1322 = vadd.f32 0.0, %v1321
    %v1323 = vpop.f32.mrf.mxu0
    %v1324 = vpop.f32.mrf.mxu0
    %1325 = vdwg.mxu0
    %v1326 = vadd.f32 %v319, %v1279
    %v1327 = vadd.f32 %v321, %v1281
    %v1328 = vadd.f32 %v432, %v1320
    %v1329 = vadd.f32 %v434, %v1322
    %v1330 = vmul.f32 %v1326, 0.5
    %v1331 = vtanh.pop %v1330
    %v1332 = vmul.f32 %v1331, 0.5
    %v1333 = vadd.f32 %v1332, 0.5
    %v1334 = vmul.f32 %v1327, 0.5
    %v1335 = vtanh.pop %v1334
    %v1336 = vmul.f32 %v1335, 0.5
    %v1337 = vadd.f32 %v1336, 0.5
    %v1338 = vtanh.pop %v1328
    %v1339 = vmul.f32 %v1329, 0.5
    %v1340 = vtanh.pop %v1339
    %v1341 = vmul.f32 %v1340, 0.5
    %v1342 = vadd.f32 %v1341, 0.5
    %v1343 = vmul.f32 %v1337, %v733
    %v1344 = vmul.f32 %v1333, %v1338
    %v1345 = vadd.f32 %v1343, %v1344
    %v1346 = vtanh.pop %v1345
    %v1347 = vmul.f32 %v1342, %v1346
    %v1348 = vpack.c.bf16 %v1347, %v1347
    %1349 = vmatprep.subr.bf16.mxu0 %v862
    %1350 = vmatpush1.bf16.msra.mxu0 %v861
    %1351 = vmatprep.subr.bf16.mxu0 %v858
    %1352 = vmatpush1.bf16.msra.mxu0 %v857
    %1353 = vmatprep.subr.bf16.mxu0 %v854
    %1354 = vmatpush1.bf16.msra.mxu0 %v853
    %1355 = vmatprep.subr.bf16.mxu0 %v850
    %1356 = vmatpush1.bf16.msra.mxu0 %v849
    %1357 = vmatprep.subr.bf16.mxu0 %v846
    %1358 = vmatpush1.bf16.msra.mxu0 %v845
    %1359 = vmatprep.subr.bf16.mxu0 %v842
    %1360 = vmatpush1.bf16.msra.mxu0 %v841
    %1361 = vmatprep.subr.bf16.mxu0 %v838
    %1362 = vmatpush1.bf16.msra.mxu0 %v837
    %1363 = vmatprep.subr.bf16.mxu0 %v834
    %1364 = vmatpush1.bf16.msra.mxu0 %v833
    %1365 = vmatprep.subr.bf16.mxu0 0
    %1366 = vmatpush2.bf16.msra.mxu0 0
    %1367 = vmatprep.subr.bf16.mxu0 0
    %1368 = vmatpush2.bf16.msra.mxu0 0
    %1369 = vmatprep.subr.bf16.mxu0 0
    %1370 = vmatpush2.bf16.msra.mxu0 0
    %1371 = vmatprep.subr.bf16.mxu0 0
    %1372 = vmatpush2.bf16.msra.mxu0 0
    %1373 = vmatprep.subr.bf16.mxu0 0
    %1374 = vmatpush2.bf16.msra.mxu0 0
    %1375 = vmatprep.subr.bf16.mxu0 0
    %1376 = vmatpush2.bf16.msra.mxu0 0
    %1377 = vmatprep.subr.bf16.mxu0 0
    %1378 = vmatpush2.bf16.msra.mxu0 0
    %1379 = vmatprep.subr.bf16.mxu0 0
    %1380 = vmatpush2.bf16.msra.mxu0 0
    %1381 = vmatprep.mubr.bf16.mxu0 0
    %1382 = vmatmul.mubr.bf16.gmra.mxu0 %v1243
    %v1383 = vpop.f32.mrf.mxu0
    %v1384 = vadd.f32 0.0, %v1383
    %v1385 = vpop.f32.mrf.mxu0
    %v1386 = vadd.f32 0.0, %v1385
    %v1387 = vpop.f32.mrf.mxu0
    %v1388 = vpop.f32.mrf.mxu0
    %1389 = vdwg.mxu0
    %1390 = vmatprep.subr.bf16.mxu0 %v864
    %1391 = vmatpush1.bf16.msra.mxu0 %v863
    %1392 = vmatprep.subr.bf16.mxu0 %v860
    %1393 = vmatpush1.bf16.msra.mxu0 %v859
    %1394 = vmatprep.subr.bf16.mxu0 %v856
    %1395 = vmatpush1.bf16.msra.mxu0 %v855
    %1396 = vmatprep.subr.bf16.mxu0 %v852
    %1397 = vmatpush1.bf16.msra.mxu0 %v851
    %1398 = vmatprep.subr.bf16.mxu0 %v848
    %1399 = vmatpush1.bf16.msra.mxu0 %v847
    %1400 = vmatprep.subr.bf16.mxu0 %v844
    %1401 = vmatpush1.bf16.msra.mxu0 %v843
    %1402 = vmatprep.subr.bf16.mxu0 %v840
    %1403 = vmatpush1.bf16.msra.mxu0 %v839
    %1404 = vmatprep.subr.bf16.mxu0 %v836
    %1405 = vmatpush1.bf16.msra.mxu0 %v835
    %1406 = vmatprep.subr.bf16.mxu0 0
    %1407 = vmatpush2.bf16.msra.mxu0 0
    %1408 = vmatprep.subr.bf16.mxu0 0
    %1409 = vmatpush2.bf16.msra.mxu0 0
    %1410 = vmatprep.subr.bf16.mxu0 0
    %1411 = vmatpush2.bf16.msra.mxu0 0
    %1412 = vmatprep.subr.bf16.mxu0 0
    %1413 = vmatpush2.bf16.msra.mxu0 0
    %1414 = vmatprep.subr.bf16.mxu0 0
    %1415 = vmatpush2.bf16.msra.mxu0 0
    %1416 = vmatprep.subr.bf16.mxu0 0
    %1417 = vmatpush2.bf16.msra.mxu0 0
    %1418 = vmatprep.subr.bf16.mxu0 0
    %1419 = vmatpush2.bf16.msra.mxu0 0
    %1420 = vmatprep.subr.bf16.mxu0 0
    %1421 = vmatpush2.bf16.msra.mxu0 0
    %1422 = vmatprep.mubr.bf16.mxu0 0
    %1423 = vmatmul.mubr.bf16.gmra.mxu0 %v1243
    %v1424 = vpop.f32.mrf.mxu0
    %v1425 = vadd.f32 0.0, %v1424
    %v1426 = vpop.f32.mrf.mxu0
    %v1427 = vadd.f32 0.0, %v1426
    %v1428 = vpop.f32.mrf.mxu0
    %v1429 = vpop.f32.mrf.mxu0
    %1430 = vdwg.mxu0
    %1431 = vmatprep.subr.bf16.mxu0 %v1104
    %1432 = vmatpush1.bf16.msra.mxu0 %v1103
    %1433 = vmatprep.subr.bf16.mxu0 %v1100
    %1434 = vmatpush1.bf16.msra.mxu0 %v1099
    %1435 = vmatprep.subr.bf16.mxu0 %v1096
    %1436 = vmatpush1.bf16.msra.mxu0 %v1095
    %1437 = vmatprep.subr.bf16.mxu0 %v1092
    %1438 = vmatpush1.bf16.msra.mxu0 %v1091
    %1439 = vmatprep.subr.bf16.mxu0 %v1088
    %1440 = vmatpush1.bf16.msra.mxu0 %v1087
    %1441 = vmatprep.subr.bf16.mxu0 %v1084
    %1442 = vmatpush1.bf16.msra.mxu0 %v1083
    %1443 = vmatprep.subr.bf16.mxu0 %v1080
    %1444 = vmatpush1.bf16.msra.mxu0 %v1079
    %1445 = vmatprep.subr.bf16.mxu0 %v1076
    %1446 = vmatpush1.bf16.msra.mxu0 %v1075
    %1447 = vmatprep.subr.bf16.mxu0 0
    %1448 = vmatpush2.bf16.msra.mxu0 0
    %1449 = vmatprep.subr.bf16.mxu0 0
    %1450 = vmatpush2.bf16.msra.mxu0 0
    %1451 = vmatprep.subr.bf16.mxu0 0
    %1452 = vmatpush2.bf16.msra.mxu0 0
    %1453 = vmatprep.subr.bf16.mxu0 0
    %1454 = vmatpush2.bf16.msra.mxu0 0
    %1455 = vmatprep.subr.bf16.mxu0 0
    %1456 = vmatpush2.bf16.msra.mxu0 0
    %1457 = vmatprep.subr.bf16.mxu0 0
    %1458 = vmatpush2.bf16.msra.mxu0 0
    %1459 = vmatprep.subr.bf16.mxu0 0
    %1460 = vmatpush2.bf16.msra.mxu0 0
    %1461 = vmatprep.subr.bf16.mxu0 0
    %1462 = vmatpush2.bf16.msra.mxu0 0
    %1463 = vmatprep.mubr.bf16.mxu0 0
    %1464 = vmatmul.mubr.bf16.gmra.mxu0 %v1348
    %v1465 = vpop.f32.mrf.mxu0
    %v1466 = vadd.f32 %v1384, %v1465
    %v1467 = vpop.f32.mrf.mxu0
    %v1468 = vadd.f32 %v1386, %v1467
    %v1469 = vpop.f32.mrf.mxu0
    %v1470 = vpop.f32.mrf.mxu0
    %1471 = vdwg.mxu0
    %1472 = vmatprep.subr.bf16.mxu0 %v1106
    %1473 = vmatpush1.bf16.msra.mxu0 %v1105
    %1474 = vmatprep.subr.bf16.mxu0 %v1102
    %1475 = vmatpush1.bf16.msra.mxu0 %v1101
    %1476 = vmatprep.subr.bf16.mxu0 %v1098
    %1477 = vmatpush1.bf16.msra.mxu0 %v1097
    %1478 = vmatprep.subr.bf16.mxu0 %v1094
    %1479 = vmatpush1.bf16.msra.mxu0 %v1093
    %1480 = vmatprep.subr.bf16.mxu0 %v1090
    %1481 = vmatpush1.bf16.msra.mxu0 %v1089
    %1482 = vmatprep.subr.bf16.mxu0 %v1086
    %1483 = vmatpush1.bf16.msra.mxu0 %v1085
    %1484 = vmatprep.subr.bf16.mxu0 %v1082
    %1485 = vmatpush1.bf16.msra.mxu0 %v1081
    %1486 = vmatprep.subr.bf16.mxu0 %v1078
    %1487 = vmatpush1.bf16.msra.mxu0 %v1077
    %1488 = vmatprep.subr.bf16.mxu0 0
    %1489 = vmatpush2.bf16.msra.mxu0 0
    %1490 = vmatprep.subr.bf16.mxu0 0
    %1491 = vmatpush2.bf16.msra.mxu0 0
    %1492 = vmatprep.subr.bf16.mxu0 0
    %1493 = vmatpush2.bf16.msra.mxu0 0
    %1494 = vmatprep.subr.bf16.mxu0 0
    %1495 = vmatpush2.bf16.msra.mxu0 0
    %1496 = vmatprep.subr.bf16.mxu0 0
    %1497 = vmatpush2.bf16.msra.mxu0 0
    %1498 = vmatprep.subr.bf16.mxu0 0
    %1499 = vmatpush2.bf16.msra.mxu0 0
    %1500 = vmatprep.subr.bf16.mxu0 0
    %1501 = vmatpush2.bf16.msra.mxu0 0
    %1502 = vmatprep.subr.bf16.mxu0 0
    %1503 = vmatpush2.bf16.msra.mxu0 0
    %1504 = vmatprep.mubr.bf16.mxu0 0
    %1505 = vmatmul.mubr.bf16.gmra.mxu0 %v1348
    %v1506 = vpop.f32.mrf.mxu0
    %v1507 = vadd.f32 %v1425, %v1506
    %v1508 = vpop.f32.mrf.mxu0
    %v1509 = vadd.f32 %v1427, %v1508
    %v1510 = vpop.f32.mrf.mxu0
    %v1511 = vpop.f32.mrf.mxu0
    %1512 = vdwg.mxu0
    %v1513 = vadd.f32 %v1466, %v170
    %v1514 = vadd.f32 %v1468, %v174
    %v1515 = vadd.f32 %v1507, %v178
    %v1516 = vadd.f32 %v1509, %v182
    %v1517 = vmul.f32 %v1513, 0.5
    %v1518 = vtanh.pop %v1517
    %v1519 = vmul.f32 %v1518, 0.5
    %v1520 = vadd.f32 %v1519, 0.5
    %v1521 = vmul.f32 %v1514, 0.5
    %v1522 = vtanh.pop %v1521
    %v1523 = vmul.f32 %v1522, 0.5
    %v1524 = vadd.f32 %v1523, 0.5
    %v1525 = vtanh.pop %v1515
    %v1526 = vmul.f32 %v1516, 0.5
    %v1527 = vtanh.pop %v1526
    %v1528 = vmul.f32 %v1527, 0.5
    %v1529 = vadd.f32 %v1528, 0.5
    %v1530 = vmul.f32 %v1524, %v1240
    %v1531 = vmul.f32 %v1520, %v1525
    %v1532 = vadd.f32 %v1530, %v1531
    %v1533 = vtanh.pop %v1532
    %v1534 = vmul.f32 %v1529, %v1533
    %v1535 = vpack.c.bf16 %v1534, %v1534
    %1536 = vmatprep.subr.bf16.mxu0 %v597
    %1537 = vmatpush1.bf16.msra.mxu0 %v596
    %1538 = vmatprep.subr.bf16.mxu0 %v593
    %1539 = vmatpush1.bf16.msra.mxu0 %v592
    %1540 = vmatprep.subr.bf16.mxu0 %v589
    %1541 = vmatpush1.bf16.msra.mxu0 %v588
    %1542 = vmatprep.subr.bf16.mxu0 %v585
    %1543 = vmatpush1.bf16.msra.mxu0 %v584
    %1544 = vmatprep.subr.bf16.mxu0 %v581
    %1545 = vmatpush1.bf16.msra.mxu0 %v580
    %1546 = vmatprep.subr.bf16.mxu0 %v577
    %1547 = vmatpush1.bf16.msra.mxu0 %v576
    %1548 = vmatprep.subr.bf16.mxu0 %v573
    %1549 = vmatpush1.bf16.msra.mxu0 %v572
    %1550 = vmatprep.subr.bf16.mxu0 %v569
    %1551 = vmatpush1.bf16.msra.mxu0 %v568
    %1552 = vmatprep.subr.bf16.mxu0 0
    %1553 = vmatpush2.bf16.msra.mxu0 0
    %1554 = vmatprep.subr.bf16.mxu0 0
    %1555 = vmatpush2.bf16.msra.mxu0 0
    %1556 = vmatprep.subr.bf16.mxu0 0
    %1557 = vmatpush2.bf16.msra.mxu0 0
    %1558 = vmatprep.subr.bf16.mxu0 0
    %1559 = vmatpush2.bf16.msra.mxu0 0
    %1560 = vmatprep.subr.bf16.mxu0 0
    %1561 = vmatpush2.bf16.msra.mxu0 0
    %1562 = vmatprep.subr.bf16.mxu0 0
    %1563 = vmatpush2.bf16.msra.mxu0 0
    %1564 = vmatprep.subr.bf16.mxu0 0
    %1565 = vmatpush2.bf16.msra.mxu0 0
    %1566 = vmatprep.subr.bf16.mxu0 0
    %1567 = vmatpush2.bf16.msra.mxu0 0
    %1568 = vmatprep.mubr.bf16.mxu0 0
    %1569 = vmatmul.mubr.bf16.gmra.mxu0 %v1348
    %v1570 = vpop.f32.mrf.mxu0
    %v1571 = vadd.f32 0.0, %v1570
    %v1572 = vpop.f32.mrf.mxu0
    %v1573 = vadd.f32 0.0, %v1572
    %v1574 = vpop.f32.mrf.mxu0
    %v1575 = vpop.f32.mrf.mxu0
    %1576 = vdwg.mxu0
    %1577 = vmatprep.subr.bf16.mxu0 %v599
    %1578 = vmatpush1.bf16.msra.mxu0 %v598
    %1579 = vmatprep.subr.bf16.mxu0 %v595
    %1580 = vmatpush1.bf16.msra.mxu0 %v594
    %1581 = vmatprep.subr.bf16.mxu0 %v591
    %1582 = vmatpush1.bf16.msra.mxu0 %v590
    %1583 = vmatprep.subr.bf16.mxu0 %v587
    %1584 = vmatpush1.bf16.msra.mxu0 %v586
    %1585 = vmatprep.subr.bf16.mxu0 %v583
    %1586 = vmatpush1.bf16.msra.mxu0 %v582
    %1587 = vmatprep.subr.bf16.mxu0 %v579
    %1588 = vmatpush1.bf16.msra.mxu0 %v578
    %1589 = vmatprep.subr.bf16.mxu0 %v575
    %1590 = vmatpush1.bf16.msra.mxu0 %v574
    %1591 = vmatprep.subr.bf16.mxu0 %v571
    %1592 = vmatpush1.bf16.msra.mxu0 %v570
    %1593 = vmatprep.subr.bf16.mxu0 0
    %1594 = vmatpush2.bf16.msra.mxu0 0
    %1595 = vmatprep.subr.bf16.mxu0 0
    %1596 = vmatpush2.bf16.msra.mxu0 0
    %1597 = vmatprep.subr.bf16.mxu0 0
    %1598 = vmatpush2.bf16.msra.mxu0 0
    %1599 = vmatprep.subr.bf16.mxu0 0
    %1600 = vmatpush2.bf16.msra.mxu0 0
    %1601 = vmatprep.subr.bf16.mxu0 0
    %1602 = vmatpush2.bf16.msra.mxu0 0
    %1603 = vmatprep.subr.bf16.mxu0 0
    %1604 = vmatpush2.bf16.msra.mxu0 0
    %1605 = vmatprep.subr.bf16.mxu0 0
    %1606 = vmatpush2.bf16.msra.mxu0 0
    %1607 = vmatprep.subr.bf16.mxu0 0
    %1608 = vmatpush2.bf16.msra.mxu0 0
    %1609 = vmatprep.mubr.bf16.mxu0 0
    %1610 = vmatmul.mubr.bf16.gmra.mxu0 %v1348
    %v1611 = vpop.f32.mrf.mxu0
    %v1612 = vadd.f32 0.0, %v1611
    %v1613 = vpop.f32.mrf.mxu0
    %v1614 = vadd.f32 0.0, %v1613
    %v1615 = vpop.f32.mrf.mxu0
    %v1616 = vpop.f32.mrf.mxu0
    %1617 = vdwg.mxu0
    %v1618 = vadd.f32 %v325, %v1571
    %v1619 = vadd.f32 %v327, %v1573
    %v1620 = vadd.f32 %v438, %v1612
    %v1621 = vadd.f32 %v440, %v1614
    %v1622 = vmul.f32 %v1618, 0.5
    %v1623 = vtanh.pop %v1622
    %v1624 = vmul.f32 %v1623, 0.5
    %v1625 = vadd.f32 %v1624, 0.5
    %v1626 = vmul.f32 %v1619, 0.5
    %v1627 = vtanh.pop %v1626
    %v1628 = vmul.f32 %v1627, 0.5
    %v1629 = vadd.f32 %v1628, 0.5
    %v1630 = vtanh.pop %v1620
    %v1631 = vmul.f32 %v1621, 0.5
    %v1632 = vtanh.pop %v1631
    %v1633 = vmul.f32 %v1632, 0.5
    %v1634 = vadd.f32 %v1633, 0.5
    %v1635 = vmul.f32 %v1629, %v1345
    %v1636 = vmul.f32 %v1625, %v1630
    %v1637 = vadd.f32 %v1635, %v1636
    %v1638 = vtanh.pop %v1637
    %v1639 = vmul.f32 %v1634, %v1638
    %v1640 = vpack.c.bf16 %v1639, %v1639
    %1641 = vmatprep.subr.bf16.mxu0 %v862
    %1642 = vmatpush1.bf16.msra.mxu0 %v861
    %1643 = vmatprep.subr.bf16.mxu0 %v858
    %1644 = vmatpush1.bf16.msra.mxu0 %v857
    %1645 = vmatprep.subr.bf16.mxu0 %v854
    %1646 = vmatpush1.bf16.msra.mxu0 %v853
    %1647 = vmatprep.subr.bf16.mxu0 %v850
    %1648 = vmatpush1.bf16.msra.mxu0 %v849
    %1649 = vmatprep.subr.bf16.mxu0 %v846
    %1650 = vmatpush1.bf16.msra.mxu0 %v845
    %1651 = vmatprep.subr.bf16.mxu0 %v842
    %1652 = vmatpush1.bf16.msra.mxu0 %v841
    %1653 = vmatprep.subr.bf16.mxu0 %v838
    %1654 = vmatpush1.bf16.msra.mxu0 %v837
    %1655 = vmatprep.subr.bf16.mxu0 %v834
    %1656 = vmatpush1.bf16.msra.mxu0 %v833
    %1657 = vmatprep.subr.bf16.mxu0 0
    %1658 = vmatpush2.bf16.msra.mxu0 0
    %1659 = vmatprep.subr.bf16.mxu0 0
    %1660 = vmatpush2.bf16.msra.mxu0 0
    %1661 = vmatprep.subr.bf16.mxu0 0
    %1662 = vmatpush2.bf16.msra.mxu0 0
    %1663 = vmatprep.subr.bf16.mxu0 0
    %1664 = vmatpush2.bf16.msra.mxu0 0
    %1665 = vmatprep.subr.bf16.mxu0 0
    %1666 = vmatpush2.bf16.msra.mxu0 0
    %1667 = vmatprep.subr.bf16.mxu0 0
    %1668 = vmatpush2.bf16.msra.mxu0 0
    %1669 = vmatprep.subr.bf16.mxu0 0
    %1670 = vmatpush2.bf16.msra.mxu0 0
    %1671 = vmatprep.subr.bf16.mxu0 0
    %1672 = vmatpush2.bf16.msra.mxu0 0
    %1673 = vmatprep.mubr.bf16.mxu0 0
    %1674 = vmatmul.mubr.bf16.gmra.mxu0 %v1535
    %v1675 = vpop.f32.mrf.mxu0
    %v1676 = vadd.f32 0.0, %v1675
    %v1677 = vpop.f32.mrf.mxu0
    %v1678 = vadd.f32 0.0, %v1677
    %v1679 = vpop.f32.mrf.mxu0
    %v1680 = vpop.f32.mrf.mxu0
    %1681 = vdwg.mxu0
    %1682 = vmatprep.subr.bf16.mxu0 %v864
    %1683 = vmatpush1.bf16.msra.mxu0 %v863
    %1684 = vmatprep.subr.bf16.mxu0 %v860
    %1685 = vmatpush1.bf16.msra.mxu0 %v859
    %1686 = vmatprep.subr.bf16.mxu0 %v856
    %1687 = vmatpush1.bf16.msra.mxu0 %v855
    %1688 = vmatprep.subr.bf16.mxu0 %v852
    %1689 = vmatpush1.bf16.msra.mxu0 %v851
    %1690 = vmatprep.subr.bf16.mxu0 %v848
    %1691 = vmatpush1.bf16.msra.mxu0 %v847
    %1692 = vmatprep.subr.bf16.mxu0 %v844
    %1693 = vmatpush1.bf16.msra.mxu0 %v843
    %1694 = vmatprep.subr.bf16.mxu0 %v840
    %1695 = vmatpush1.bf16.msra.mxu0 %v839
    %1696 = vmatprep.subr.bf16.mxu0 %v836
    %1697 = vmatpush1.bf16.msra.mxu0 %v835
    %1698 = vmatprep.subr.bf16.mxu0 0
    %1699 = vmatpush2.bf16.msra.mxu0 0
    %1700 = vmatprep.subr.bf16.mxu0 0
    %1701 = vmatpush2.bf16.msra.mxu0 0
    %1702 = vmatprep.subr.bf16.mxu0 0
    %1703 = vmatpush2.bf16.msra.mxu0 0
    %1704 = vmatprep.subr.bf16.mxu0 0
    %1705 = vmatpush2.bf16.msra.mxu0 0
    %1706 = vmatprep.subr.bf16.mxu0 0
    %1707 = vmatpush2.bf16.msra.mxu0 0
    %1708 = vmatprep.subr.bf16.mxu0 0
    %1709 = vmatpush2.bf16.msra.mxu0 0
    %1710 = vmatprep.subr.bf16.mxu0 0
    %1711 = vmatpush2.bf16.msra.mxu0 0
    %1712 = vmatprep.subr.bf16.mxu0 0
    %1713 = vmatpush2.bf16.msra.mxu0 0
    %1714 = vmatprep.mubr.bf16.mxu0 0
    %1715 = vmatmul.mubr.bf16.gmra.mxu0 %v1535
    %v1716 = vpop.f32.mrf.mxu0
    %v1717 = vadd.f32 0.0, %v1716
    %v1718 = vpop.f32.mrf.mxu0
    %v1719 = vadd.f32 0.0, %v1718
    %v1720 = vpop.f32.mrf.mxu0
    %v1721 = vpop.f32.mrf.mxu0
    %1722 = vdwg.mxu0
    %1723 = vmatprep.subr.bf16.mxu0 %v1104
    %1724 = vmatpush1.bf16.msra.mxu0 %v1103
    %1725 = vmatprep.subr.bf16.mxu0 %v1100
    %1726 = vmatpush1.bf16.msra.mxu0 %v1099
    %1727 = vmatprep.subr.bf16.mxu0 %v1096
    %1728 = vmatpush1.bf16.msra.mxu0 %v1095
    %1729 = vmatprep.subr.bf16.mxu0 %v1092
    %1730 = vmatpush1.bf16.msra.mxu0 %v1091
    %1731 = vmatprep.subr.bf16.mxu0 %v1088
    %1732 = vmatpush1.bf16.msra.mxu0 %v1087
    %1733 = vmatprep.subr.bf16.mxu0 %v1084
    %1734 = vmatpush1.bf16.msra.mxu0 %v1083
    %1735 = vmatprep.subr.bf16.mxu0 %v1080
    %1736 = vmatpush1.bf16.msra.mxu0 %v1079
    %1737 = vmatprep.subr.bf16.mxu0 %v1076
    %1738 = vmatpush1.bf16.msra.mxu0 %v1075
    %1739 = vmatprep.subr.bf16.mxu0 0
    %1740 = vmatpush2.bf16.msra.mxu0 0
    %1741 = vmatprep.subr.bf16.mxu0 0
    %1742 = vmatpush2.bf16.msra.mxu0 0
    %1743 = vmatprep.subr.bf16.mxu0 0
    %1744 = vmatpush2.bf16.msra.mxu0 0
    %1745 = vmatprep.subr.bf16.mxu0 0
    %1746 = vmatpush2.bf16.msra.mxu0 0
    %1747 = vmatprep.subr.bf16.mxu0 0
    %1748 = vmatpush2.bf16.msra.mxu0 0
    %1749 = vmatprep.subr.bf16.mxu0 0
    %1750 = vmatpush2.bf16.msra.mxu0 0
    %1751 = vmatprep.subr.bf16.mxu0 0
    %1752 = vmatpush2.bf16.msra.mxu0 0
    %1753 = vmatprep.subr.bf16.mxu0 0
    %1754 = vmatpush2.bf16.msra.mxu0 0
    %1755 = vmatprep.mubr.bf16.mxu0 0
    %1756 = vmatmul.mubr.bf16.gmra.mxu0 %v1640
    %v1757 = vpop.f32.mrf.mxu0
    %v1758 = vadd.f32 %v1676, %v1757
    %v1759 = vpop.f32.mrf.mxu0
    %v1760 = vadd.f32 %v1678, %v1759
    %v1761 = vpop.f32.mrf.mxu0
    %v1762 = vpop.f32.mrf.mxu0
    %1763 = vdwg.mxu0
    %1764 = vmatprep.subr.bf16.mxu0 %v1106
    %1765 = vmatpush1.bf16.msra.mxu0 %v1105
    %1766 = vmatprep.subr.bf16.mxu0 %v1102
    %1767 = vmatpush1.bf16.msra.mxu0 %v1101
    %1768 = vmatprep.subr.bf16.mxu0 %v1098
    %1769 = vmatpush1.bf16.msra.mxu0 %v1097
    %1770 = vmatprep.subr.bf16.mxu0 %v1094
    %1771 = vmatpush1.bf16.msra.mxu0 %v1093
    %1772 = vmatprep.subr.bf16.mxu0 %v1090
    %1773 = vmatpush1.bf16.msra.mxu0 %v1089
    %1774 = vmatprep.subr.bf16.mxu0 %v1086
    %1775 = vmatpush1.bf16.msra.mxu0 %v1085
    %1776 = vmatprep.subr.bf16.mxu0 %v1082
    %1777 = vmatpush1.bf16.msra.mxu0 %v1081
    %1778 = vmatprep.subr.bf16.mxu0 %v1078
    %1779 = vmatpush1.bf16.msra.mxu0 %v1077
    %1780 = vmatprep.subr.bf16.mxu0 0
    %1781 = vmatpush2.bf16.msra.mxu0 0
    %1782 = vmatprep.subr.bf16.mxu0 0
    %1783 = vmatpush2.bf16.msra.mxu0 0
    %1784 = vmatprep.subr.bf16.mxu0 0
    %1785 = vmatpush2.bf16.msra.mxu0 0
    %1786 = vmatprep.subr.bf16.mxu0 0
    %1787 = vmatpush2.bf16.msra.mxu0 0
    %1788 = vmatprep.subr.bf16.mxu0 0
    %1789 = vmatpush2.bf16.msra.mxu0 0
    %1790 = vmatprep.subr.bf16.mxu0 0
    %1791 = vmatpush2.bf16.msra.mxu0 0
    %1792 = vmatprep.subr.bf16.mxu0 0
    %1793 = vmatpush2.bf16.msra.mxu0 0
    %1794 = vmatprep.subr.bf16.mxu0 0
    %1795 = vmatpush2.bf16.msra.mxu0 0
    %1796 = vmatprep.mubr.bf16.mxu0 0
    %1797 = vmatmul.mubr.bf16.gmra.mxu0 %v1640
    %v1798 = vpop.f32.mrf.mxu0
    %v1799 = vadd.f32 %v1717, %v1798
    %v1800 = vpop.f32.mrf.mxu0
    %v1801 = vadd.f32 %v1719, %v1800
    %v1802 = vpop.f32.mrf.mxu0
    %v1803 = vpop.f32.mrf.mxu0
    %1804 = vdwg.mxu0
    %v1805 = vadd.f32 %v1758, %v170
    %v1806 = vadd.f32 %v1760, %v174
    %v1807 = vadd.f32 %v1799, %v178
    %v1808 = vadd.f32 %v1801, %v182
    %v1809 = vmul.f32 %v1805, 0.5
    %v1810 = vtanh.pop %v1809
    %v1811 = vmul.f32 %v1810, 0.5
    %v1812 = vadd.f32 %v1811, 0.5
    %v1813 = vmul.f32 %v1806, 0.5
    %v1814 = vtanh.pop %v1813
    %v1815 = vmul.f32 %v1814, 0.5
    %v1816 = vadd.f32 %v1815, 0.5
    %v1817 = vtanh.pop %v1807
    %v1818 = vmul.f32 %v1808, 0.5
    %v1819 = vtanh.pop %v1818
    %v1820 = vmul.f32 %v1819, 0.5
    %v1821 = vadd.f32 %v1820, 0.5
    %v1822 = vmul.f32 %v1816, %v1532
    %v1823 = vmul.f32 %v1812, %v1817
    %v1824 = vadd.f32 %v1822, %v1823
    %v1825 = vtanh.pop %v1824
    %v1826 = vmul.f32 %v1821, %v1825
    %v1827 = vpack.c.bf16 %v1826, %v1826
    %1828 = vmatprep.subr.bf16.mxu0 %v597
    %1829 = vmatpush1.bf16.msra.mxu0 %v596
    %1830 = vmatprep.subr.bf16.mxu0 %v593
    %1831 = vmatpush1.bf16.msra.mxu0 %v592
    %1832 = vmatprep.subr.bf16.mxu0 %v589
    %1833 = vmatpush1.bf16.msra.mxu0 %v588
    %1834 = vmatprep.subr.bf16.mxu0 %v585
    %1835 = vmatpush1.bf16.msra.mxu0 %v584
    %1836 = vmatprep.subr.bf16.mxu0 %v581
    %1837 = vmatpush1.bf16.msra.mxu0 %v580
    %1838 = vmatprep.subr.bf16.mxu0 %v577
    %1839 = vmatpush1.bf16.msra.mxu0 %v576
    %1840 = vmatprep.subr.bf16.mxu0 %v573
    %1841 = vmatpush1.bf16.msra.mxu0 %v572
    %1842 = vmatprep.subr.bf16.mxu0 %v569
    %1843 = vmatpush1.bf16.msra.mxu0 %v568
    %1844 = vmatprep.subr.bf16.mxu0 0
    %1845 = vmatpush2.bf16.msra.mxu0 0
    %1846 = vmatprep.subr.bf16.mxu0 0
    %1847 = vmatpush2.bf16.msra.mxu0 0
    %1848 = vmatprep.subr.bf16.mxu0 0
    %1849 = vmatpush2.bf16.msra.mxu0 0
    %1850 = vmatprep.subr.bf16.mxu0 0
    %1851 = vmatpush2.bf16.msra.mxu0 0
    %1852 = vmatprep.subr.bf16.mxu0 0
    %1853 = vmatpush2.bf16.msra.mxu0 0
    %1854 = vmatprep.subr.bf16.mxu0 0
    %1855 = vmatpush2.bf16.msra.mxu0 0
    %1856 = vmatprep.subr.bf16.mxu0 0
    %1857 = vmatpush2.bf16.msra.mxu0 0
    %1858 = vmatprep.subr.bf16.mxu0 0
    %1859 = vmatpush2.bf16.msra.mxu0 0
    %1860 = vmatprep.mubr.bf16.mxu0 0
    %1861 = vmatmul.mubr.bf16.gmra.mxu0 %v1640
    %v1862 = vpop.f32.mrf.mxu0
    %v1863 = vadd.f32 0.0, %v1862
    %v1864 = vpop.f32.mrf.mxu0
    %v1865 = vadd.f32 0.0, %v1864
    %v1866 = vpop.f32.mrf.mxu0
    %v1867 = vpop.f32.mrf.mxu0
    %1868 = vdwg.mxu0
    %1869 = vmatprep.subr.bf16.mxu0 %v599
    %1870 = vmatpush1.bf16.msra.mxu0 %v598
    %1871 = vmatprep.subr.bf16.mxu0 %v595
    %1872 = vmatpush1.bf16.msra.mxu0 %v594
    %1873 = vmatprep.subr.bf16.mxu0 %v591
    %1874 = vmatpush1.bf16.msra.mxu0 %v590
    %1875 = vmatprep.subr.bf16.mxu0 %v587
    %1876 = vmatpush1.bf16.msra.mxu0 %v586
    %1877 = vmatprep.subr.bf16.mxu0 %v583
    %1878 = vmatpush1.bf16.msra.mxu0 %v582
    %1879 = vmatprep.subr.bf16.mxu0 %v579
    %1880 = vmatpush1.bf16.msra.mxu0 %v578
    %1881 = vmatprep.subr.bf16.mxu0 %v575
    %1882 = vmatpush1.bf16.msra.mxu0 %v574
    %1883 = vmatprep.subr.bf16.mxu0 %v571
    %1884 = vmatpush1.bf16.msra.mxu0 %v570
    %1885 = vmatprep.subr.bf16.mxu0 0
    %1886 = vmatpush2.bf16.msra.mxu0 0
    %1887 = vmatprep.subr.bf16.mxu0 0
    %1888 = vmatpush2.bf16.msra.mxu0 0
    %1889 = vmatprep.subr.bf16.mxu0 0
    %1890 = vmatpush2.bf16.msra.mxu0 0
    %1891 = vmatprep.subr.bf16.mxu0 0
    %1892 = vmatpush2.bf16.msra.mxu0 0
    %1893 = vmatprep.subr.bf16.mxu0 0
    %1894 = vmatpush2.bf16.msra.mxu0 0
    %1895 = vmatprep.subr.bf16.mxu0 0
    %1896 = vmatpush2.bf16.msra.mxu0 0
    %1897 = vmatprep.subr.bf16.mxu0 0
    %1898 = vmatpush2.bf16.msra.mxu0 0
    %1899 = vmatprep.subr.bf16.mxu0 0
    %1900 = vmatpush2.bf16.msra.mxu0 0
    %1901 = vmatprep.mubr.bf16.mxu0 0
    %1902 = vmatmul.mubr.bf16.gmra.mxu0 %v1640
    %v1903 = vpop.f32.mrf.mxu0
    %v1904 = vadd.f32 0.0, %v1903
    %v1905 = vpop.f32.mrf.mxu0
    %v1906 = vadd.f32 0.0, %v1905
    %v1907 = vpop.f32.mrf.mxu0
    %v1908 = vpop.f32.mrf.mxu0
    %1909 = vdwg.mxu0
    %v1910 = vadd.f32 %v331, %v1863
    %v1911 = vadd.f32 %v333, %v1865
    %v1912 = vadd.f32 %v444, %v1904
    %v1913 = vadd.f32 %v446, %v1906
    %v1914 = vmul.f32 %v1910, 0.5
    %v1915 = vtanh.pop %v1914
    %v1916 = vmul.f32 %v1915, 0.5
    %v1917 = vadd.f32 %v1916, 0.5
    %v1918 = vmul.f32 %v1911, 0.5
    %v1919 = vtanh.pop %v1918
    %v1920 = vmul.f32 %v1919, 0.5
    %v1921 = vadd.f32 %v1920, 0.5
    %v1922 = vtanh.pop %v1912
    %v1923 = vmul.f32 %v1913, 0.5
    %v1924 = vtanh.pop %v1923
    %v1925 = vmul.f32 %v1924, 0.5
    %v1926 = vadd.f32 %v1925, 0.5
    %v1927 = vmul.f32 %v1921, %v1637
    %v1928 = vmul.f32 %v1917, %v1922
    %v1929 = vadd.f32 %v1927, %v1928
    %v1930 = vtanh.pop %v1929
    %v1931 = vmul.f32 %v1926, %v1930
    %v1932 = vpack.c.bf16 %v1931, %v1931
    %1933 = vmatprep.subr.bf16.mxu0 %v862
    %1934 = vmatpush1.bf16.msra.mxu0 %v861
    %1935 = vmatprep.subr.bf16.mxu0 %v858
    %1936 = vmatpush1.bf16.msra.mxu0 %v857
    %1937 = vmatprep.subr.bf16.mxu0 %v854
    %1938 = vmatpush1.bf16.msra.mxu0 %v853
    %1939 = vmatprep.subr.bf16.mxu0 %v850
    %1940 = vmatpush1.bf16.msra.mxu0 %v849
    %1941 = vmatprep.subr.bf16.mxu0 %v846
    %1942 = vmatpush1.bf16.msra.mxu0 %v845
    %1943 = vmatprep.subr.bf16.mxu0 %v842
    %1944 = vmatpush1.bf16.msra.mxu0 %v841
    %1945 = vmatprep.subr.bf16.mxu0 %v838
    %1946 = vmatpush1.bf16.msra.mxu0 %v837
    %1947 = vmatprep.subr.bf16.mxu0 %v834
    %1948 = vmatpush1.bf16.msra.mxu0 %v833
    %1949 = vmatprep.subr.bf16.mxu0 0
    %1950 = vmatpush2.bf16.msra.mxu0 0
    %1951 = vmatprep.subr.bf16.mxu0 0
    %1952 = vmatpush2.bf16.msra.mxu0 0
    %1953 = vmatprep.subr.bf16.mxu0 0
    %1954 = vmatpush2.bf16.msra.mxu0 0
    %1955 = vmatprep.subr.bf16.mxu0 0
    %1956 = vmatpush2.bf16.msra.mxu0 0
    %1957 = vmatprep.subr.bf16.mxu0 0
    %1958 = vmatpush2.bf16.msra.mxu0 0
    %1959 = vmatprep.subr.bf16.mxu0 0
    %1960 = vmatpush2.bf16.msra.mxu0 0
    %1961 = vmatprep.subr.bf16.mxu0 0
    %1962 = vmatpush2.bf16.msra.mxu0 0
    %1963 = vmatprep.subr.bf16.mxu0 0
    %1964 = vmatpush2.bf16.msra.mxu0 0
    %1965 = vmatprep.mubr.bf16.mxu0 0
    %1966 = vmatmul.mubr.bf16.gmra.mxu0 %v1827
    %v1967 = vpop.f32.mrf.mxu0
    %v1968 = vadd.f32 0.0, %v1967
    %v1969 = vpop.f32.mrf.mxu0
    %v1970 = vadd.f32 0.0, %v1969
    %v1971 = vpop.f32.mrf.mxu0
    %v1972 = vpop.f32.mrf.mxu0
    %1973 = vdwg.mxu0
    %1974 = vmatprep.subr.bf16.mxu0 %v864
    %1975 = vmatpush1.bf16.msra.mxu0 %v863
    %1976 = vmatprep.subr.bf16.mxu0 %v860
    %1977 = vmatpush1.bf16.msra.mxu0 %v859
    %1978 = vmatprep.subr.bf16.mxu0 %v856
    %1979 = vmatpush1.bf16.msra.mxu0 %v855
    %1980 = vmatprep.subr.bf16.mxu0 %v852
    %1981 = vmatpush1.bf16.msra.mxu0 %v851
    %1982 = vmatprep.subr.bf16.mxu0 %v848
    %1983 = vmatpush1.bf16.msra.mxu0 %v847
    %1984 = vmatprep.subr.bf16.mxu0 %v844
    %1985 = vmatpush1.bf16.msra.mxu0 %v843
    %1986 = vmatprep.subr.bf16.mxu0 %v840
    %1987 = vmatpush1.bf16.msra.mxu0 %v839
    %1988 = vmatprep.subr.bf16.mxu0 %v836
    %1989 = vmatpush1.bf16.msra.mxu0 %v835
    %1990 = vmatprep.subr.bf16.mxu0 0
    %1991 = vmatpush2.bf16.msra.mxu0 0
    %1992 = vmatprep.subr.bf16.mxu0 0
    %1993 = vmatpush2.bf16.msra.mxu0 0
    %1994 = vmatprep.subr.bf16.mxu0 0
    %1995 = vmatpush2.bf16.msra.mxu0 0
    %1996 = vmatprep.subr.bf16.mxu0 0
    %1997 = vmatpush2.bf16.msra.mxu0 0
    %1998 = vmatprep.subr.bf16.mxu0 0
    %1999 = vmatpush2.bf16.msra.mxu0 0
    %2000 = vmatprep.subr.bf16.mxu0 0
    %2001 = vmatpush2.bf16.msra.mxu0 0
    %2002 = vmatprep.subr.bf16.mxu0 0
    %2003 = vmatpush2.bf16.msra.mxu0 0
    %2004 = vmatprep.subr.bf16.mxu0 0
    %2005 = vmatpush2.bf16.msra.mxu0 0
    %2006 = vmatprep.mubr.bf16.mxu0 0
    %2007 = vmatmul.mubr.bf16.gmra.mxu0 %v1827
    %v2008 = vpop.f32.mrf.mxu0
    %v2009 = vadd.f32 0.0, %v2008
    %v2010 = vpop.f32.mrf.mxu0
    %v2011 = vadd.f32 0.0, %v2010
    %v2012 = vpop.f32.mrf.mxu0
    %v2013 = vpop.f32.mrf.mxu0
    %2014 = vdwg.mxu0
    %2015 = vmatprep.subr.bf16.mxu0 %v1104
    %2016 = vmatpush1.bf16.msra.mxu0 %v1103
    %2017 = vmatprep.subr.bf16.mxu0 %v1100
    %2018 = vmatpush1.bf16.msra.mxu0 %v1099
    %2019 = vmatprep.subr.bf16.mxu0 %v1096
    %2020 = vmatpush1.bf16.msra.mxu0 %v1095
    %2021 = vmatprep.subr.bf16.mxu0 %v1092
    %2022 = vmatpush1.bf16.msra.mxu0 %v1091
    %2023 = vmatprep.subr.bf16.mxu0 %v1088
    %2024 = vmatpush1.bf16.msra.mxu0 %v1087
    %2025 = vmatprep.subr.bf16.mxu0 %v1084
    %2026 = vmatpush1.bf16.msra.mxu0 %v1083
    %2027 = vmatprep.subr.bf16.mxu0 %v1080
    %2028 = vmatpush1.bf16.msra.mxu0 %v1079
    %2029 = vmatprep.subr.bf16.mxu0 %v1076
    %2030 = vmatpush1.bf16.msra.mxu0 %v1075
    %2031 = vmatprep.subr.bf16.mxu0 0
    %2032 = vmatpush2.bf16.msra.mxu0 0
    %2033 = vmatprep.subr.bf16.mxu0 0
    %2034 = vmatpush2.bf16.msra.mxu0 0
    %2035 = vmatprep.subr.bf16.mxu0 0
    %2036 = vmatpush2.bf16.msra.mxu0 0
    %2037 = vmatprep.subr.bf16.mxu0 0
    %2038 = vmatpush2.bf16.msra.mxu0 0
    %2039 = vmatprep.subr.bf16.mxu0 0
    %2040 = vmatpush2.bf16.msra.mxu0 0
    %2041 = vmatprep.subr.bf16.mxu0 0
    %2042 = vmatpush2.bf16.msra.mxu0 0
    %2043 = vmatprep.subr.bf16.mxu0 0
    %2044 = vmatpush2.bf16.msra.mxu0 0
    %2045 = vmatprep.subr.bf16.mxu0 0
    %2046 = vmatpush2.bf16.msra.mxu0 0
    %2047 = vmatprep.mubr.bf16.mxu0 0
    %2048 = vmatmul.mubr.bf16.gmra.mxu0 %v1932
    %v2049 = vpop.f32.mrf.mxu0
    %v2050 = vadd.f32 %v1968, %v2049
    %v2051 = vpop.f32.mrf.mxu0
    %v2052 = vadd.f32 %v1970, %v2051
    %v2053 = vpop.f32.mrf.mxu0
    %v2054 = vpop.f32.mrf.mxu0
    %2055 = vdwg.mxu0
    %2056 = vmatprep.subr.bf16.mxu0 %v1106
    %2057 = vmatpush1.bf16.msra.mxu0 %v1105
    %2058 = vmatprep.subr.bf16.mxu0 %v1102
    %2059 = vmatpush1.bf16.msra.mxu0 %v1101
    %2060 = vmatprep.subr.bf16.mxu0 %v1098
    %2061 = vmatpush1.bf16.msra.mxu0 %v1097
    %2062 = vmatprep.subr.bf16.mxu0 %v1094
    %2063 = vmatpush1.bf16.msra.mxu0 %v1093
    %2064 = vmatprep.subr.bf16.mxu0 %v1090
    %2065 = vmatpush1.bf16.msra.mxu0 %v1089
    %2066 = vmatprep.subr.bf16.mxu0 %v1086
    %2067 = vmatpush1.bf16.msra.mxu0 %v1085
    %2068 = vmatprep.subr.bf16.mxu0 %v1082
    %2069 = vmatpush1.bf16.msra.mxu0 %v1081
    %2070 = vmatprep.subr.bf16.mxu0 %v1078
    %2071 = vmatpush1.bf16.msra.mxu0 %v1077
    %2072 = vmatprep.subr.bf16.mxu0 0
    %2073 = vmatpush2.bf16.msra.mxu0 0
    %2074 = vmatprep.subr.bf16.mxu0 0
    %2075 = vmatpush2.bf16.msra.mxu0 0
    %2076 = vmatprep.subr.bf16.mxu0 0
    %2077 = vmatpush2.bf16.msra.mxu0 0
    %2078 = vmatprep.subr.bf16.mxu0 0
    %2079 = vmatpush2.bf16.msra.mxu0 0
    %2080 = vmatprep.subr.bf16.mxu0 0
    %2081 = vmatpush2.bf16.msra.mxu0 0
    %2082 = vmatprep.subr.bf16.mxu0 0
    %2083 = vmatpush2.bf16.msra.mxu0 0
    %2084 = vmatprep.subr.bf16.mxu0 0
    %2085 = vmatpush2.bf16.msra.mxu0 0
    %2086 = vmatprep.subr.bf16.mxu0 0
    %2087 = vmatpush2.bf16.msra.mxu0 0
    %2088 = vmatprep.mubr.bf16.mxu0 0
    %2089 = vmatmul.mubr.bf16.gmra.mxu0 %v1932
    %v2090 = vpop.f32.mrf.mxu0
    %v2091 = vadd.f32 %v2009, %v2090
    %v2092 = vpop.f32.mrf.mxu0
    %v2093 = vadd.f32 %v2011, %v2092
    %v2094 = vpop.f32.mrf.mxu0
    %v2095 = vpop.f32.mrf.mxu0
    %2096 = vdwg.mxu0
    %v2097 = vadd.f32 %v2050, %v170
    %v2098 = vadd.f32 %v2052, %v174
    %v2099 = vadd.f32 %v2091, %v178
    %v2100 = vadd.f32 %v2093, %v182
    %v2101 = vmul.f32 %v2097, 0.5
    %v2102 = vtanh.pop %v2101
    %v2103 = vmul.f32 %v2102, 0.5
    %v2104 = vadd.f32 %v2103, 0.5
    %v2105 = vmul.f32 %v2098, 0.5
    %v2106 = vtanh.pop %v2105
    %v2107 = vmul.f32 %v2106, 0.5
    %v2108 = vadd.f32 %v2107, 0.5
    %v2109 = vtanh.pop %v2099
    %v2110 = vmul.f32 %v2100, 0.5
    %v2111 = vtanh.pop %v2110
    %v2112 = vmul.f32 %v2111, 0.5
    %v2113 = vadd.f32 %v2112, 0.5
    %v2114 = vmul.f32 %v2108, %v1824
    %v2115 = vmul.f32 %v2104, %v2109
    %v2116 = vadd.f32 %v2114, %v2115
    %v2117 = vtanh.pop %v2116
    %v2118 = vmul.f32 %v2113, %v2117
    %v2119 = vpack.c.bf16 %v2118, %v2118
    %2120 = vmatprep.subr.bf16.mxu0 %v597
    %2121 = vmatpush1.bf16.msra.mxu0 %v596
    %2122 = vmatprep.subr.bf16.mxu0 %v593
    %2123 = vmatpush1.bf16.msra.mxu0 %v592
    %2124 = vmatprep.subr.bf16.mxu0 %v589
    %2125 = vmatpush1.bf16.msra.mxu0 %v588
    %2126 = vmatprep.subr.bf16.mxu0 %v585
    %2127 = vmatpush1.bf16.msra.mxu0 %v584
    %2128 = vmatprep.subr.bf16.mxu0 %v581
    %2129 = vmatpush1.bf16.msra.mxu0 %v580
    %2130 = vmatprep.subr.bf16.mxu0 %v577
    %2131 = vmatpush1.bf16.msra.mxu0 %v576
    %2132 = vmatprep.subr.bf16.mxu0 %v573
    %2133 = vmatpush1.bf16.msra.mxu0 %v572
    %2134 = vmatprep.subr.bf16.mxu0 %v569
    %2135 = vmatpush1.bf16.msra.mxu0 %v568
    %2136 = vmatprep.subr.bf16.mxu0 0
    %2137 = vmatpush2.bf16.msra.mxu0 0
    %2138 = vmatprep.subr.bf16.mxu0 0
    %2139 = vmatpush2.bf16.msra.mxu0 0
    %2140 = vmatprep.subr.bf16.mxu0 0
    %2141 = vmatpush2.bf16.msra.mxu0 0
    %2142 = vmatprep.subr.bf16.mxu0 0
    %2143 = vmatpush2.bf16.msra.mxu0 0
    %2144 = vmatprep.subr.bf16.mxu0 0
    %2145 = vmatpush2.bf16.msra.mxu0 0
    %2146 = vmatprep.subr.bf16.mxu0 0
    %2147 = vmatpush2.bf16.msra.mxu0 0
    %2148 = vmatprep.subr.bf16.mxu0 0
    %2149 = vmatpush2.bf16.msra.mxu0 0
    %2150 = vmatprep.subr.bf16.mxu0 0
    %2151 = vmatpush2.bf16.msra.mxu0 0
    %2152 = vmatprep.mubr.bf16.mxu0 0
    %2153 = vmatmul.mubr.bf16.gmra.mxu0 %v1932
    %v2154 = vpop.f32.mrf.mxu0
    %v2155 = vadd.f32 0.0, %v2154
    %v2156 = vpop.f32.mrf.mxu0
    %v2157 = vadd.f32 0.0, %v2156
    %v2158 = vpop.f32.mrf.mxu0
    %v2159 = vpop.f32.mrf.mxu0
    %2160 = vdwg.mxu0
    %2161 = vmatprep.subr.bf16.mxu0 %v599
    %2162 = vmatpush1.bf16.msra.mxu0 %v598
    %2163 = vmatprep.subr.bf16.mxu0 %v595
    %2164 = vmatpush1.bf16.msra.mxu0 %v594
    %2165 = vmatprep.subr.bf16.mxu0 %v591
    %2166 = vmatpush1.bf16.msra.mxu0 %v590
    %2167 = vmatprep.subr.bf16.mxu0 %v587
    %2168 = vmatpush1.bf16.msra.mxu0 %v586
    %2169 = vmatprep.subr.bf16.mxu0 %v583
    %2170 = vmatpush1.bf16.msra.mxu0 %v582
    %2171 = vmatprep.subr.bf16.mxu0 %v579
    %2172 = vmatpush1.bf16.msra.mxu0 %v578
    %2173 = vmatprep.subr.bf16.mxu0 %v575
    %2174 = vmatpush1.bf16.msra.mxu0 %v574
    %2175 = vmatprep.subr.bf16.mxu0 %v571
    %2176 = vmatpush1.bf16.msra.mxu0 %v570
    %2177 = vmatprep.subr.bf16.mxu0 0
    %2178 = vmatpush2.bf16.msra.mxu0 0
    %2179 = vmatprep.subr.bf16.mxu0 0
    %2180 = vmatpush2.bf16.msra.mxu0 0
    %2181 = vmatprep.subr.bf16.mxu0 0
    %2182 = vmatpush2.bf16.msra.mxu0 0
    %2183 = vmatprep.subr.bf16.mxu0 0
    %2184 = vmatpush2.bf16.msra.mxu0 0
    %2185 = vmatprep.subr.bf16.mxu0 0
    %2186 = vmatpush2.bf16.msra.mxu0 0
    %2187 = vmatprep.subr.bf16.mxu0 0
    %2188 = vmatpush2.bf16.msra.mxu0 0
    %2189 = vmatprep.subr.bf16.mxu0 0
    %2190 = vmatpush2.bf16.msra.mxu0 0
    %2191 = vmatprep.subr.bf16.mxu0 0
    %2192 = vmatpush2.bf16.msra.mxu0 0
    %2193 = vmatprep.mubr.bf16.mxu0 0
    %2194 = vmatmul.mubr.bf16.gmra.mxu0 %v1932
    %v2195 = vpop.f32.mrf.mxu0
    %v2196 = vadd.f32 0.0, %v2195
    %v2197 = vpop.f32.mrf.mxu0
    %v2198 = vadd.f32 0.0, %v2197
    %v2199 = vpop.f32.mrf.mxu0
    %v2200 = vpop.f32.mrf.mxu0
    %2201 = vdwg.mxu0
    %v2202 = vadd.f32 %v337, %v2155
    %v2203 = vadd.f32 %v339, %v2157
    %v2204 = vadd.f32 %v450, %v2196
    %v2205 = vadd.f32 %v452, %v2198
    %v2206 = vmul.f32 %v2202, 0.5
    %v2207 = vtanh.pop %v2206
    %v2208 = vmul.f32 %v2207, 0.5
    %v2209 = vadd.f32 %v2208, 0.5
    %v2210 = vmul.f32 %v2203, 0.5
    %v2211 = vtanh.pop %v2210
    %v2212 = vmul.f32 %v2211, 0.5
    %v2213 = vadd.f32 %v2212, 0.5
    %v2214 = vtanh.pop %v2204
    %v2215 = vmul.f32 %v2205, 0.5
    %v2216 = vtanh.pop %v2215
    %v2217 = vmul.f32 %v2216, 0.5
    %v2218 = vadd.f32 %v2217, 0.5
    %v2219 = vmul.f32 %v2213, %v1929
    %v2220 = vmul.f32 %v2209, %v2214
    %v2221 = vadd.f32 %v2219, %v2220
    %v2222 = vtanh.pop %v2221
    %v2223 = vmul.f32 %v2218, %v2222
    %v2224 = vpack.c.bf16 %v2223, %v2223
    %2225 = vmatprep.subr.bf16.mxu0 %v862
    %2226 = vmatpush1.bf16.msra.mxu0 %v861
    %2227 = vmatprep.subr.bf16.mxu0 %v858
    %2228 = vmatpush1.bf16.msra.mxu0 %v857
    %2229 = vmatprep.subr.bf16.mxu0 %v854
    %2230 = vmatpush1.bf16.msra.mxu0 %v853
    %2231 = vmatprep.subr.bf16.mxu0 %v850
    %2232 = vmatpush1.bf16.msra.mxu0 %v849
    %2233 = vmatprep.subr.bf16.mxu0 %v846
    %2234 = vmatpush1.bf16.msra.mxu0 %v845
    %2235 = vmatprep.subr.bf16.mxu0 %v842
    %2236 = vmatpush1.bf16.msra.mxu0 %v841
    %2237 = vmatprep.subr.bf16.mxu0 %v838
    %2238 = vmatpush1.bf16.msra.mxu0 %v837
    %2239 = vmatprep.subr.bf16.mxu0 %v834
    %2240 = vmatpush1.bf16.msra.mxu0 %v833
    %2241 = vmatprep.subr.bf16.mxu0 0
    %2242 = vmatpush2.bf16.msra.mxu0 0
    %2243 = vmatprep.subr.bf16.mxu0 0
    %2244 = vmatpush2.bf16.msra.mxu0 0
    %2245 = vmatprep.subr.bf16.mxu0 0
    %2246 = vmatpush2.bf16.msra.mxu0 0
    %2247 = vmatprep.subr.bf16.mxu0 0
    %2248 = vmatpush2.bf16.msra.mxu0 0
    %2249 = vmatprep.subr.bf16.mxu0 0
    %2250 = vmatpush2.bf16.msra.mxu0 0
    %2251 = vmatprep.subr.bf16.mxu0 0
    %2252 = vmatpush2.bf16.msra.mxu0 0
    %2253 = vmatprep.subr.bf16.mxu0 0
    %2254 = vmatpush2.bf16.msra.mxu0 0
    %2255 = vmatprep.subr.bf16.mxu0 0
    %2256 = vmatpush2.bf16.msra.mxu0 0
    %2257 = vmatprep.mubr.bf16.mxu0 0
    %2258 = vmatmul.mubr.bf16.gmra.mxu0 %v2119
    %v2259 = vpop.f32.mrf.mxu0
    %v2260 = vadd.f32 0.0, %v2259
    %v2261 = vpop.f32.mrf.mxu0
    %v2262 = vadd.f32 0.0, %v2261
    %v2263 = vpop.f32.mrf.mxu0
    %v2264 = vpop.f32.mrf.mxu0
    %2265 = vdwg.mxu0
    %2266 = vmatprep.subr.bf16.mxu0 %v864
    %2267 = vmatpush1.bf16.msra.mxu0 %v863
    %2268 = vmatprep.subr.bf16.mxu0 %v860
    %2269 = vmatpush1.bf16.msra.mxu0 %v859
    %2270 = vmatprep.subr.bf16.mxu0 %v856
    %2271 = vmatpush1.bf16.msra.mxu0 %v855
    %2272 = vmatprep.subr.bf16.mxu0 %v852
    %2273 = vmatpush1.bf16.msra.mxu0 %v851
    %2274 = vmatprep.subr.bf16.mxu0 %v848
    %2275 = vmatpush1.bf16.msra.mxu0 %v847
    %2276 = vmatprep.subr.bf16.mxu0 %v844
    %2277 = vmatpush1.bf16.msra.mxu0 %v843
    %2278 = vmatprep.subr.bf16.mxu0 %v840
    %2279 = vmatpush1.bf16.msra.mxu0 %v839
    %2280 = vmatprep.subr.bf16.mxu0 %v836
    %2281 = vmatpush1.bf16.msra.mxu0 %v835
    %2282 = vmatprep.subr.bf16.mxu0 0
    %2283 = vmatpush2.bf16.msra.mxu0 0
    %2284 = vmatprep.subr.bf16.mxu0 0
    %2285 = vmatpush2.bf16.msra.mxu0 0
    %2286 = vmatprep.subr.bf16.mxu0 0
    %2287 = vmatpush2.bf16.msra.mxu0 0
    %2288 = vmatprep.subr.bf16.mxu0 0
    %2289 = vmatpush2.bf16.msra.mxu0 0
    %2290 = vmatprep.subr.bf16.mxu0 0
    %2291 = vmatpush2.bf16.msra.mxu0 0
    %2292 = vmatprep.subr.bf16.mxu0 0
    %2293 = vmatpush2.bf16.msra.mxu0 0
    %2294 = vmatprep.subr.bf16.mxu0 0
    %2295 = vmatpush2.bf16.msra.mxu0 0
    %2296 = vmatprep.subr.bf16.mxu0 0
    %2297 = vmatpush2.bf16.msra.mxu0 0
    %2298 = vmatprep.mubr.bf16.mxu0 0
    %2299 = vmatmul.mubr.bf16.gmra.mxu0 %v2119
    %v2300 = vpop.f32.mrf.mxu0
    %v2301 = vadd.f32 0.0, %v2300
    %v2302 = vpop.f32.mrf.mxu0
    %v2303 = vadd.f32 0.0, %v2302
    %v2304 = vpop.f32.mrf.mxu0
    %v2305 = vpop.f32.mrf.mxu0
    %2306 = vdwg.mxu0
    %2307 = vmatprep.subr.bf16.mxu0 %v1104
    %2308 = vmatpush1.bf16.msra.mxu0 %v1103
    %2309 = vmatprep.subr.bf16.mxu0 %v1100
    %2310 = vmatpush1.bf16.msra.mxu0 %v1099
    %2311 = vmatprep.subr.bf16.mxu0 %v1096
    %2312 = vmatpush1.bf16.msra.mxu0 %v1095
    %2313 = vmatprep.subr.bf16.mxu0 %v1092
    %2314 = vmatpush1.bf16.msra.mxu0 %v1091
    %2315 = vmatprep.subr.bf16.mxu0 %v1088
    %2316 = vmatpush1.bf16.msra.mxu0 %v1087
    %2317 = vmatprep.subr.bf16.mxu0 %v1084
    %2318 = vmatpush1.bf16.msra.mxu0 %v1083
    %2319 = vmatprep.subr.bf16.mxu0 %v1080
    %2320 = vmatpush1.bf16.msra.mxu0 %v1079
    %2321 = vmatprep.subr.bf16.mxu0 %v1076
    %2322 = vmatpush1.bf16.msra.mxu0 %v1075
    %2323 = vmatprep.subr.bf16.mxu0 0
    %2324 = vmatpush2.bf16.msra.mxu0 0
    %2325 = vmatprep.subr.bf16.mxu0 0
    %2326 = vmatpush2.bf16.msra.mxu0 0
    %2327 = vmatprep.subr.bf16.mxu0 0
    %2328 = vmatpush2.bf16.msra.mxu0 0
    %2329 = vmatprep.subr.bf16.mxu0 0
    %2330 = vmatpush2.bf16.msra.mxu0 0
    %2331 = vmatprep.subr.bf16.mxu0 0
    %2332 = vmatpush2.bf16.msra.mxu0 0
    %2333 = vmatprep.subr.bf16.mxu0 0
    %2334 = vmatpush2.bf16.msra.mxu0 0
    %2335 = vmatprep.subr.bf16.mxu0 0
    %2336 = vmatpush2.bf16.msra.mxu0 0
    %2337 = vmatprep.subr.bf16.mxu0 0
    %2338 = vmatpush2.bf16.msra.mxu0 0
    %2339 = vmatprep.mubr.bf16.mxu0 0
    %2340 = vmatmul.mubr.bf16.gmra.mxu0 %v2224
    %v2341 = vpop.f32.mrf.mxu0
    %v2342 = vadd.f32 %v2260, %v2341
    %v2343 = vpop.f32.mrf.mxu0
    %v2344 = vadd.f32 %v2262, %v2343
    %v2345 = vpop.f32.mrf.mxu0
    %v2346 = vpop.f32.mrf.mxu0
    %2347 = vdwg.mxu0
    %2348 = vmatprep.subr.bf16.mxu0 %v1106
    %2349 = vmatpush1.bf16.msra.mxu0 %v1105
    %2350 = vmatprep.subr.bf16.mxu0 %v1102
    %2351 = vmatpush1.bf16.msra.mxu0 %v1101
    %2352 = vmatprep.subr.bf16.mxu0 %v1098
    %2353 = vmatpush1.bf16.msra.mxu0 %v1097
    %2354 = vmatprep.subr.bf16.mxu0 %v1094
    %2355 = vmatpush1.bf16.msra.mxu0 %v1093
    %2356 = vmatprep.subr.bf16.mxu0 %v1090
    %2357 = vmatpush1.bf16.msra.mxu0 %v1089
    %2358 = vmatprep.subr.bf16.mxu0 %v1086
    %2359 = vmatpush1.bf16.msra.mxu0 %v1085
    %2360 = vmatprep.subr.bf16.mxu0 %v1082
    %2361 = vmatpush1.bf16.msra.mxu0 %v1081
    %2362 = vmatprep.subr.bf16.mxu0 %v1078
    %2363 = vmatpush1.bf16.msra.mxu0 %v1077
    %2364 = vmatprep.subr.bf16.mxu0 0
    %2365 = vmatpush2.bf16.msra.mxu0 0
    %2366 = vmatprep.subr.bf16.mxu0 0
    %2367 = vmatpush2.bf16.msra.mxu0 0
    %2368 = vmatprep.subr.bf16.mxu0 0
    %2369 = vmatpush2.bf16.msra.mxu0 0
    %2370 = vmatprep.subr.bf16.mxu0 0
    %2371 = vmatpush2.bf16.msra.mxu0 0
    %2372 = vmatprep.subr.bf16.mxu0 0
    %2373 = vmatpush2.bf16.msra.mxu0 0
    %2374 = vmatprep.subr.bf16.mxu0 0
    %2375 = vmatpush2.bf16.msra.mxu0 0
    %2376 = vmatprep.subr.bf16.mxu0 0
    %2377 = vmatpush2.bf16.msra.mxu0 0
    %2378 = vmatprep.subr.bf16.mxu0 0
    %2379 = vmatpush2.bf16.msra.mxu0 0
    %2380 = vmatprep.mubr.bf16.mxu0 0
    %2381 = vmatmul.mubr.bf16.gmra.mxu0 %v2224
    %v2382 = vpop.f32.mrf.mxu0
    %v2383 = vadd.f32 %v2301, %v2382
    %v2384 = vpop.f32.mrf.mxu0
    %v2385 = vadd.f32 %v2303, %v2384
    %v2386 = vpop.f32.mrf.mxu0
    %v2387 = vpop.f32.mrf.mxu0
    %2388 = vdwg.mxu0
    %v2389 = vadd.f32 %v2342, %v170
    %v2390 = vadd.f32 %v2344, %v174
    %v2391 = vadd.f32 %v2383, %v178
    %v2392 = vadd.f32 %v2385, %v182
    %v2393 = vmul.f32 %v2389, 0.5
    %v2394 = vtanh.pop %v2393
    %v2395 = vmul.f32 %v2394, 0.5
    %v2396 = vadd.f32 %v2395, 0.5
    %v2397 = vmul.f32 %v2390, 0.5
    %v2398 = vtanh.pop %v2397
    %v2399 = vmul.f32 %v2398, 0.5
    %v2400 = vadd.f32 %v2399, 0.5
    %v2401 = vtanh.pop %v2391
    %v2402 = vmul.f32 %v2392, 0.5
    %v2403 = vtanh.pop %v2402
    %v2404 = vmul.f32 %v2403, 0.5
    %v2405 = vadd.f32 %v2404, 0.5
    %v2406 = vmul.f32 %v2400, %v2116
    %v2407 = vmul.f32 %v2396, %v2401
    %v2408 = vadd.f32 %v2406, %v2407
    %v2409 = vtanh.pop %v2408
    %v2410 = vmul.f32 %v2405, %v2409
    %v2411 = vpack.c.bf16 %v2410, %v2410
    %2412 = vmatprep.subr.bf16.mxu0 %v597
    %2413 = vmatpush1.bf16.msra.mxu0 %v596
    %2414 = vmatprep.subr.bf16.mxu0 %v593
    %2415 = vmatpush1.bf16.msra.mxu0 %v592
    %2416 = vmatprep.subr.bf16.mxu0 %v589
    %2417 = vmatpush1.bf16.msra.mxu0 %v588
    %2418 = vmatprep.subr.bf16.mxu0 %v585
    %2419 = vmatpush1.bf16.msra.mxu0 %v584
    %2420 = vmatprep.subr.bf16.mxu0 %v581
    %2421 = vmatpush1.bf16.msra.mxu0 %v580
    %2422 = vmatprep.subr.bf16.mxu0 %v577
    %2423 = vmatpush1.bf16.msra.mxu0 %v576
    %2424 = vmatprep.subr.bf16.mxu0 %v573
    %2425 = vmatpush1.bf16.msra.mxu0 %v572
    %2426 = vmatprep.subr.bf16.mxu0 %v569
    %2427 = vmatpush1.bf16.msra.mxu0 %v568
    %2428 = vmatprep.subr.bf16.mxu0 0
    %2429 = vmatpush2.bf16.msra.mxu0 0
    %2430 = vmatprep.subr.bf16.mxu0 0
    %2431 = vmatpush2.bf16.msra.mxu0 0
    %2432 = vmatprep.subr.bf16.mxu0 0
    %2433 = vmatpush2.bf16.msra.mxu0 0
    %2434 = vmatprep.subr.bf16.mxu0 0
    %2435 = vmatpush2.bf16.msra.mxu0 0
    %2436 = vmatprep.subr.bf16.mxu0 0
    %2437 = vmatpush2.bf16.msra.mxu0 0
    %2438 = vmatprep.subr.bf16.mxu0 0
    %2439 = vmatpush2.bf16.msra.mxu0 0
    %2440 = vmatprep.subr.bf16.mxu0 0
    %2441 = vmatpush2.bf16.msra.mxu0 0
    %2442 = vmatprep.subr.bf16.mxu0 0
    %2443 = vmatpush2.bf16.msra.mxu0 0
    %2444 = vmatprep.mubr.bf16.mxu0 0
    %2445 = vmatmul.mubr.bf16.gmra.mxu0 %v2224
    %v2446 = vpop.f32.mrf.mxu0
    %v2447 = vadd.f32 0.0, %v2446
    %v2448 = vpop.f32.mrf.mxu0
    %v2449 = vadd.f32 0.0, %v2448
    %v2450 = vpop.f32.mrf.mxu0
    %v2451 = vpop.f32.mrf.mxu0
    %2452 = vdwg.mxu0
    %2453 = vmatprep.subr.bf16.mxu0 %v599
    %2454 = vmatpush1.bf16.msra.mxu0 %v598
    %2455 = vmatprep.subr.bf16.mxu0 %v595
    %2456 = vmatpush1.bf16.msra.mxu0 %v594
    %2457 = vmatprep.subr.bf16.mxu0 %v591
    %2458 = vmatpush1.bf16.msra.mxu0 %v590
    %2459 = vmatprep.subr.bf16.mxu0 %v587
    %2460 = vmatpush1.bf16.msra.mxu0 %v586
    %2461 = vmatprep.subr.bf16.mxu0 %v583
    %2462 = vmatpush1.bf16.msra.mxu0 %v582
    %2463 = vmatprep.subr.bf16.mxu0 %v579
    %2464 = vmatpush1.bf16.msra.mxu0 %v578
    %2465 = vmatprep.subr.bf16.mxu0 %v575
    %2466 = vmatpush1.bf16.msra.mxu0 %v574
    %2467 = vmatprep.subr.bf16.mxu0 %v571
    %2468 = vmatpush1.bf16.msra.mxu0 %v570
    %2469 = vmatprep.subr.bf16.mxu0 0
    %2470 = vmatpush2.bf16.msra.mxu0 0
    %2471 = vmatprep.subr.bf16.mxu0 0
    %2472 = vmatpush2.bf16.msra.mxu0 0
    %2473 = vmatprep.subr.bf16.mxu0 0
    %2474 = vmatpush2.bf16.msra.mxu0 0
    %2475 = vmatprep.subr.bf16.mxu0 0
    %2476 = vmatpush2.bf16.msra.mxu0 0
    %2477 = vmatprep.subr.bf16.mxu0 0
    %2478 = vmatpush2.bf16.msra.mxu0 0
    %2479 = vmatprep.subr.bf16.mxu0 0
    %2480 = vmatpush2.bf16.msra.mxu0 0
    %2481 = vmatprep.subr.bf16.mxu0 0
    %2482 = vmatpush2.bf16.msra.mxu0 0
    %2483 = vmatprep.subr.bf16.mxu0 0
    %2484 = vmatpush2.bf16.msra.mxu0 0
    %2485 = vmatprep.mubr.bf16.mxu0 0
    %2486 = vmatmul.mubr.bf16.gmra.mxu0 %v2224
    %v2487 = vpop.f32.mrf.mxu0
    %v2488 = vadd.f32 0.0, %v2487
    %v2489 = vpop.f32.mrf.mxu0
    %v2490 = vadd.f32 0.0, %v2489
    %v2491 = vpop.f32.mrf.mxu0
    %v2492 = vpop.f32.mrf.mxu0
    %2493 = vdwg.mxu0
    %v2494 = vadd.f32 %v343, %v2447
    %v2495 = vadd.f32 %v345, %v2449
    %v2496 = vadd.f32 %v456, %v2488
    %v2497 = vadd.f32 %v458, %v2490
    %v2498 = vmul.f32 %v2494, 0.5
    %v2499 = vtanh.pop %v2498
    %v2500 = vmul.f32 %v2499, 0.5
    %v2501 = vadd.f32 %v2500, 0.5
    %v2502 = vmul.f32 %v2495, 0.5
    %v2503 = vtanh.pop %v2502
    %v2504 = vmul.f32 %v2503, 0.5
    %v2505 = vadd.f32 %v2504, 0.5
    %v2506 = vtanh.pop %v2496
    %v2507 = vmul.f32 %v2497, 0.5
    %v2508 = vtanh.pop %v2507
    %v2509 = vmul.f32 %v2508, 0.5
    %v2510 = vadd.f32 %v2509, 0.5
    %v2511 = vmul.f32 %v2505, %v2221
    %v2512 = vmul.f32 %v2501, %v2506
    %v2513 = vadd.f32 %v2511, %v2512
    %v2514 = vtanh.pop %v2513
    %v2515 = vmul.f32 %v2510, %v2514
    %v2516 = vpack.c.bf16 %v2515, %v2515
    %2517 = vmatprep.subr.bf16.mxu0 %v862
    %2518 = vmatpush1.bf16.msra.mxu0 %v861
    %2519 = vmatprep.subr.bf16.mxu0 %v858
    %2520 = vmatpush1.bf16.msra.mxu0 %v857
    %2521 = vmatprep.subr.bf16.mxu0 %v854
    %2522 = vmatpush1.bf16.msra.mxu0 %v853
    %2523 = vmatprep.subr.bf16.mxu0 %v850
    %2524 = vmatpush1.bf16.msra.mxu0 %v849
    %2525 = vmatprep.subr.bf16.mxu0 %v846
    %2526 = vmatpush1.bf16.msra.mxu0 %v845
    %2527 = vmatprep.subr.bf16.mxu0 %v842
    %2528 = vmatpush1.bf16.msra.mxu0 %v841
    %2529 = vmatprep.subr.bf16.mxu0 %v838
    %2530 = vmatpush1.bf16.msra.mxu0 %v837
    %2531 = vmatprep.subr.bf16.mxu0 %v834
    %2532 = vmatpush1.bf16.msra.mxu0 %v833
    %2533 = vmatprep.subr.bf16.mxu0 0
    %2534 = vmatpush2.bf16.msra.mxu0 0
    %2535 = vmatprep.subr.bf16.mxu0 0
    %2536 = vmatpush2.bf16.msra.mxu0 0
    %2537 = vmatprep.subr.bf16.mxu0 0
    %2538 = vmatpush2.bf16.msra.mxu0 0
    %2539 = vmatprep.subr.bf16.mxu0 0
    %2540 = vmatpush2.bf16.msra.mxu0 0
    %2541 = vmatprep.subr.bf16.mxu0 0
    %2542 = vmatpush2.bf16.msra.mxu0 0
    %2543 = vmatprep.subr.bf16.mxu0 0
    %2544 = vmatpush2.bf16.msra.mxu0 0
    %2545 = vmatprep.subr.bf16.mxu0 0
    %2546 = vmatpush2.bf16.msra.mxu0 0
    %2547 = vmatprep.subr.bf16.mxu0 0
    %2548 = vmatpush2.bf16.msra.mxu0 0
    %2549 = vmatprep.mubr.bf16.mxu0 0
    %2550 = vmatmul.mubr.bf16.gmra.mxu0 %v2411
    %v2551 = vpop.f32.mrf.mxu0
    %v2552 = vadd.f32 0.0, %v2551
    %v2553 = vpop.f32.mrf.mxu0
    %v2554 = vadd.f32 0.0, %v2553
    %v2555 = vpop.f32.mrf.mxu0
    %v2556 = vpop.f32.mrf.mxu0
    %2557 = vdwg.mxu0
    %2558 = vmatprep.subr.bf16.mxu0 %v864
    %2559 = vmatpush1.bf16.msra.mxu0 %v863
    %2560 = vmatprep.subr.bf16.mxu0 %v860
    %2561 = vmatpush1.bf16.msra.mxu0 %v859
    %2562 = vmatprep.subr.bf16.mxu0 %v856
    %2563 = vmatpush1.bf16.msra.mxu0 %v855
    %2564 = vmatprep.subr.bf16.mxu0 %v852
    %2565 = vmatpush1.bf16.msra.mxu0 %v851
    %2566 = vmatprep.subr.bf16.mxu0 %v848
    %2567 = vmatpush1.bf16.msra.mxu0 %v847
    %2568 = vmatprep.subr.bf16.mxu0 %v844
    %2569 = vmatpush1.bf16.msra.mxu0 %v843
    %2570 = vmatprep.subr.bf16.mxu0 %v840
    %2571 = vmatpush1.bf16.msra.mxu0 %v839
    %2572 = vmatprep.subr.bf16.mxu0 %v836
    %2573 = vmatpush1.bf16.msra.mxu0 %v835
    %2574 = vmatprep.subr.bf16.mxu0 0
    %2575 = vmatpush2.bf16.msra.mxu0 0
    %2576 = vmatprep.subr.bf16.mxu0 0
    %2577 = vmatpush2.bf16.msra.mxu0 0
    %2578 = vmatprep.subr.bf16.mxu0 0
    %2579 = vmatpush2.bf16.msra.mxu0 0
    %2580 = vmatprep.subr.bf16.mxu0 0
    %2581 = vmatpush2.bf16.msra.mxu0 0
    %2582 = vmatprep.subr.bf16.mxu0 0
    %2583 = vmatpush2.bf16.msra.mxu0 0
    %2584 = vmatprep.subr.bf16.mxu0 0
    %2585 = vmatpush2.bf16.msra.mxu0 0
    %2586 = vmatprep.subr.bf16.mxu0 0
    %2587 = vmatpush2.bf16.msra.mxu0 0
    %2588 = vmatprep.subr.bf16.mxu0 0
    %2589 = vmatpush2.bf16.msra.mxu0 0
    %2590 = vmatprep.mubr.bf16.mxu0 0
    %2591 = vmatmul.mubr.bf16.gmra.mxu0 %v2411
    %v2592 = vpop.f32.mrf.mxu0
    %v2593 = vadd.f32 0.0, %v2592
    %v2594 = vpop.f32.mrf.mxu0
    %v2595 = vadd.f32 0.0, %v2594
    %v2596 = vpop.f32.mrf.mxu0
    %v2597 = vpop.f32.mrf.mxu0
    %2598 = vdwg.mxu0
    %2599 = vmatprep.subr.bf16.mxu0 %v1104
    %2600 = vmatpush1.bf16.msra.mxu0 %v1103
    %2601 = vmatprep.subr.bf16.mxu0 %v1100
    %2602 = vmatpush1.bf16.msra.mxu0 %v1099
    %2603 = vmatprep.subr.bf16.mxu0 %v1096
    %2604 = vmatpush1.bf16.msra.mxu0 %v1095
    %2605 = vmatprep.subr.bf16.mxu0 %v1092
    %2606 = vmatpush1.bf16.msra.mxu0 %v1091
    %2607 = vmatprep.subr.bf16.mxu0 %v1088
    %2608 = vmatpush1.bf16.msra.mxu0 %v1087
    %2609 = vmatprep.subr.bf16.mxu0 %v1084
    %2610 = vmatpush1.bf16.msra.mxu0 %v1083
    %2611 = vmatprep.subr.bf16.mxu0 %v1080
    %2612 = vmatpush1.bf16.msra.mxu0 %v1079
    %2613 = vmatprep.subr.bf16.mxu0 %v1076
    %2614 = vmatpush1.bf16.msra.mxu0 %v1075
    %2615 = vmatprep.subr.bf16.mxu0 0
    %2616 = vmatpush2.bf16.msra.mxu0 0
    %2617 = vmatprep.subr.bf16.mxu0 0
    %2618 = vmatpush2.bf16.msra.mxu0 0
    %2619 = vmatprep.subr.bf16.mxu0 0
    %2620 = vmatpush2.bf16.msra.mxu0 0
    %2621 = vmatprep.subr.bf16.mxu0 0
    %2622 = vmatpush2.bf16.msra.mxu0 0
    %2623 = vmatprep.subr.bf16.mxu0 0
    %2624 = vmatpush2.bf16.msra.mxu0 0
    %2625 = vmatprep.subr.bf16.mxu0 0
    %2626 = vmatpush2.bf16.msra.mxu0 0
    %2627 = vmatprep.subr.bf16.mxu0 0
    %2628 = vmatpush2.bf16.msra.mxu0 0
    %2629 = vmatprep.subr.bf16.mxu0 0
    %2630 = vmatpush2.bf16.msra.mxu0 0
    %2631 = vmatprep.mubr.bf16.mxu0 0
    %2632 = vmatmul.mubr.bf16.gmra.mxu0 %v2516
    %v2633 = vpop.f32.mrf.mxu0
    %v2634 = vadd.f32 %v2552, %v2633
    %v2635 = vpop.f32.mrf.mxu0
    %v2636 = vadd.f32 %v2554, %v2635
    %v2637 = vpop.f32.mrf.mxu0
    %v2638 = vpop.f32.mrf.mxu0
    %2639 = vdwg.mxu0
    %2640 = vmatprep.subr.bf16.mxu0 %v1106
    %2641 = vmatpush1.bf16.msra.mxu0 %v1105
    %2642 = vmatprep.subr.bf16.mxu0 %v1102
    %2643 = vmatpush1.bf16.msra.mxu0 %v1101
    %2644 = vmatprep.subr.bf16.mxu0 %v1098
    %2645 = vmatpush1.bf16.msra.mxu0 %v1097
    %2646 = vmatprep.subr.bf16.mxu0 %v1094
    %2647 = vmatpush1.bf16.msra.mxu0 %v1093
    %2648 = vmatprep.subr.bf16.mxu0 %v1090
    %2649 = vmatpush1.bf16.msra.mxu0 %v1089
    %2650 = vmatprep.subr.bf16.mxu0 %v1086
    %2651 = vmatpush1.bf16.msra.mxu0 %v1085
    %2652 = vmatprep.subr.bf16.mxu0 %v1082
    %2653 = vmatpush1.bf16.msra.mxu0 %v1081
    %2654 = vmatprep.subr.bf16.mxu0 %v1078
    %2655 = vmatpush1.bf16.msra.mxu0 %v1077
    %2656 = vmatprep.subr.bf16.mxu0 0
    %2657 = vmatpush2.bf16.msra.mxu0 0
    %2658 = vmatprep.subr.bf16.mxu0 0
    %2659 = vmatpush2.bf16.msra.mxu0 0
    %2660 = vmatprep.subr.bf16.mxu0 0
    %2661 = vmatpush2.bf16.msra.mxu0 0
    %2662 = vmatprep.subr.bf16.mxu0 0
    %2663 = vmatpush2.bf16.msra.mxu0 0
    %2664 = vmatprep.subr.bf16.mxu0 0
    %2665 = vmatpush2.bf16.msra.mxu0 0
    %2666 = vmatprep.subr.bf16.mxu0 0
    %2667 = vmatpush2.bf16.msra.mxu0 0
    %2668 = vmatprep.subr.bf16.mxu0 0
    %2669 = vmatpush2.bf16.msra.mxu0 0
    %2670 = vmatprep.subr.bf16.mxu0 0
    %2671 = vmatpush2.bf16.msra.mxu0 0
    %2672 = vmatprep.mubr.bf16.mxu0 0
    %2673 = vmatmul.mubr.bf16.gmra.mxu0 %v2516
    %v2674 = vpop.f32.mrf.mxu0
    %v2675 = vadd.f32 %v2593, %v2674
    %v2676 = vpop.f32.mrf.mxu0
    %v2677 = vadd.f32 %v2595, %v2676
    %v2678 = vpop.f32.mrf.mxu0
    %v2679 = vpop.f32.mrf.mxu0
    %2680 = vdwg.mxu0
    %v2681 = vadd.f32 %v2634, %v170
    %v2682 = vadd.f32 %v2636, %v174
    %v2683 = vadd.f32 %v2675, %v178
    %v2684 = vadd.f32 %v2677, %v182
    %v2685 = vmul.f32 %v2681, 0.5
    %v2686 = vtanh.pop %v2685
    %v2687 = vmul.f32 %v2686, 0.5
    %v2688 = vadd.f32 %v2687, 0.5
    %v2689 = vmul.f32 %v2682, 0.5
    %v2690 = vtanh.pop %v2689
    %v2691 = vmul.f32 %v2690, 0.5
    %v2692 = vadd.f32 %v2691, 0.5
    %v2693 = vtanh.pop %v2683
    %v2694 = vmul.f32 %v2684, 0.5
    %v2695 = vtanh.pop %v2694
    %v2696 = vmul.f32 %v2695, 0.5
    %v2697 = vadd.f32 %v2696, 0.5
    %v2698 = vmul.f32 %v2692, %v2408
    %v2699 = vmul.f32 %v2688, %v2693
    %v2700 = vadd.f32 %v2698, %v2699
    %v2701 = vtanh.pop %v2700
    %v2702 = vmul.f32 %v2697, %v2701
    %v2703 = vpack.c.bf16 %v2702, %v2702
    %2704 = vmatprep.subr.bf16.mxu0 %v597
    %2705 = vmatpush1.bf16.msra.mxu0 %v596
    %2706 = vmatprep.subr.bf16.mxu0 %v593
    %2707 = vmatpush1.bf16.msra.mxu0 %v592
    %2708 = vmatprep.subr.bf16.mxu0 %v589
    %2709 = vmatpush1.bf16.msra.mxu0 %v588
    %2710 = vmatprep.subr.bf16.mxu0 %v585
    %2711 = vmatpush1.bf16.msra.mxu0 %v584
    %2712 = vmatprep.subr.bf16.mxu0 %v581
    %2713 = vmatpush1.bf16.msra.mxu0 %v580
    %2714 = vmatprep.subr.bf16.mxu0 %v577
    %2715 = vmatpush1.bf16.msra.mxu0 %v576
    %2716 = vmatprep.subr.bf16.mxu0 %v573
    %2717 = vmatpush1.bf16.msra.mxu0 %v572
    %2718 = vmatprep.subr.bf16.mxu0 %v569
    %2719 = vmatpush1.bf16.msra.mxu0 %v568
    %2720 = vmatprep.subr.bf16.mxu0 0
    %2721 = vmatpush2.bf16.msra.mxu0 0
    %2722 = vmatprep.subr.bf16.mxu0 0
    %2723 = vmatpush2.bf16.msra.mxu0 0
    %2724 = vmatprep.subr.bf16.mxu0 0
    %2725 = vmatpush2.bf16.msra.mxu0 0
    %2726 = vmatprep.subr.bf16.mxu0 0
    %2727 = vmatpush2.bf16.msra.mxu0 0
    %2728 = vmatprep.subr.bf16.mxu0 0
    %2729 = vmatpush2.bf16.msra.mxu0 0
    %2730 = vmatprep.subr.bf16.mxu0 0
    %2731 = vmatpush2.bf16.msra.mxu0 0
    %2732 = vmatprep.subr.bf16.mxu0 0
    %2733 = vmatpush2.bf16.msra.mxu0 0
    %2734 = vmatprep.subr.bf16.mxu0 0
    %2735 = vmatpush2.bf16.msra.mxu0 0
    %2736 = vmatprep.mubr.bf16.mxu0 0
    %2737 = vmatmul.mubr.bf16.gmra.mxu0 %v2516
    %v2738 = vpop.f32.mrf.mxu0
    %v2739 = vadd.f32 0.0, %v2738
    %v2740 = vpop.f32.mrf.mxu0
    %v2741 = vadd.f32 0.0, %v2740
    %v2742 = vpop.f32.mrf.mxu0
    %v2743 = vpop.f32.mrf.mxu0
    %2744 = vdwg.mxu0
    %2745 = vmatprep.subr.bf16.mxu0 %v599
    %2746 = vmatpush1.bf16.msra.mxu0 %v598
    %2747 = vmatprep.subr.bf16.mxu0 %v595
    %2748 = vmatpush1.bf16.msra.mxu0 %v594
    %2749 = vmatprep.subr.bf16.mxu0 %v591
    %2750 = vmatpush1.bf16.msra.mxu0 %v590
    %2751 = vmatprep.subr.bf16.mxu0 %v587
    %2752 = vmatpush1.bf16.msra.mxu0 %v586
    %2753 = vmatprep.subr.bf16.mxu0 %v583
    %2754 = vmatpush1.bf16.msra.mxu0 %v582
    %2755 = vmatprep.subr.bf16.mxu0 %v579
    %2756 = vmatpush1.bf16.msra.mxu0 %v578
    %2757 = vmatprep.subr.bf16.mxu0 %v575
    %2758 = vmatpush1.bf16.msra.mxu0 %v574
    %2759 = vmatprep.subr.bf16.mxu0 %v571
    %2760 = vmatpush1.bf16.msra.mxu0 %v570
    %2761 = vmatprep.subr.bf16.mxu0 0
    %2762 = vmatpush2.bf16.msra.mxu0 0
    %2763 = vmatprep.subr.bf16.mxu0 0
    %2764 = vmatpush2.bf16.msra.mxu0 0
    %2765 = vmatprep.subr.bf16.mxu0 0
    %2766 = vmatpush2.bf16.msra.mxu0 0
    %2767 = vmatprep.subr.bf16.mxu0 0
    %2768 = vmatpush2.bf16.msra.mxu0 0
    %2769 = vmatprep.subr.bf16.mxu0 0
    %2770 = vmatpush2.bf16.msra.mxu0 0
    %2771 = vmatprep.subr.bf16.mxu0 0
    %2772 = vmatpush2.bf16.msra.mxu0 0
    %2773 = vmatprep.subr.bf16.mxu0 0
    %2774 = vmatpush2.bf16.msra.mxu0 0
    %2775 = vmatprep.subr.bf16.mxu0 0
    %2776 = vmatpush2.bf16.msra.mxu0 0
    %2777 = vmatprep.mubr.bf16.mxu0 0
    %2778 = vmatmul.mubr.bf16.gmra.mxu0 %v2516
    %v2779 = vpop.f32.mrf.mxu0
    %v2780 = vadd.f32 0.0, %v2779
    %v2781 = vpop.f32.mrf.mxu0
    %v2782 = vadd.f32 0.0, %v2781
    %v2783 = vpop.f32.mrf.mxu0
    %v2784 = vpop.f32.mrf.mxu0
    %2785 = vdwg.mxu0
    %v2786 = vadd.f32 %v349, %v2739
    %v2787 = vadd.f32 %v351, %v2741
    %v2788 = vadd.f32 %v462, %v2780
    %v2789 = vadd.f32 %v464, %v2782
    %v2790 = vmul.f32 %v2786, 0.5
    %v2791 = vtanh.pop %v2790
    %v2792 = vmul.f32 %v2791, 0.5
    %v2793 = vadd.f32 %v2792, 0.5
    %v2794 = vmul.f32 %v2787, 0.5
    %v2795 = vtanh.pop %v2794
    %v2796 = vmul.f32 %v2795, 0.5
    %v2797 = vadd.f32 %v2796, 0.5
    %v2798 = vtanh.pop %v2788
    %v2799 = vmul.f32 %v2789, 0.5
    %v2800 = vtanh.pop %v2799
    %v2801 = vmul.f32 %v2800, 0.5
    %v2802 = vadd.f32 %v2801, 0.5
    %v2803 = vmul.f32 %v2797, %v2513
    %v2804 = vmul.f32 %v2793, %v2798
    %v2805 = vadd.f32 %v2803, %v2804
    %v2806 = vtanh.pop %v2805
    %v2807 = vmul.f32 %v2802, %v2806
    %v2808 = vpack.c.bf16 %v2807, %v2807
    %2809 = vmatprep.subr.bf16.mxu0 %v862
    %2810 = vmatpush1.bf16.msra.mxu0 %v861
    %2811 = vmatprep.subr.bf16.mxu0 %v858
    %2812 = vmatpush1.bf16.msra.mxu0 %v857
    %2813 = vmatprep.subr.bf16.mxu0 %v854
    %2814 = vmatpush1.bf16.msra.mxu0 %v853
    %2815 = vmatprep.subr.bf16.mxu0 %v850
    %2816 = vmatpush1.bf16.msra.mxu0 %v849
    %2817 = vmatprep.subr.bf16.mxu0 %v846
    %2818 = vmatpush1.bf16.msra.mxu0 %v845
    %2819 = vmatprep.subr.bf16.mxu0 %v842
    %2820 = vmatpush1.bf16.msra.mxu0 %v841
    %2821 = vmatprep.subr.bf16.mxu0 %v838
    %2822 = vmatpush1.bf16.msra.mxu0 %v837
    %2823 = vmatprep.subr.bf16.mxu0 %v834
    %2824 = vmatpush1.bf16.msra.mxu0 %v833
    %2825 = vmatprep.subr.bf16.mxu0 0
    %2826 = vmatpush2.bf16.msra.mxu0 0
    %2827 = vmatprep.subr.bf16.mxu0 0
    %2828 = vmatpush2.bf16.msra.mxu0 0
    %2829 = vmatprep.subr.bf16.mxu0 0
    %2830 = vmatpush2.bf16.msra.mxu0 0
    %2831 = vmatprep.subr.bf16.mxu0 0
    %2832 = vmatpush2.bf16.msra.mxu0 0
    %2833 = vmatprep.subr.bf16.mxu0 0
    %2834 = vmatpush2.bf16.msra.mxu0 0
    %2835 = vmatprep.subr.bf16.mxu0 0
    %2836 = vmatpush2.bf16.msra.mxu0 0
    %2837 = vmatprep.subr.bf16.mxu0 0
    %2838 = vmatpush2.bf16.msra.mxu0 0
    %2839 = vmatprep.subr.bf16.mxu0 0
    %2840 = vmatpush2.bf16.msra.mxu0 0
    %2841 = vmatprep.mubr.bf16.mxu0 0
    %2842 = vmatmul.mubr.bf16.gmra.mxu0 %v2703
    %v2843 = vpop.f32.mrf.mxu0
    %v2844 = vadd.f32 0.0, %v2843
    %v2845 = vpop.f32.mrf.mxu0
    %v2846 = vadd.f32 0.0, %v2845
    %v2847 = vpop.f32.mrf.mxu0
    %v2848 = vpop.f32.mrf.mxu0
    %2849 = vdwg.mxu0
    %2850 = vmatprep.subr.bf16.mxu0 %v864
    %2851 = vmatpush1.bf16.msra.mxu0 %v863
    %2852 = vmatprep.subr.bf16.mxu0 %v860
    %2853 = vmatpush1.bf16.msra.mxu0 %v859
    %2854 = vmatprep.subr.bf16.mxu0 %v856
    %2855 = vmatpush1.bf16.msra.mxu0 %v855
    %2856 = vmatprep.subr.bf16.mxu0 %v852
    %2857 = vmatpush1.bf16.msra.mxu0 %v851
    %2858 = vmatprep.subr.bf16.mxu0 %v848
    %2859 = vmatpush1.bf16.msra.mxu0 %v847
    %2860 = vmatprep.subr.bf16.mxu0 %v844
    %2861 = vmatpush1.bf16.msra.mxu0 %v843
    %2862 = vmatprep.subr.bf16.mxu0 %v840
    %2863 = vmatpush1.bf16.msra.mxu0 %v839
    %2864 = vmatprep.subr.bf16.mxu0 %v836
    %2865 = vmatpush1.bf16.msra.mxu0 %v835
    %2866 = vmatprep.subr.bf16.mxu0 0
    %2867 = vmatpush2.bf16.msra.mxu0 0
    %2868 = vmatprep.subr.bf16.mxu0 0
    %2869 = vmatpush2.bf16.msra.mxu0 0
    %2870 = vmatprep.subr.bf16.mxu0 0
    %2871 = vmatpush2.bf16.msra.mxu0 0
    %2872 = vmatprep.subr.bf16.mxu0 0
    %2873 = vmatpush2.bf16.msra.mxu0 0
    %2874 = vmatprep.subr.bf16.mxu0 0
    %2875 = vmatpush2.bf16.msra.mxu0 0
    %2876 = vmatprep.subr.bf16.mxu0 0
    %2877 = vmatpush2.bf16.msra.mxu0 0
    %2878 = vmatprep.subr.bf16.mxu0 0
    %2879 = vmatpush2.bf16.msra.mxu0 0
    %2880 = vmatprep.subr.bf16.mxu0 0
    %2881 = vmatpush2.bf16.msra.mxu0 0
    %2882 = vmatprep.mubr.bf16.mxu0 0
    %2883 = vmatmul.mubr.bf16.gmra.mxu0 %v2703
    %v2884 = vpop.f32.mrf.mxu0
    %v2885 = vadd.f32 0.0, %v2884
    %v2886 = vpop.f32.mrf.mxu0
    %v2887 = vadd.f32 0.0, %v2886
    %v2888 = vpop.f32.mrf.mxu0
    %v2889 = vpop.f32.mrf.mxu0
    %2890 = vdwg.mxu0
    %2891 = vmatprep.subr.bf16.mxu0 %v1104
    %2892 = vmatpush1.bf16.msra.mxu0 %v1103
    %2893 = vmatprep.subr.bf16.mxu0 %v1100
    %2894 = vmatpush1.bf16.msra.mxu0 %v1099
    %2895 = vmatprep.subr.bf16.mxu0 %v1096
    %2896 = vmatpush1.bf16.msra.mxu0 %v1095
    %2897 = vmatprep.subr.bf16.mxu0 %v1092
    %2898 = vmatpush1.bf16.msra.mxu0 %v1091
    %2899 = vmatprep.subr.bf16.mxu0 %v1088
    %2900 = vmatpush1.bf16.msra.mxu0 %v1087
    %2901 = vmatprep.subr.bf16.mxu0 %v1084
    %2902 = vmatpush1.bf16.msra.mxu0 %v1083
    %2903 = vmatprep.subr.bf16.mxu0 %v1080
    %2904 = vmatpush1.bf16.msra.mxu0 %v1079
    %2905 = vmatprep.subr.bf16.mxu0 %v1076
    %2906 = vmatpush1.bf16.msra.mxu0 %v1075
    %2907 = vmatprep.subr.bf16.mxu0 0
    %2908 = vmatpush2.bf16.msra.mxu0 0
    %2909 = vmatprep.subr.bf16.mxu0 0
    %2910 = vmatpush2.bf16.msra.mxu0 0
    %2911 = vmatprep.subr.bf16.mxu0 0
    %2912 = vmatpush2.bf16.msra.mxu0 0
    %2913 = vmatprep.subr.bf16.mxu0 0
    %2914 = vmatpush2.bf16.msra.mxu0 0
    %2915 = vmatprep.subr.bf16.mxu0 0
    %2916 = vmatpush2.bf16.msra.mxu0 0
    %2917 = vmatprep.subr.bf16.mxu0 0
    %2918 = vmatpush2.bf16.msra.mxu0 0
    %2919 = vmatprep.subr.bf16.mxu0 0
    %2920 = vmatpush2.bf16.msra.mxu0 0
    %2921 = vmatprep.subr.bf16.mxu0 0
    %2922 = vmatpush2.bf16.msra.mxu0 0
    %2923 = vmatprep.mubr.bf16.mxu0 0
    %2924 = vmatmul.mubr.bf16.gmra.mxu0 %v2808
    %v2925 = vpop.f32.mrf.mxu0
    %v2926 = vadd.f32 %v2844, %v2925
    %v2927 = vpop.f32.mrf.mxu0
    %v2928 = vadd.f32 %v2846, %v2927
    %v2929 = vpop.f32.mrf.mxu0
    %v2930 = vpop.f32.mrf.mxu0
    %2931 = vdwg.mxu0
    %2932 = vmatprep.subr.bf16.mxu0 %v1106
    %2933 = vmatpush1.bf16.msra.mxu0 %v1105
    %2934 = vmatprep.subr.bf16.mxu0 %v1102
    %2935 = vmatpush1.bf16.msra.mxu0 %v1101
    %2936 = vmatprep.subr.bf16.mxu0 %v1098
    %2937 = vmatpush1.bf16.msra.mxu0 %v1097
    %2938 = vmatprep.subr.bf16.mxu0 %v1094
    %2939 = vmatpush1.bf16.msra.mxu0 %v1093
    %2940 = vmatprep.subr.bf16.mxu0 %v1090
    %2941 = vmatpush1.bf16.msra.mxu0 %v1089
    %2942 = vmatprep.subr.bf16.mxu0 %v1086
    %2943 = vmatpush1.bf16.msra.mxu0 %v1085
    %2944 = vmatprep.subr.bf16.mxu0 %v1082
    %2945 = vmatpush1.bf16.msra.mxu0 %v1081
    %2946 = vmatprep.subr.bf16.mxu0 %v1078
    %2947 = vmatpush1.bf16.msra.mxu0 %v1077
    %2948 = vmatprep.subr.bf16.mxu0 0
    %2949 = vmatpush2.bf16.msra.mxu0 0
    %2950 = vmatprep.subr.bf16.mxu0 0
    %2951 = vmatpush2.bf16.msra.mxu0 0
    %2952 = vmatprep.subr.bf16.mxu0 0
    %2953 = vmatpush2.bf16.msra.mxu0 0
    %2954 = vmatprep.subr.bf16.mxu0 0
    %2955 = vmatpush2.bf16.msra.mxu0 0
    %2956 = vmatprep.subr.bf16.mxu0 0
    %2957 = vmatpush2.bf16.msra.mxu0 0
    %2958 = vmatprep.subr.bf16.mxu0 0
    %2959 = vmatpush2.bf16.msra.mxu0 0
    %2960 = vmatprep.subr.bf16.mxu0 0
    %2961 = vmatpush2.bf16.msra.mxu0 0
    %2962 = vmatprep.subr.bf16.mxu0 0
    %2963 = vmatpush2.bf16.msra.mxu0 0
    %2964 = vmatprep.mubr.bf16.mxu0 0
    %2965 = vmatmul.mubr.bf16.gmra.mxu0 %v2808
    %v2966 = vpop.f32.mrf.mxu0
    %v2967 = vadd.f32 %v2885, %v2966
    %v2968 = vpop.f32.mrf.mxu0
    %v2969 = vadd.f32 %v2887, %v2968
    %v2970 = vpop.f32.mrf.mxu0
    %v2971 = vpop.f32.mrf.mxu0
    %2972 = vdwg.mxu0
    %v2973 = vadd.f32 %v2926, %v170
    %v2974 = vadd.f32 %v2928, %v174
    %v2975 = vadd.f32 %v2967, %v178
    %v2976 = vadd.f32 %v2969, %v182
    %v2977 = vmul.f32 %v2973, 0.5
    %v2978 = vtanh.pop %v2977
    %v2979 = vmul.f32 %v2978, 0.5
    %v2980 = vadd.f32 %v2979, 0.5
    %v2981 = vmul.f32 %v2974, 0.5
    %v2982 = vtanh.pop %v2981
    %v2983 = vmul.f32 %v2982, 0.5
    %v2984 = vadd.f32 %v2983, 0.5
    %v2985 = vtanh.pop %v2975
    %v2986 = vmul.f32 %v2976, 0.5
    %v2987 = vtanh.pop %v2986
    %v2988 = vmul.f32 %v2987, 0.5
    %v2989 = vadd.f32 %v2988, 0.5
    %v2990 = vmul.f32 %v2984, %v2700
    %v2991 = vmul.f32 %v2980, %v2985
    %v2992 = vadd.f32 %v2990, %v2991
    %v2993 = vtanh.pop %v2992
    %v2994 = vmul.f32 %v2989, %v2993
    %v2995 = vpack.c.bf16 %v2994, %v2994
    %2996 = vmatprep.subr.bf16.mxu0 %v597
    %2997 = vmatpush1.bf16.msra.mxu0 %v596
    %2998 = vmatprep.subr.bf16.mxu0 %v593
    %2999 = vmatpush1.bf16.msra.mxu0 %v592
    %3000 = vmatprep.subr.bf16.mxu0 %v589
    %3001 = vmatpush1.bf16.msra.mxu0 %v588
    %3002 = vmatprep.subr.bf16.mxu0 %v585
    %3003 = vmatpush1.bf16.msra.mxu0 %v584
    %3004 = vmatprep.subr.bf16.mxu0 %v581
    %3005 = vmatpush1.bf16.msra.mxu0 %v580
    %3006 = vmatprep.subr.bf16.mxu0 %v577
    %3007 = vmatpush1.bf16.msra.mxu0 %v576
    %3008 = vmatprep.subr.bf16.mxu0 %v573
    %3009 = vmatpush1.bf16.msra.mxu0 %v572
    %3010 = vmatprep.subr.bf16.mxu0 %v569
    %3011 = vmatpush1.bf16.msra.mxu0 %v568
    %3012 = vmatprep.subr.bf16.mxu0 0
    %3013 = vmatpush2.bf16.msra.mxu0 0
    %3014 = vmatprep.subr.bf16.mxu0 0
    %3015 = vmatpush2.bf16.msra.mxu0 0
    %3016 = vmatprep.subr.bf16.mxu0 0
    %3017 = vmatpush2.bf16.msra.mxu0 0
    %3018 = vmatprep.subr.bf16.mxu0 0
    %3019 = vmatpush2.bf16.msra.mxu0 0
    %3020 = vmatprep.subr.bf16.mxu0 0
    %3021 = vmatpush2.bf16.msra.mxu0 0
    %3022 = vmatprep.subr.bf16.mxu0 0
    %3023 = vmatpush2.bf16.msra.mxu0 0
    %3024 = vmatprep.subr.bf16.mxu0 0
    %3025 = vmatpush2.bf16.msra.mxu0 0
    %3026 = vmatprep.subr.bf16.mxu0 0
    %3027 = vmatpush2.bf16.msra.mxu0 0
    %3028 = vmatprep.mubr.bf16.mxu0 0
    %3029 = vmatmul.mubr.bf16.gmra.mxu0 %v2808
    %v3030 = vpop.f32.mrf.mxu0
    %v3031 = vadd.f32 0.0, %v3030
    %v3032 = vpop.f32.mrf.mxu0
    %v3033 = vadd.f32 0.0, %v3032
    %v3034 = vpop.f32.mrf.mxu0
    %v3035 = vpop.f32.mrf.mxu0
    %3036 = vdwg.mxu0
    %3037 = vmatprep.subr.bf16.mxu0 %v599
    %3038 = vmatpush1.bf16.msra.mxu0 %v598
    %3039 = vmatprep.subr.bf16.mxu0 %v595
    %3040 = vmatpush1.bf16.msra.mxu0 %v594
    %3041 = vmatprep.subr.bf16.mxu0 %v591
    %3042 = vmatpush1.bf16.msra.mxu0 %v590
    %3043 = vmatprep.subr.bf16.mxu0 %v587
    %3044 = vmatpush1.bf16.msra.mxu0 %v586
    %3045 = vmatprep.subr.bf16.mxu0 %v583
    %3046 = vmatpush1.bf16.msra.mxu0 %v582
    %3047 = vmatprep.subr.bf16.mxu0 %v579
    %3048 = vmatpush1.bf16.msra.mxu0 %v578
    %3049 = vmatprep.subr.bf16.mxu0 %v575
    %3050 = vmatpush1.bf16.msra.mxu0 %v574
    %3051 = vmatprep.subr.bf16.mxu0 %v571
    %3052 = vmatpush1.bf16.msra.mxu0 %v570
    %3053 = vmatprep.subr.bf16.mxu0 0
    %3054 = vmatpush2.bf16.msra.mxu0 0
    %3055 = vmatprep.subr.bf16.mxu0 0
    %3056 = vmatpush2.bf16.msra.mxu0 0
    %3057 = vmatprep.subr.bf16.mxu0 0
    %3058 = vmatpush2.bf16.msra.mxu0 0
    %3059 = vmatprep.subr.bf16.mxu0 0
    %3060 = vmatpush2.bf16.msra.mxu0 0
    %3061 = vmatprep.subr.bf16.mxu0 0
    %3062 = vmatpush2.bf16.msra.mxu0 0
    %3063 = vmatprep.subr.bf16.mxu0 0
    %3064 = vmatpush2.bf16.msra.mxu0 0
    %3065 = vmatprep.subr.bf16.mxu0 0
    %3066 = vmatpush2.bf16.msra.mxu0 0
    %3067 = vmatprep.subr.bf16.mxu0 0
    %3068 = vmatpush2.bf16.msra.mxu0 0
    %3069 = vmatprep.mubr.bf16.mxu0 0
    %3070 = vmatmul.mubr.bf16.gmra.mxu0 %v2808
    %v3071 = vpop.f32.mrf.mxu0
    %v3072 = vadd.f32 0.0, %v3071
    %v3073 = vpop.f32.mrf.mxu0
    %v3074 = vadd.f32 0.0, %v3073
    %v3075 = vpop.f32.mrf.mxu0
    %v3076 = vpop.f32.mrf.mxu0
    %3077 = vdwg.mxu0
    %v3078 = vadd.f32 %v355, %v3031
    %v3079 = vadd.f32 %v357, %v3033
    %v3080 = vadd.f32 %v468, %v3072
    %v3081 = vadd.f32 %v470, %v3074
    %v3082 = vmul.f32 %v3078, 0.5
    %v3083 = vtanh.pop %v3082
    %v3084 = vmul.f32 %v3083, 0.5
    %v3085 = vadd.f32 %v3084, 0.5
    %v3086 = vmul.f32 %v3079, 0.5
    %v3087 = vtanh.pop %v3086
    %v3088 = vmul.f32 %v3087, 0.5
    %v3089 = vadd.f32 %v3088, 0.5
    %v3090 = vtanh.pop %v3080
    %v3091 = vmul.f32 %v3081, 0.5
    %v3092 = vtanh.pop %v3091
    %v3093 = vmul.f32 %v3092, 0.5
    %v3094 = vadd.f32 %v3093, 0.5
    %v3095 = vmul.f32 %v3089, %v2805
    %v3096 = vmul.f32 %v3085, %v3090
    %v3097 = vadd.f32 %v3095, %v3096
    %v3098 = vtanh.pop %v3097
    %v3099 = vmul.f32 %v3094, %v3098
    %v3100 = vpack.c.bf16 %v3099, %v3099
    %3101 = vmatprep.subr.bf16.mxu0 %v862
    %3102 = vmatpush1.bf16.msra.mxu0 %v861
    %3103 = vmatprep.subr.bf16.mxu0 %v858
    %3104 = vmatpush1.bf16.msra.mxu0 %v857
    %3105 = vmatprep.subr.bf16.mxu0 %v854
    %3106 = vmatpush1.bf16.msra.mxu0 %v853
    %3107 = vmatprep.subr.bf16.mxu0 %v850
    %3108 = vmatpush1.bf16.msra.mxu0 %v849
    %3109 = vmatprep.subr.bf16.mxu0 %v846
    %3110 = vmatpush1.bf16.msra.mxu0 %v845
    %3111 = vmatprep.subr.bf16.mxu0 %v842
    %3112 = vmatpush1.bf16.msra.mxu0 %v841
    %3113 = vmatprep.subr.bf16.mxu0 %v838
    %3114 = vmatpush1.bf16.msra.mxu0 %v837
    %3115 = vmatprep.subr.bf16.mxu0 %v834
    %3116 = vmatpush1.bf16.msra.mxu0 %v833
    %3117 = vmatprep.subr.bf16.mxu0 0
    %3118 = vmatpush2.bf16.msra.mxu0 0
    %3119 = vmatprep.subr.bf16.mxu0 0
    %3120 = vmatpush2.bf16.msra.mxu0 0
    %3121 = vmatprep.subr.bf16.mxu0 0
    %3122 = vmatpush2.bf16.msra.mxu0 0
    %3123 = vmatprep.subr.bf16.mxu0 0
    %3124 = vmatpush2.bf16.msra.mxu0 0
    %3125 = vmatprep.subr.bf16.mxu0 0
    %3126 = vmatpush2.bf16.msra.mxu0 0
    %3127 = vmatprep.subr.bf16.mxu0 0
    %3128 = vmatpush2.bf16.msra.mxu0 0
    %3129 = vmatprep.subr.bf16.mxu0 0
    %3130 = vmatpush2.bf16.msra.mxu0 0
    %3131 = vmatprep.subr.bf16.mxu0 0
    %3132 = vmatpush2.bf16.msra.mxu0 0
    %3133 = vmatprep.mubr.bf16.mxu0 0
    %3134 = vmatmul.mubr.bf16.gmra.mxu0 %v2995
    %v3135 = vpop.f32.mrf.mxu0
    %v3136 = vadd.f32 0.0, %v3135
    %v3137 = vpop.f32.mrf.mxu0
    %v3138 = vadd.f32 0.0, %v3137
    %v3139 = vpop.f32.mrf.mxu0
    %v3140 = vpop.f32.mrf.mxu0
    %3141 = vdwg.mxu0
    %3142 = vmatprep.subr.bf16.mxu0 %v864
    %3143 = vmatpush1.bf16.msra.mxu0 %v863
    %3144 = vmatprep.subr.bf16.mxu0 %v860
    %3145 = vmatpush1.bf16.msra.mxu0 %v859
    %3146 = vmatprep.subr.bf16.mxu0 %v856
    %3147 = vmatpush1.bf16.msra.mxu0 %v855
    %3148 = vmatprep.subr.bf16.mxu0 %v852
    %3149 = vmatpush1.bf16.msra.mxu0 %v851
    %3150 = vmatprep.subr.bf16.mxu0 %v848
    %3151 = vmatpush1.bf16.msra.mxu0 %v847
    %3152 = vmatprep.subr.bf16.mxu0 %v844
    %3153 = vmatpush1.bf16.msra.mxu0 %v843
    %3154 = vmatprep.subr.bf16.mxu0 %v840
    %3155 = vmatpush1.bf16.msra.mxu0 %v839
    %3156 = vmatprep.subr.bf16.mxu0 %v836
    %3157 = vmatpush1.bf16.msra.mxu0 %v835
    %3158 = vmatprep.subr.bf16.mxu0 0
    %3159 = vmatpush2.bf16.msra.mxu0 0
    %3160 = vmatprep.subr.bf16.mxu0 0
    %3161 = vmatpush2.bf16.msra.mxu0 0
    %3162 = vmatprep.subr.bf16.mxu0 0
    %3163 = vmatpush2.bf16.msra.mxu0 0
    %3164 = vmatprep.subr.bf16.mxu0 0
    %3165 = vmatpush2.bf16.msra.mxu0 0
    %3166 = vmatprep.subr.bf16.mxu0 0
    %3167 = vmatpush2.bf16.msra.mxu0 0
    %3168 = vmatprep.subr.bf16.mxu0 0
    %3169 = vmatpush2.bf16.msra.mxu0 0
    %3170 = vmatprep.subr.bf16.mxu0 0
    %3171 = vmatpush2.bf16.msra.mxu0 0
    %3172 = vmatprep.subr.bf16.mxu0 0
    %3173 = vmatpush2.bf16.msra.mxu0 0
    %3174 = vmatprep.mubr.bf16.mxu0 0
    %3175 = vmatmul.mubr.bf16.gmra.mxu0 %v2995
    %v3176 = vpop.f32.mrf.mxu0
    %v3177 = vadd.f32 0.0, %v3176
    %v3178 = vpop.f32.mrf.mxu0
    %v3179 = vadd.f32 0.0, %v3178
    %v3180 = vpop.f32.mrf.mxu0
    %v3181 = vpop.f32.mrf.mxu0
    %3182 = vdwg.mxu0
    %3183 = vmatprep.subr.bf16.mxu0 %v1104
    %3184 = vmatpush1.bf16.msra.mxu0 %v1103
    %3185 = vmatprep.subr.bf16.mxu0 %v1100
    %3186 = vmatpush1.bf16.msra.mxu0 %v1099
    %3187 = vmatprep.subr.bf16.mxu0 %v1096
    %3188 = vmatpush1.bf16.msra.mxu0 %v1095
    %3189 = vmatprep.subr.bf16.mxu0 %v1092
    %3190 = vmatpush1.bf16.msra.mxu0 %v1091
    %3191 = vmatprep.subr.bf16.mxu0 %v1088
    %3192 = vmatpush1.bf16.msra.mxu0 %v1087
    %3193 = vmatprep.subr.bf16.mxu0 %v1084
    %3194 = vmatpush1.bf16.msra.mxu0 %v1083
    %3195 = vmatprep.subr.bf16.mxu0 %v1080
    %3196 = vmatpush1.bf16.msra.mxu0 %v1079
    %3197 = vmatprep.subr.bf16.mxu0 %v1076
    %3198 = vmatpush1.bf16.msra.mxu0 %v1075
    %3199 = vmatprep.subr.bf16.mxu0 0
    %3200 = vmatpush2.bf16.msra.mxu0 0
    %3201 = vmatprep.subr.bf16.mxu0 0
    %3202 = vmatpush2.bf16.msra.mxu0 0
    %3203 = vmatprep.subr.bf16.mxu0 0
    %3204 = vmatpush2.bf16.msra.mxu0 0
    %3205 = vmatprep.subr.bf16.mxu0 0
    %3206 = vmatpush2.bf16.msra.mxu0 0
    %3207 = vmatprep.subr.bf16.mxu0 0
    %3208 = vmatpush2.bf16.msra.mxu0 0
    %3209 = vmatprep.subr.bf16.mxu0 0
    %3210 = vmatpush2.bf16.msra.mxu0 0
    %3211 = vmatprep.subr.bf16.mxu0 0
    %3212 = vmatpush2.bf16.msra.mxu0 0
    %3213 = vmatprep.subr.bf16.mxu0 0
    %3214 = vmatpush2.bf16.msra.mxu0 0
    %3215 = vmatprep.mubr.bf16.mxu0 0
    %3216 = vmatmul.mubr.bf16.gmra.mxu0 %v3100
    %v3217 = vpop.f32.mrf.mxu0
    %v3218 = vadd.f32 %v3136, %v3217
    %v3219 = vpop.f32.mrf.mxu0
    %v3220 = vadd.f32 %v3138, %v3219
    %v3221 = vpop.f32.mrf.mxu0
    %v3222 = vpop.f32.mrf.mxu0
    %3223 = vdwg.mxu0
    %3224 = vmatprep.subr.bf16.mxu0 %v1106
    %3225 = vmatpush1.bf16.msra.mxu0 %v1105
    %3226 = vmatprep.subr.bf16.mxu0 %v1102
    %3227 = vmatpush1.bf16.msra.mxu0 %v1101
    %3228 = vmatprep.subr.bf16.mxu0 %v1098
    %3229 = vmatpush1.bf16.msra.mxu0 %v1097
    %3230 = vmatprep.subr.bf16.mxu0 %v1094
    %3231 = vmatpush1.bf16.msra.mxu0 %v1093
    %3232 = vmatprep.subr.bf16.mxu0 %v1090
    %3233 = vmatpush1.bf16.msra.mxu0 %v1089
    %3234 = vmatprep.subr.bf16.mxu0 %v1086
    %3235 = vmatpush1.bf16.msra.mxu0 %v1085
    %3236 = vmatprep.subr.bf16.mxu0 %v1082
    %3237 = vmatpush1.bf16.msra.mxu0 %v1081
    %3238 = vmatprep.subr.bf16.mxu0 %v1078
    %3239 = vmatpush1.bf16.msra.mxu0 %v1077
    %3240 = vmatprep.subr.bf16.mxu0 0
    %3241 = vmatpush2.bf16.msra.mxu0 0
    %3242 = vmatprep.subr.bf16.mxu0 0
    %3243 = vmatpush2.bf16.msra.mxu0 0
    %3244 = vmatprep.subr.bf16.mxu0 0
    %3245 = vmatpush2.bf16.msra.mxu0 0
    %3246 = vmatprep.subr.bf16.mxu0 0
    %3247 = vmatpush2.bf16.msra.mxu0 0
    %3248 = vmatprep.subr.bf16.mxu0 0
    %3249 = vmatpush2.bf16.msra.mxu0 0
    %3250 = vmatprep.subr.bf16.mxu0 0
    %3251 = vmatpush2.bf16.msra.mxu0 0
    %3252 = vmatprep.subr.bf16.mxu0 0
    %3253 = vmatpush2.bf16.msra.mxu0 0
    %3254 = vmatprep.subr.bf16.mxu0 0
    %3255 = vmatpush2.bf16.msra.mxu0 0
    %3256 = vmatprep.mubr.bf16.mxu0 0
    %3257 = vmatmul.mubr.bf16.gmra.mxu0 %v3100
    %v3258 = vpop.f32.mrf.mxu0
    %v3259 = vadd.f32 %v3177, %v3258
    %v3260 = vpop.f32.mrf.mxu0
    %v3261 = vadd.f32 %v3179, %v3260
    %v3262 = vpop.f32.mrf.mxu0
    %v3263 = vpop.f32.mrf.mxu0
    %3264 = vdwg.mxu0
    %v3265 = vadd.f32 %v3218, %v170
    %v3266 = vadd.f32 %v3220, %v174
    %v3267 = vadd.f32 %v3259, %v178
    %v3268 = vadd.f32 %v3261, %v182
    %v3269 = vmul.f32 %v3265, 0.5
    %v3270 = vtanh.pop %v3269
    %v3271 = vmul.f32 %v3270, 0.5
    %v3272 = vadd.f32 %v3271, 0.5
    %v3273 = vmul.f32 %v3266, 0.5
    %v3274 = vtanh.pop %v3273
    %v3275 = vmul.f32 %v3274, 0.5
    %v3276 = vadd.f32 %v3275, 0.5
    %v3277 = vtanh.pop %v3267
    %v3278 = vmul.f32 %v3268, 0.5
    %v3279 = vtanh.pop %v3278
    %v3280 = vmul.f32 %v3279, 0.5
    %v3281 = vadd.f32 %v3280, 0.5
    %v3282 = vmul.f32 %v3276, %v2992
    %v3283 = vmul.f32 %v3272, %v3277
    %v3284 = vadd.f32 %v3282, %v3283
    %v3285 = vtanh.pop %v3284
    %v3286 = vmul.f32 %v3281, %v3285
    %v3287 = vpack.c.bf16 %v3286, %v3286
    %v3288 = vld [vmem:[%s7] sm:$0xf]
    %v3289 = vld [vmem:[%s7 + $0x4] sm:$0xf]
    %v3290 = vld [vmem:[%s7 + $0x8] sm:$0xf]
    %v3291 = vld [vmem:[%s7 + $0xc] sm:$0xf]
    %v3292 = vld [vmem:[%s7 + $0x10] sm:$0xf]
    %v3293 = vld [vmem:[%s7 + $0x14] sm:$0xf]
    %v3294 = vld [vmem:[%s7 + $0x18] sm:$0xf]
    %v3295 = vld [vmem:[%s7 + $0x1c] sm:$0xf]
    %v3296 = vld [vmem:[%s7 + $0x20] sm:$0xf]
    %v3297 = vld [vmem:[%s7 + $0x24] sm:$0xf]
    %v3298 = vld [vmem:[%s7 + $0x28] sm:$0xf]
    %v3299 = vld [vmem:[%s7 + $0x2c] sm:$0xf]
    %v3300 = vld [vmem:[%s7 + $0x30] sm:$0xf]
    %v3301 = vld [vmem:[%s7 + $0x34] sm:$0xf]
    %v3302 = vld [vmem:[%s7 + $0x38] sm:$0xf]
    %v3303 = vld [vmem:[%s7 + $0x3c] sm:$0xf]
    %v3304 = vld [vmem:[%s8] sm:$0x1]
    %v3306 = vlaneseq
    %v3307 = vshrl.u32 %v3306, 7
    %v3308 = vsub.s32 0, %v3307
    %v3309 = vrot.slane %v3304, %v3308
    %v3327 = vunpack.c.l.b16 %v3288
    %v3328 = vunpack.c.l.b16 %v3289
    %v3329 = vunpack.c.l.b16 %v3290
    %v3330 = vunpack.c.l.b16 %v3291
    %v3331 = vunpack.c.l.b16 %v3292
    %v3332 = vunpack.c.l.b16 %v3293
    %v3333 = vunpack.c.l.b16 %v3294
    %v3334 = vunpack.c.l.b16 %v3295
    %v3335 = vunpack.c.l.b16 %v3296
    %v3336 = vunpack.c.l.b16 %v3297
    %v3337 = vunpack.c.l.b16 %v3298
    %v3338 = vunpack.c.l.b16 %v3299
    %v3339 = vunpack.c.l.b16 %v3300
    %v3340 = vunpack.c.l.b16 %v3301
    %v3341 = vunpack.c.l.b16 %v3302
    %v3342 = vunpack.c.l.b16 %v3303
    %v3343 = vpack.c.b16 %v3328, %v3327
    %v3344 = vpack.c.b16 %v3330, %v3329
    %v3345 = vpack.c.b16 %v3332, %v3331
    %v3346 = vpack.c.b16 %v3334, %v3333
    %v3347 = vpack.c.b16 %v3336, %v3335
    %v3348 = vpack.c.b16 %v3338, %v3337
    %v3349 = vpack.c.b16 %v3340, %v3339
    %v3350 = vpack.c.b16 %v3342, %v3341
    %3359 = vmatprep.subr.bf16.mxu0 0
    %3360 = vmatpush1.bf16.msra.mxu0 %v3350
    %3361 = vmatprep.subr.bf16.mxu0 0
    %3362 = vmatpush1.bf16.msra.mxu0 %v3349
    %3363 = vmatprep.subr.bf16.mxu0 0
    %3364 = vmatpush1.bf16.msra.mxu0 %v3348
    %3365 = vmatprep.subr.bf16.mxu0 0
    %3366 = vmatpush1.bf16.msra.mxu0 %v3347
    %3367 = vmatprep.subr.bf16.mxu0 0
    %3368 = vmatpush1.bf16.msra.mxu0 %v3346
    %3369 = vmatprep.subr.bf16.mxu0 0
    %3370 = vmatpush1.bf16.msra.mxu0 %v3345
    %3371 = vmatprep.subr.bf16.mxu0 0
    %3372 = vmatpush1.bf16.msra.mxu0 %v3344
    %3373 = vmatprep.subr.bf16.mxu0 0
    %3374 = vmatpush1.bf16.msra.mxu0 %v3343
    %3375 = vmatprep.subr.bf16.mxu0 0
    %3376 = vmatpush2.bf16.msra.mxu0 0
    %3377 = vmatprep.subr.bf16.mxu0 0
    %3378 = vmatpush2.bf16.msra.mxu0 0
    %3379 = vmatprep.subr.bf16.mxu0 0
    %3380 = vmatpush2.bf16.msra.mxu0 0
    %3381 = vmatprep.subr.bf16.mxu0 0
    %3382 = vmatpush2.bf16.msra.mxu0 0
    %3383 = vmatprep.subr.bf16.mxu0 0
    %3384 = vmatpush2.bf16.msra.mxu0 0
    %3385 = vmatprep.subr.bf16.mxu0 0
    %3386 = vmatpush2.bf16.msra.mxu0 0
    %3387 = vmatprep.subr.bf16.mxu0 0
    %3388 = vmatpush2.bf16.msra.mxu0 0
    %3389 = vmatprep.subr.bf16.mxu0 0
    %3390 = vmatpush2.bf16.msra.mxu0 0
    %3391 = vmatprep.mubr.bf16.mxu0 0
    %3392 = vmatmul.mubr.bf16.gmra.mxu0 %v3287
    %v3393 = vpop.f32.mrf.mxu0
    %v3394 = vadd.f32 %v3309, %v3393
    %v3395 = vpop.f32.mrf.mxu0
    %v3396 = vpop.f32.mrf.mxu0
    %v3397 = vpop.f32.mrf.mxu0
    %3398 = vdwg.mxu0
    %v3399 = vmax.f32 %v3394, 0.0
    %v3400 = vpack.c.bf16 %v3399, %v3399
    %v3401 = vld [vmem:[%s9] sm:$0xf]
    %v3402 = vld [vmem:[%s9 + $0x4] sm:$0xf]
    %v3403 = vld [vmem:[%s9 + $0x8] sm:$0xf]
    %v3404 = vld [vmem:[%s9 + $0xc] sm:$0xf]
    %v3405 = vld [vmem:[%s9 + $0x10] sm:$0xf]
    %v3406 = vld [vmem:[%s9 + $0x14] sm:$0xf]
    %v3407 = vld [vmem:[%s9 + $0x18] sm:$0xf]
    %v3408 = vld [vmem:[%s9 + $0x1c] sm:$0xf]
    %v3409 = vld [vmem:[%s10] sm:$0x1]
    %v3411 = vlaneseq
    %v3412 = vshrl.u32 %v3411, 7
    %v3413 = vsub.s32 0, %v3412
    %v3414 = vrot.slane %v3409, %v3413
    %v3424 = vunpack.c.l.b16 %v3401
    %v3425 = vunpack.c.l.b16 %v3402
    %v3426 = vunpack.c.l.b16 %v3403
    %v3427 = vunpack.c.l.b16 %v3404
    %v3428 = vunpack.c.l.b16 %v3405
    %v3429 = vunpack.c.l.b16 %v3406
    %v3430 = vunpack.c.l.b16 %v3407
    %v3431 = vunpack.c.l.b16 %v3408
    %v3432 = vpack.c.b16 %v3425, %v3424
    %v3433 = vpack.c.b16 %v3427, %v3426
    %v3434 = vpack.c.b16 %v3429, %v3428
    %v3435 = vpack.c.b16 %v3431, %v3430
    %vm3440 = vcmask 523264
    %v3442 = vsel %vm3440, %v3400, 0
    %3444 = vmatprep.subr.bf16.mxu0 0
    %3445 = vmatpush1.bf16.msra.mxu0 0
    %3446 = vmatprep.subr.bf16.mxu0 0
    %3447 = vmatpush1.bf16.msra.mxu0 0
    %3448 = vmatprep.subr.bf16.mxu0 0
    %3449 = vmatpush1.bf16.msra.mxu0 0
    %3450 = vmatprep.subr.bf16.mxu0 0
    %3451 = vmatpush1.bf16.msra.mxu0 0
    %3452 = vmatprep.subr.bf16.mxu0 0
    %3453 = vmatpush1.bf16.msra.mxu0 %v3435
    %3454 = vmatprep.subr.bf16.mxu0 0
    %3455 = vmatpush1.bf16.msra.mxu0 %v3434
    %3456 = vmatprep.subr.bf16.mxu0 0
    %3457 = vmatpush1.bf16.msra.mxu0 %v3433
    %3458 = vmatprep.subr.bf16.mxu0 0
    %3459 = vmatpush1.bf16.msra.mxu0 %v3432
    %3460 = vmatprep.subr.bf16.mxu0 0
    %3461 = vmatpush2.bf16.msra.mxu0 0
    %3462 = vmatprep.subr.bf16.mxu0 0
    %3463 = vmatpush2.bf16.msra.mxu0 0
    %3464 = vmatprep.subr.bf16.mxu0 0
    %3465 = vmatpush2.bf16.msra.mxu0 0
    %3466 = vmatprep.subr.bf16.mxu0 0
    %3467 = vmatpush2.bf16.msra.mxu0 0
    %3468 = vmatprep.subr.bf16.mxu0 0
    %3469 = vmatpush2.bf16.msra.mxu0 0
    %3470 = vmatprep.subr.bf16.mxu0 0
    %3471 = vmatpush2.bf16.msra.mxu0 0
    %3472 = vmatprep.subr.bf16.mxu0 0
    %3473 = vmatpush2.bf16.msra.mxu0 0
    %3474 = vmatprep.subr.bf16.mxu0 0
    %3475 = vmatpush2.bf16.msra.mxu0 0
    %3476 = vmatprep.mubr.bf16.mxu0 0
    %3477 = vmatmul.mubr.bf16.gmra.mxu0 %v3442
    %v3478 = vpop.f32.mrf.mxu0
    %v3479 = vadd.f32 %v3414, %v3478
    %v3480 = vpop.f32.mrf.mxu0
    %v3481 = vpop.f32.mrf.mxu0
    %v3482 = vpop.f32.mrf.mxu0
    %3483 = vdwg.mxu0
    %3484 = vst.msk [vmem:[%s11] sm:$0xff] %vm221, %v3479
    %v3485 = vsel %vm221, %v3479, -inf
    %3486 = vmax.xlane.f32.xlu0 %v3485
    %v3487 = vpop.xlane.xlu0 %3486
    %v3488 = vsub.f32 %v3479, %v3487
    %v3489 = vmul.f32 %v3488, 1.442695
    %v3490 = vpow.pop %v3489
    %v3491 = vsel %vm221, %v3490, 0.0
    %3492 = vadd.xlane.f32.xlu0 %v3491
    %v3493 = vpop.xlane.xlu0 %3492
    %v3494 = vrcp.pop %v3493
    %v3495 = vmul.f32 %v3490, %v3494
    %3496 = vst.msk [vmem:[%s12] sm:$0xff] %vm221, %v3495
    // Predicated region
    $region54: #{emotion_lstm_forward.1} parent=1 // pred_check
      _
    $region55: #{emotion_lstm_forward.1} parent=1 // pred_check_branch
      %3498 = sbr.rel (0) target = $region57
    $region56: #{emotion_lstm_forward.1} parent=1 // pred_region
      _
    $region57: #{emotion_lstm_forward.1} parent=1 // pred_fallthru
      _
    // Predicated region
    $region58: #{emotion_lstm_forward.1} parent=1 // pred_check
      _
    $region59: #{emotion_lstm_forward.1} parent=1 // pred_check_branch
      %3500 = sbr.rel (0) target = $region61
    $region60: #{emotion_lstm_forward.1} parent=1 // pred_region
      _
    $region61: #{emotion_lstm_forward.1} parent=1 // pred_fallthru
      _
    // Predicated region
    $region62: #{emotion_lstm_forward.1} parent=1 // pred_check
      _
    $region63: #{emotion_lstm_forward.1} parent=1 // pred_check_branch
      %3502 = sbr.rel (0) target = $region65
    $region64: #{emotion_lstm_forward.1} parent=1 // pred_region
      _
    $region65: #{emotion_lstm_forward.1} parent=1 // pred_fallthru
      _
    // Predicated region
    $region66: #{emotion_lstm_forward.1} parent=1 // pred_check
      _
    $region67: #{emotion_lstm_forward.1} parent=1 // pred_check_branch
      %3504 = sbr.rel (0) target = $region69
    $region68: #{emotion_lstm_forward.1} parent=1 // pred_region
      _
    $region69: #{emotion_lstm_forward.1} parent=1 // pred_fallthru
      _
    %3505 = vsyncpa [#allocation3], 1
    %3506 = vsyncpa [#allocation5], 1

</llo_original>
